<compile_context>
chip_gen: v6e
topology: v6e:2x2x1
jax: 0.10.0
libtpu: 0.0.40
codegen_flags: <defaults>
</compile_context>

<pallas_src>
import functools
import math

import jax
import jax.numpy as jnp
from jax.experimental import pallas as pl
from jax.experimental.pallas import tpu as pltpu

# ---- model hyper-parameters (small, consistent with the module) ------------
B        = 2      # batch
LQ       = 8      # decoder sequence length
LK       = 16     # encoder sequence length
D_MODEL  = 32
D_INNER  = 64
N_HEAD   = 4
D_K      = 8      # per-head dim  (n_head * d_k == d_model here)
LN_EPS   = 1e-5
HD       = N_HEAD * D_K                 # 32

# ---- packed ACTIVATION buffer layout: (B, R_ACT, D_MODEL) -------------------
ROW_DEC = 0                       # (LQ, D)        decoder input
ROW_ENC = ROW_DEC + LQ            # (D, LK pad D)  encoder output, pre-transposed
ROW_BS  = ROW_ENC + D_MODEL       # (H*LQ, LQ pad) self-attn additive bias, head-tiled
ROW_BC  = ROW_BS + N_HEAD * LQ    # (H*LQ, LK pad) cross-attn additive bias, head-tiled
R_ACT   = ROW_BC + N_HEAD * LQ    # 104  (multiple of 8 -> tile aligned)

# ---- packed WEIGHT buffer layout: (R_WP, D_MODEL) ---------------------------
R_WQK1 = 0                        # (2*HD, D) fused [wq1/sqrt(dk); wk1]
R_FCT1 = R_WQK1 + 2 * HD          # (HD, D)   fc1.T * scale
R_WQ2  = R_FCT1 + HD              # (HD, D)   wq2 / sqrt(dk)
R_WK2  = R_WQ2 + HD               # (HD, D)   wk2
R_FCT2 = R_WK2 + HD               # (HD, D)   fc2.T * scale
R_W2T  = R_FCT2 + HD              # (D_INNER, D) w2.T * scale
R_LN   = R_W2T + D_INNER          # (8, D)    g1,b1,g2,b2,g3,b3,pad,pad
R_WP   = R_LN + 8                 # 264


def decoder_layer_kernel(act_ref, wp_ref, w1t_ref, out_ref, attn_ref, *, nb):
    """nb = number of batches handled by this invocation (B gridless, 1 gridded)."""

    def layer_norm(v, g, b):
        mu  = jnp.mean(v, axis=-1, keepdims=True)
        c   = v - mu
        var = jnp.mean(c * c, axis=-1, keepdims=True)
        return c * jax.lax.rsqrt(var + LN_EPS) * g + b

    def attend(qT, kT, bias, fct, residual):
        # qT : (H*D_K, LQ) head-major query projection (1/sqrt(dk) folded in)
        # kT : (H*D_K, lk) head-major key projection (V == K, shared_kv)
        # bias: (H*LQ, lk) additive mask bias, pre-tiled per head on the host
        # fct : (H*D_K, D) output projection with residual scale folded in
        # Fused-head softmax: one (H*LQ, lk) score slab, single max/exp/sum/div.
        s = jnp.concatenate(
            [jnp.dot(qT[h * D_K:(h + 1) * D_K, :].T, kT[h * D_K:(h + 1) * D_K, :],
                     preferred_element_type=jnp.float32) for h in range(N_HEAD)],
            axis=0) + bias                                        # (H*LQ, lk)
        s = s - jnp.max(s, axis=-1, keepdims=True)
        e = jnp.exp(s)
        p = e / jnp.sum(e, axis=-1, keepdims=True)                # exact recip (tolerance)
        # per-head context, lane-concatenated -> ONE output-projection matmul
        ctx = jnp.concatenate(
            [jnp.dot(p[h * LQ:(h + 1) * LQ, :], kT[h * D_K:(h + 1) * D_K, :].T,
                     preferred_element_type=jnp.float32) for h in range(N_HEAD)],
            axis=1)                                               # (LQ, H*D_K)
        out = jnp.dot(ctx, fct, preferred_element_type=jnp.float32) + residual
        return out, p

    # LayerNorm params: one 8-row (= 1 vreg) aligned load, value-sliced.
    ln = wp_ref[R_LN:R_LN + 8, :]
    g1, b1 = ln[0:1, :], ln[1:2, :]
    g2, b2 = ln[2:3, :], ln[3:4, :]
    g3, b3 = ln[4:5, :], ln[5:6, :]

    ys = []
    for bi in range(nb):
        dec_b = act_ref[bi, ROW_DEC:ROW_DEC + LQ, :]              # (LQ, D)

        # ---- self attention (fused Q/K projection) --------------------------
        xn1 = layer_norm(dec_b, g1, b1)
        qkT = jnp.dot(wp_ref[R_WQK1:R_WQK1 + 2 * HD, :], xn1.T,
                      preferred_element_type=jnp.float32)         # (2*HD, LQ)
        bias_s_b = act_ref[bi, ROW_BS:ROW_BS + N_HEAD * LQ, :][:, :LQ]
        x1, _ = attend(qkT[:HD, :], qkT[HD:, :], bias_s_b,
                       wp_ref[R_FCT1:R_FCT1 + HD, :], dec_b)

        # ---- encoder-decoder attention --------------------------------------
        # K projection uses the host-pre-transposed encoder slab: no in-kernel
        # transpose, and it only depends on enc (off the serial self-attn chain).
        encT_b = act_ref[bi, ROW_ENC:ROW_ENC + D_MODEL, :][:, :LK]    # (D, LK)
        kT2 = jnp.dot(wp_ref[R_WK2:R_WK2 + HD, :], encT_b,
                      preferred_element_type=jnp.float32)             # (H*D_K, LK)
        xn2 = layer_norm(x1, g2, b2)
        qT2 = jnp.dot(wp_ref[R_WQ2:R_WQ2 + HD, :], xn2.T,
                      preferred_element_type=jnp.float32)             # (H*D_K, LQ)
        bias_c_b = act_ref[bi, ROW_BC:ROW_BC + N_HEAD * LQ, :][:, :LK]
        x2, p2 = attend(qT2, kT2, bias_c_b,
                        wp_ref[R_FCT2:R_FCT2 + HD, :], x1)
        attn_ref[bi] = p2                                          # one (H*LQ, LK) slab store
        ys.append(x2)

    # ---- position-wise FFN, folded over the nb batches of this call ---------
    x   = jnp.concatenate(ys, axis=0)                              # (nb*LQ, D)
    xn3 = layer_norm(x, g3, b3)
    hdn = jnp.maximum(jnp.dot(xn3, w1t_ref[...],
                              preferred_element_type=jnp.float32), 0.0)
    y   = jnp.dot(hdn, wp_ref[R_W2T:R_W2T + D_INNER, :],
                  preferred_element_type=jnp.float32) + x
    for bi in range(nb):
        out_ref[bi] = y[bi * LQ:(bi + 1) * LQ, :]                  # one store per batch


def _default_batch_parallel():
    """True only on 2-TensorCore chips (v7x): shard the batch across the cores."""
    try:
        kind = jax.devices()[0].device_kind.lower()
    except Exception:
        return False
    return ("v7" in kind) or ("7x" in kind)


def decoder_layer_pallas(dec, enc, slf_mask, dec_enc_mask, params, scale=1.0,
                         batch_parallel=None):
    """params: dict of torch-layout weights; all packing / folding done here (host glue)."""
    if batch_parallel is None:
        batch_parallel = _default_batch_parallel()
    inv_temp = 1.0 / math.sqrt(D_K)

    # ---- activations: ONE packed (B, R_ACT, D) buffer (1 DMA instead of 4) ----
    bias_s = jnp.where(slf_mask > 0, 0.0, -1e9).astype(jnp.float32)       # (B, LQ, LQ)
    bias_c = jnp.where(dec_enc_mask > 0, 0.0, -1e9).astype(jnp.float32)   # (B, LQ, LK)
    encT   = jnp.swapaxes(enc, 1, 2).astype(jnp.float32)                  # (B, D, LK)

    def pad_lanes(x):  # lane-pad last dim to D_MODEL so everything shares one layout
        return jnp.pad(x, ((0, 0), (0, 0), (0, D_MODEL - x.shape[-1])))

    act = jnp.concatenate([
        dec.astype(jnp.float32),                        # (B, LQ, D)
        pad_lanes(encT),                                # (B, D, D)    pre-transposed enc
        pad_lanes(jnp.tile(bias_s, (1, N_HEAD, 1))),    # (B, H*LQ, D) head-tiled bias
        pad_lanes(jnp.tile(bias_c, (1, N_HEAD, 1))),    # (B, H*LQ, D) head-tiled bias
    ], axis=1)                                          # (B, 104, 32)

    # ---- weights: ONE packed (R_WP, D) buffer + W1^T; scales folded here ------
    ln_rows = jnp.stack([
        params["ln1_g"], params["ln1_b"],
        params["ln2_g"], params["ln2_b"],
        params["ln3_g"], params["ln3_b"],
        jnp.zeros((D_MODEL,), jnp.float32), jnp.zeros((D_MODEL,), jnp.float32),
    ], axis=0)                                          # (8, 32)
    wpack = jnp.concatenate([
        params["wq1"] * inv_temp,          # fused self-attn [Wq; Wk] block
        params["wk1"],
        params["fc1"].T * scale,           # residual scale folded in
        params["wq2"] * inv_temp,
        params["wk2"],
        params["fc2"].T * scale,
        params["w2"].T * scale,
        ln_rows,
    ], axis=0).astype(jnp.float32)                      # (264, 32)
    w1t = params["w1"].T.astype(jnp.float32)            # (32, 64)

    out_shape = (jax.ShapeDtypeStruct((B, LQ, D_MODEL), jnp.float32),
                 jax.ShapeDtypeStruct((B, N_HEAD * LQ, LK), jnp.float32))

    if batch_parallel:
        # v7x: one batch per grid step, "parallel" -> split across the 2 TensorCores.
        call = pl.pallas_call(
            functools.partial(decoder_layer_kernel, nb=1),
            out_shape=out_shape,
            grid=(B,),
            in_specs=[
                pl.BlockSpec((1, R_ACT, D_MODEL), lambda b: (b, 0, 0)),
                pl.BlockSpec((R_WP, D_MODEL), lambda b: (0, 0)),     # weights stay resident
                pl.BlockSpec((D_MODEL, D_INNER), lambda b: (0, 0)),
            ],
            out_specs=(
                pl.BlockSpec((1, LQ, D_MODEL), lambda b: (b, 0, 0)),
                pl.BlockSpec((1, N_HEAD * LQ, LK), lambda b: (b, 0, 0)),
            ),
            compiler_params=pltpu.CompilerParams(dimension_semantics=("parallel",)),
        )
    else:
        # v5e/v6e: single TensorCore -> gridless single invocation (no per-step
        # pipeline bookkeeping); both batches handled inside one call.
        call = pl.pallas_call(
            functools.partial(decoder_layer_kernel, nb=B),
            out_shape=out_shape,
        )

    out, attn = call(act, wpack, w1t)
    return out, attn.reshape(B, N_HEAD, LQ, LK)


# ---- pure-JAX reference (mirrors the PyTorch module, eval mode) -------------
def decoder_layer_ref(dec, enc, slf_mask, dec_enc_mask, p, scale=1.0):
    def ln(x, g, b):
        mu = x.mean(-1, keepdims=True)
        var = ((x - mu) ** 2).mean(-1, keepdims=True)
        return (x - mu) / jnp.sqrt(var + LN_EPS) * g + b

    def mha(q_in, kv_in, mask, wq, wk, fc, g, b):
        residual = q_in
        qn = ln(q_in, g, b)
        kv = qn if kv_in is None else kv_in
        Q = qn @ wq.T
        K = kv @ wk.T
        V = K
        Bq, Lq, _ = Q.shape
        Lk = K.shape[1]
        Qh = Q.reshape(Bq, Lq, N_HEAD, D_K).transpose(0, 2, 1, 3)
        Kh = K.reshape(Bq, Lk, N_HEAD, D_K).transpose(0, 2, 1, 3)
        Vh = V.reshape(Bq, Lk, N_HEAD, D_K).transpose(0, 2, 1, 3)
        s = jnp.einsum("bhqd,bhkd->bhqk", Qh, Kh) / math.sqrt(D_K)
        s = jnp.where(mask[:, None] > 0, s, -1e9)
        a = jax.nn.softmax(s, axis=-1)
        o = jnp.einsum("bhqk,bhkd->bhqd", a, Vh)
        o = o.transpose(0, 2, 1, 3).reshape(Bq, Lq, N_HEAD * D_K)
        return o @ fc.T * scale + residual, a

    x, _ = mha(dec, None, slf_mask, p["wq1"], p["wk1"], p["fc1"], p["ln1_g"], p["ln1_b"])
    x, attn = mha(x, enc, dec_enc_mask, p["wq2"], p["wk2"], p["fc2"], p["ln2_g"], p["ln2_b"])
    residual = x
    xn = ln(x, p["ln3_g"], p["ln3_b"])
    y = jnp.maximum(xn @ p["w1"].T, 0.0) @ p["w2"].T
    return y * scale + residual, attn


if __name__ == "__main__":
    key = jax.random.PRNGKey(0)
    ks = jax.random.split(key, 12)

    def lin_w(k, d_out, d_in):           # torch nn.Linear default-ish init, (d_out, d_in)
        bound = 1.0 / math.sqrt(d_in)
        return jax.random.uniform(k, (d_out, d_in), jnp.float32, -bound, bound)

    params = {
        # self-attention (shared_kv=True -> no w_vs)
        "ln1_g": jnp.ones((D_MODEL,), jnp.float32), "ln1_b": jnp.zeros((D_MODEL,), jnp.float32),
        "wq1": lin_w(ks[0], HD, D_MODEL), "wk1": lin_w(ks[1], HD, D_MODEL),
        "fc1": lin_w(ks[2], D_MODEL, HD),
        # enc-dec attention
        "ln2_g": jnp.ones((D_MODEL,), jnp.float32), "ln2_b": jnp.zeros((D_MODEL,), jnp.float32),
        "wq2": lin_w(ks[3], HD, D_MODEL), "wk2": lin_w(ks[4], HD, D_MODEL),
        "fc2": lin_w(ks[5], D_MODEL, HD),
        # position-wise FFN
        "ln3_g": jnp.ones((D_MODEL,), jnp.float32), "ln3_b": jnp.zeros((D_MODEL,), jnp.float32),
        "w1": lin_w(ks[6], D_INNER, D_MODEL), "w2": lin_w(ks[7], D_MODEL, D_INNER),
    }

    dec_input = jax.random.normal(ks[8], (B, LQ, D_MODEL), jnp.float32)
    enc_out   = jax.random.normal(ks[9], (B, LK, D_MODEL), jnp.float32)
    slf_mask  = jnp.broadcast_to(jnp.tril(jnp.ones((LQ, LQ), jnp.float32)), (B, LQ, LQ))
    dec_enc_mask = jnp.ones((B, LQ, LK), jnp.float32).at[1, :, LK - 4:].set(0.0)
    scale = 0.5

    ref_out, ref_attn = decoder_layer_ref(dec_input, enc_out, slf_mask, dec_enc_mask, params, scale)

    # primary path (auto-selected per chip generation)
    out, attn = decoder_layer_pallas(dec_input, enc_out, slf_mask, dec_enc_mask, params, scale)
    out, attn = jax.block_until_ready((out, attn))
    assert jnp.allclose(out, ref_out, atol=1e-4, rtol=1e-4), "dec_out mismatch"
    assert jnp.allclose(attn, ref_attn, atol=5e-5, rtol=1e-4), "attn mismatch"

    # also exercise the non-default path (gridless vs batch-parallel grid) so both
    # code variants stay compile-clean and numerically correct on this chip.
    alt = not _default_batch_parallel()
    out2, attn2 = decoder_layer_pallas(dec_input, enc_out, slf_mask, dec_enc_mask, params, scale,
                                       batch_parallel=alt)
    out2, attn2 = jax.block_until_ready((out2, attn2))
    assert jnp.allclose(out2, ref_out, atol=1e-4, rtol=1e-4), "dec_out mismatch (alt path)"
    assert jnp.allclose(attn2, ref_attn, atol=5e-5, rtol=1e-4), "attn mismatch (alt path)"

    # TODO(synk): dropout layers are identity in eval mode and are not emulated.
    print("KERNEL_OK")
</pallas_src>

<mosaic_0001>
module attributes {stable_mosaic.version = 11 : i64} {
  func.func @decoder_layer_kernel(%arg0: memref<2x104x32xf32, #tpu.memory_space<vmem>>, %arg1: memref<264x32xf32, #tpu.memory_space<vmem>>, %arg2: memref<32x64xf32, #tpu.memory_space<vmem>>, %arg3: memref<2x8x32xf32, #tpu.memory_space<vmem>>, %arg4: memref<2x32x16xf32, #tpu.memory_space<vmem>>) attributes {dimension_semantics = [], scalar_prefetch = 0 : i64, scratch_operands = 0 : i64, tpu.core_type = #tpu.core_type<tc>} {
    %c256 = arith.constant 256 : index
    %c0 = arith.constant 0 : index
    %0 = vector.load %arg1[%c256, %c0] : memref<264x32xf32, #tpu.memory_space<vmem>>, vector<8x32xf32>
    %1 = vector.extract_strided_slice %0 {offsets = [0, 0], sizes = [1, 32], strides = [1, 1]} : vector<8x32xf32> to vector<1x32xf32>
    %2 = vector.extract_strided_slice %0 {offsets = [1, 0], sizes = [1, 32], strides = [1, 1]} : vector<8x32xf32> to vector<1x32xf32>
    %3 = vector.extract_strided_slice %0 {offsets = [2, 0], sizes = [1, 32], strides = [1, 1]} : vector<8x32xf32> to vector<1x32xf32>
    %4 = vector.extract_strided_slice %0 {offsets = [3, 0], sizes = [1, 32], strides = [1, 1]} : vector<8x32xf32> to vector<1x32xf32>
    %5 = vector.extract_strided_slice %0 {offsets = [4, 0], sizes = [1, 32], strides = [1, 1]} : vector<8x32xf32> to vector<1x32xf32>
    %6 = vector.extract_strided_slice %0 {offsets = [5, 0], sizes = [1, 32], strides = [1, 1]} : vector<8x32xf32> to vector<1x32xf32>
    %c0_0 = arith.constant 0 : index
    %c0_1 = arith.constant 0 : index
    %c0_2 = arith.constant 0 : index
    %7 = vector.load %arg0[%c0_0, %c0_1, %c0_2] : memref<2x104x32xf32, #tpu.memory_space<vmem>>, vector<1x8x32xf32>
    %8 = vector.shape_cast %7 : vector<1x8x32xf32> to vector<8x32xf32>
    %cst = arith.constant dense<0.000000e+00> : vector<8xf32>
    %9 = vector.multi_reduction <add>, %8, %cst [1] : vector<8x32xf32> to vector<8xf32>
    %10 = vector.shape_cast %9 : vector<8xf32> to vector<8x1xf32>
    %cst_3 = arith.constant 3.200000e+01 : f32
    %11 = vector.broadcast %cst_3 : f32 to vector<8x1xf32>
    %12 = arith.divf %10, %11 : vector<8x1xf32>
    %13 = vector.broadcast %12 : vector<8x1xf32> to vector<8x32xf32>
    %14 = arith.subf %8, %13 : vector<8x32xf32>
    %15 = arith.mulf %14, %14 : vector<8x32xf32>
    %cst_4 = arith.constant dense<0.000000e+00> : vector<8xf32>
    %16 = vector.multi_reduction <add>, %15, %cst_4 [1] : vector<8x32xf32> to vector<8xf32>
    %17 = vector.shape_cast %16 : vector<8xf32> to vector<8x1xf32>
    %cst_5 = arith.constant 3.200000e+01 : f32
    %18 = vector.broadcast %cst_5 : f32 to vector<8x1xf32>
    %19 = arith.divf %17, %18 : vector<8x1xf32>
    %cst_6 = arith.constant 9.99999974E-6 : f32
    %20 = vector.broadcast %cst_6 : f32 to vector<8x1xf32>
    %21 = arith.addf %19, %20 : vector<8x1xf32>
    %22 = math.rsqrt %21 : vector<8x1xf32>
    %23 = vector.broadcast %22 : vector<8x1xf32> to vector<8x32xf32>
    %24 = arith.mulf %14, %23 : vector<8x32xf32>
    %25 = vector.broadcast %1 : vector<1x32xf32> to vector<8x32xf32>
    %26 = arith.mulf %24, %25 : vector<8x32xf32>
    %27 = vector.broadcast %2 : vector<1x32xf32> to vector<8x32xf32>
    %28 = arith.addf %26, %27 : vector<8x32xf32>
    %c0_7 = arith.constant 0 : index
    %c0_8 = arith.constant 0 : index
    %29 = vector.load %arg1[%c0_7, %c0_8] : memref<264x32xf32, #tpu.memory_space<vmem>>, vector<64x32xf32>
    %30 = tpu.transpose %28, [1, 0] : vector<8x32xf32> -> vector<32x8xf32>
    %cst_9 = arith.constant dense<0.000000e+00> : vector<64x8xf32>
    %31 = tpu.matmul %29, %30, %cst_9 {dimension_numbers = #tpu.dot_dimension_numbers<[1], [0], [0], [1], [0, 0, 1, 1], [], []>} : vector<64x32xf32>, vector<32x8xf32>, vector<64x8xf32> -> vector<64x8xf32>
    %c0_10 = arith.constant 0 : index
    %c40 = arith.constant 40 : index
    %c0_11 = arith.constant 0 : index
    %32 = vector.load %arg0[%c0_10, %c40, %c0_11] : memref<2x104x32xf32, #tpu.memory_space<vmem>>, vector<1x32x32xf32>
    %33 = vector.shape_cast %32 : vector<1x32x32xf32> to vector<32x32xf32>
    %34 = vector.extract_strided_slice %33 {offsets = [0, 0], sizes = [32, 8], strides = [1, 1]} : vector<32x32xf32> to vector<32x8xf32>
    %35 = vector.extract_strided_slice %31 {offsets = [0, 0], sizes = [32, 8], strides = [1, 1]} : vector<64x8xf32> to vector<32x8xf32>
    %36 = vector.extract_strided_slice %31 {offsets = [32, 0], sizes = [32, 8], strides = [1, 1]} : vector<64x8xf32> to vector<32x8xf32>
    %c64 = arith.constant 64 : index
    %c0_12 = arith.constant 0 : index
    %37 = vector.load %arg1[%c64, %c0_12] : memref<264x32xf32, #tpu.memory_space<vmem>>, vector<32x32xf32>
    %38 = vector.extract_strided_slice %35 {offsets = [0, 0], sizes = [8, 8], strides = [1, 1]} : vector<32x8xf32> to vector<8x8xf32>
    %39 = tpu.transpose %38, [1, 0] : vector<8x8xf32> -> vector<8x8xf32>
    %40 = vector.extract_strided_slice %36 {offsets = [0, 0], sizes = [8, 8], strides = [1, 1]} : vector<32x8xf32> to vector<8x8xf32>
    %cst_13 = arith.constant dense<0.000000e+00> : vector<8x8xf32>
    %41 = tpu.matmul %39, %40, %cst_13 {dimension_numbers = #tpu.dot_dimension_numbers<[1], [0], [0], [1], [0, 0, 1, 1], [], []>} : vector<8x8xf32>, vector<8x8xf32>, vector<8x8xf32> -> vector<8x8xf32>
    %42 = vector.extract_strided_slice %35 {offsets = [8, 0], sizes = [8, 8], strides = [1, 1]} : vector<32x8xf32> to vector<8x8xf32>
    %43 = tpu.transpose %42, [1, 0] : vector<8x8xf32> -> vector<8x8xf32>
    %44 = vector.extract_strided_slice %36 {offsets = [8, 0], sizes = [8, 8], strides = [1, 1]} : vector<32x8xf32> to vector<8x8xf32>
    %cst_14 = arith.constant dense<0.000000e+00> : vector<8x8xf32>
    %45 = tpu.matmul %43, %44, %cst_14 {dimension_numbers = #tpu.dot_dimension_numbers<[1], [0], [0], [1], [0, 0, 1, 1], [], []>} : vector<8x8xf32>, vector<8x8xf32>, vector<8x8xf32> -> vector<8x8xf32>
    %46 = vector.extract_strided_slice %35 {offsets = [16, 0], sizes = [8, 8], strides = [1, 1]} : vector<32x8xf32> to vector<8x8xf32>
    %47 = tpu.transpose %46, [1, 0] : vector<8x8xf32> -> vector<8x8xf32>
    %48 = vector.extract_strided_slice %36 {offsets = [16, 0], sizes = [8, 8], strides = [1, 1]} : vector<32x8xf32> to vector<8x8xf32>
    %cst_15 = arith.constant dense<0.000000e+00> : vector<8x8xf32>
    %49 = tpu.matmul %47, %48, %cst_15 {dimension_numbers = #tpu.dot_dimension_numbers<[1], [0], [0], [1], [0, 0, 1, 1], [], []>} : vector<8x8xf32>, vector<8x8xf32>, vector<8x8xf32> -> vector<8x8xf32>
    %50 = vector.extract_strided_slice %35 {offsets = [24, 0], sizes = [8, 8], strides = [1, 1]} : vector<32x8xf32> to vector<8x8xf32>
    %51 = tpu.transpose %50, [1, 0] : vector<8x8xf32> -> vector<8x8xf32>
    %52 = vector.extract_strided_slice %36 {offsets = [24, 0], sizes = [8, 8], strides = [1, 1]} : vector<32x8xf32> to vector<8x8xf32>
    %cst_16 = arith.constant dense<0.000000e+00> : vector<8x8xf32>
    %53 = tpu.matmul %51, %52, %cst_16 {dimension_numbers = #tpu.dot_dimension_numbers<[1], [0], [0], [1], [0, 0, 1, 1], [], []>} : vector<8x8xf32>, vector<8x8xf32>, vector<8x8xf32> -> vector<8x8xf32>
    %54 = tpu.concatenate %41, %45, %49, %53 in 0 : vector<8x8xf32>, vector<8x8xf32>, vector<8x8xf32>, vector<8x8xf32> -> vector<32x8xf32>
    %55 = arith.addf %54, %34 : vector<32x8xf32>
    %cst_17 = arith.constant dense<0xFF800000> : vector<32xf32>
    %56 = vector.multi_reduction <maximumf>, %55, %cst_17 [1] : vector<32x8xf32> to vector<32xf32>
    %57 = vector.shape_cast %56 : vector<32xf32> to vector<32x1xf32>
    %58 = vector.broadcast %57 : vector<32x1xf32> to vector<32x8xf32>
    %59 = arith.subf %55, %58 : vector<32x8xf32>
    %60 = math.exp %59 : vector<32x8xf32>
    %cst_18 = arith.constant dense<0.000000e+00> : vector<32xf32>
    %61 = vector.multi_reduction <add>, %60, %cst_18 [1] : vector<32x8xf32> to vector<32xf32>
    %62 = vector.shape_cast %61 : vector<32xf32> to vector<32x1xf32>
    %63 = vector.broadcast %62 : vector<32x1xf32> to vector<32x8xf32>
    %64 = arith.divf %60, %63 : vector<32x8xf32>
    %65 = vector.extract_strided_slice %64 {offsets = [0, 0], sizes = [8, 8], strides = [1, 1]} : vector<32x8xf32> to vector<8x8xf32>
    %66 = vector.extract_strided_slice %36 {offsets = [0, 0], sizes = [8, 8], strides = [1, 1]} : vector<32x8xf32> to vector<8x8xf32>
    %67 = tpu.transpose %66, [1, 0] : vector<8x8xf32> -> vector<8x8xf32>
    %cst_19 = arith.constant dense<0.000000e+00> : vector<8x8xf32>
    %68 = tpu.matmul %65, %67, %cst_19 {dimension_numbers = #tpu.dot_dimension_numbers<[1], [0], [0], [1], [0, 0, 1, 1], [], []>} : vector<8x8xf32>, vector<8x8xf32>, vector<8x8xf32> -> vector<8x8xf32>
    %69 = vector.extract_strided_slice %64 {offsets = [8, 0], sizes = [8, 8], strides = [1, 1]} : vector<32x8xf32> to vector<8x8xf32>
    %70 = vector.extract_strided_slice %36 {offsets = [8, 0], sizes = [8, 8], strides = [1, 1]} : vector<32x8xf32> to vector<8x8xf32>
    %71 = tpu.transpose %70, [1, 0] : vector<8x8xf32> -> vector<8x8xf32>
    %cst_20 = arith.constant dense<0.000000e+00> : vector<8x8xf32>
    %72 = tpu.matmul %69, %71, %cst_20 {dimension_numbers = #tpu.dot_dimension_numbers<[1], [0], [0], [1], [0, 0, 1, 1], [], []>} : vector<8x8xf32>, vector<8x8xf32>, vector<8x8xf32> -> vector<8x8xf32>
    %73 = vector.extract_strided_slice %64 {offsets = [16, 0], sizes = [8, 8], strides = [1, 1]} : vector<32x8xf32> to vector<8x8xf32>
    %74 = vector.extract_strided_slice %36 {offsets = [16, 0], sizes = [8, 8], strides = [1, 1]} : vector<32x8xf32> to vector<8x8xf32>
    %75 = tpu.transpose %74, [1, 0] : vector<8x8xf32> -> vector<8x8xf32>
    %cst_21 = arith.constant dense<0.000000e+00> : vector<8x8xf32>
    %76 = tpu.matmul %73, %75, %cst_21 {dimension_numbers = #tpu.dot_dimension_numbers<[1], [0], [0], [1], [0, 0, 1, 1], [], []>} : vector<8x8xf32>, vector<8x8xf32>, vector<8x8xf32> -> vector<8x8xf32>
    %77 = vector.extract_strided_slice %64 {offsets = [24, 0], sizes = [8, 8], strides = [1, 1]} : vector<32x8xf32> to vector<8x8xf32>
    %78 = vector.extract_strided_slice %36 {offsets = [24, 0], sizes = [8, 8], strides = [1, 1]} : vector<32x8xf32> to vector<8x8xf32>
    %79 = tpu.transpose %78, [1, 0] : vector<8x8xf32> -> vector<8x8xf32>
    %cst_22 = arith.constant dense<0.000000e+00> : vector<8x8xf32>
    %80 = tpu.matmul %77, %79, %cst_22 {dimension_numbers = #tpu.dot_dimension_numbers<[1], [0], [0], [1], [0, 0, 1, 1], [], []>} : vector<8x8xf32>, vector<8x8xf32>, vector<8x8xf32> -> vector<8x8xf32>
    %81 = tpu.concatenate %68, %72, %76, %80 in 1 : vector<8x8xf32>, vector<8x8xf32>, vector<8x8xf32>, vector<8x8xf32> -> vector<8x32xf32>
    %cst_23 = arith.constant dense<0.000000e+00> : vector<8x32xf32>
    %82 = tpu.matmul %81, %37, %cst_23 {dimension_numbers = #tpu.dot_dimension_numbers<[1], [0], [0], [1], [0, 0, 1, 1], [], []>} : vector<8x32xf32>, vector<32x32xf32>, vector<8x32xf32> -> vector<8x32xf32>
    %83 = arith.addf %82, %8 : vector<8x32xf32>
    %c0_24 = arith.constant 0 : index
    %c8 = arith.constant 8 : index
    %c0_25 = arith.constant 0 : index
    %84 = vector.load %arg0[%c0_24, %c8, %c0_25] : memref<2x104x32xf32, #tpu.memory_space<vmem>>, vector<1x32x32xf32>
    %85 = vector.shape_cast %84 : vector<1x32x32xf32> to vector<32x32xf32>
    %86 = vector.extract_strided_slice %85 {offsets = [0, 0], sizes = [32, 16], strides = [1, 1]} : vector<32x32xf32> to vector<32x16xf32>
    %c128 = arith.constant 128 : index
    %c0_26 = arith.constant 0 : index
    %87 = vector.load %arg1[%c128, %c0_26] : memref<264x32xf32, #tpu.memory_space<vmem>>, vector<32x32xf32>
    %cst_27 = arith.constant dense<0.000000e+00> : vector<32x16xf32>
    %88 = tpu.matmul %87, %86, %cst_27 {dimension_numbers = #tpu.dot_dimension_numbers<[1], [0], [0], [1], [0, 0, 1, 1], [], []>} : vector<32x32xf32>, vector<32x16xf32>, vector<32x16xf32> -> vector<32x16xf32>
    %cst_28 = arith.constant dense<0.000000e+00> : vector<8xf32>
    %89 = vector.multi_reduction <add>, %83, %cst_28 [1] : vector<8x32xf32> to vector<8xf32>
    %90 = vector.shape_cast %89 : vector<8xf32> to vector<8x1xf32>
    %cst_29 = arith.constant 3.200000e+01 : f32
    %91 = vector.broadcast %cst_29 : f32 to vector<8x1xf32>
    %92 = arith.divf %90, %91 : vector<8x1xf32>
    %93 = vector.broadcast %92 : vector<8x1xf32> to vector<8x32xf32>
    %94 = arith.subf %83, %93 : vector<8x32xf32>
    %95 = arith.mulf %94, %94 : vector<8x32xf32>
    %cst_30 = arith.constant dense<0.000000e+00> : vector<8xf32>
    %96 = vector.multi_reduction <add>, %95, %cst_30 [1] : vector<8x32xf32> to vector<8xf32>
    %97 = vector.shape_cast %96 : vector<8xf32> to vector<8x1xf32>
    %cst_31 = arith.constant 3.200000e+01 : f32
    %98 = vector.broadcast %cst_31 : f32 to vector<8x1xf32>
    %99 = arith.divf %97, %98 : vector<8x1xf32>
    %cst_32 = arith.constant 9.99999974E-6 : f32
    %100 = vector.broadcast %cst_32 : f32 to vector<8x1xf32>
    %101 = arith.addf %99, %100 : vector<8x1xf32>
    %102 = math.rsqrt %101 : vector<8x1xf32>
    %103 = vector.broadcast %102 : vector<8x1xf32> to vector<8x32xf32>
    %104 = arith.mulf %94, %103 : vector<8x32xf32>
    %105 = vector.broadcast %3 : vector<1x32xf32> to vector<8x32xf32>
    %106 = arith.mulf %104, %105 : vector<8x32xf32>
    %107 = vector.broadcast %4 : vector<1x32xf32> to vector<8x32xf32>
    %108 = arith.addf %106, %107 : vector<8x32xf32>
    %c96 = arith.constant 96 : index
    %c0_33 = arith.constant 0 : index
    %109 = vector.load %arg1[%c96, %c0_33] : memref<264x32xf32, #tpu.memory_space<vmem>>, vector<32x32xf32>
    %110 = tpu.transpose %108, [1, 0] : vector<8x32xf32> -> vector<32x8xf32>
    %cst_34 = arith.constant dense<0.000000e+00> : vector<32x8xf32>
    %111 = tpu.matmul %109, %110, %cst_34 {dimension_numbers = #tpu.dot_dimension_numbers<[1], [0], [0], [1], [0, 0, 1, 1], [], []>} : vector<32x32xf32>, vector<32x8xf32>, vector<32x8xf32> -> vector<32x8xf32>
    %c0_35 = arith.constant 0 : index
    %c72 = arith.constant 72 : index
    %c0_36 = arith.constant 0 : index
    %112 = vector.load %arg0[%c0_35, %c72, %c0_36] : memref<2x104x32xf32, #tpu.memory_space<vmem>>, vector<1x32x32xf32>
    %113 = vector.shape_cast %112 : vector<1x32x32xf32> to vector<32x32xf32>
    %114 = vector.extract_strided_slice %113 {offsets = [0, 0], sizes = [32, 16], strides = [1, 1]} : vector<32x32xf32> to vector<32x16xf32>
    %c160 = arith.constant 160 : index
    %c0_37 = arith.constant 0 : index
    %115 = vector.load %arg1[%c160, %c0_37] : memref<264x32xf32, #tpu.memory_space<vmem>>, vector<32x32xf32>
    %116 = vector.extract_strided_slice %111 {offsets = [0, 0], sizes = [8, 8], strides = [1, 1]} : vector<32x8xf32> to vector<8x8xf32>
    %117 = tpu.transpose %116, [1, 0] : vector<8x8xf32> -> vector<8x8xf32>
    %118 = vector.extract_strided_slice %88 {offsets = [0, 0], sizes = [8, 16], strides = [1, 1]} : vector<32x16xf32> to vector<8x16xf32>
    %cst_38 = arith.constant dense<0.000000e+00> : vector<8x16xf32>
    %119 = tpu.matmul %117, %118, %cst_38 {dimension_numbers = #tpu.dot_dimension_numbers<[1], [0], [0], [1], [0, 0, 1, 1], [], []>} : vector<8x8xf32>, vector<8x16xf32>, vector<8x16xf32> -> vector<8x16xf32>
    %120 = vector.extract_strided_slice %111 {offsets = [8, 0], sizes = [8, 8], strides = [1, 1]} : vector<32x8xf32> to vector<8x8xf32>
    %121 = tpu.transpose %120, [1, 0] : vector<8x8xf32> -> vector<8x8xf32>
    %122 = vector.extract_strided_slice %88 {offsets = [8, 0], sizes = [8, 16], strides = [1, 1]} : vector<32x16xf32> to vector<8x16xf32>
    %cst_39 = arith.constant dense<0.000000e+00> : vector<8x16xf32>
    %123 = tpu.matmul %121, %122, %cst_39 {dimension_numbers = #tpu.dot_dimension_numbers<[1], [0], [0], [1], [0, 0, 1, 1], [], []>} : vector<8x8xf32>, vector<8x16xf32>, vector<8x16xf32> -> vector<8x16xf32>
    %124 = vector.extract_strided_slice %111 {offsets = [16, 0], sizes = [8, 8], strides = [1, 1]} : vector<32x8xf32> to vector<8x8xf32>
    %125 = tpu.transpose %124, [1, 0] : vector<8x8xf32> -> vector<8x8xf32>
    %126 = vector.extract_strided_slice %88 {offsets = [16, 0], sizes = [8, 16], strides = [1, 1]} : vector<32x16xf32> to vector<8x16xf32>
    %cst_40 = arith.constant dense<0.000000e+00> : vector<8x16xf32>
    %127 = tpu.matmul %125, %126, %cst_40 {dimension_numbers = #tpu.dot_dimension_numbers<[1], [0], [0], [1], [0, 0, 1, 1], [], []>} : vector<8x8xf32>, vector<8x16xf32>, vector<8x16xf32> -> vector<8x16xf32>
    %128 = vector.extract_strided_slice %111 {offsets = [24, 0], sizes = [8, 8], strides = [1, 1]} : vector<32x8xf32> to vector<8x8xf32>
    %129 = tpu.transpose %128, [1, 0] : vector<8x8xf32> -> vector<8x8xf32>
    %130 = vector.extract_strided_slice %88 {offsets = [24, 0], sizes = [8, 16], strides = [1, 1]} : vector<32x16xf32> to vector<8x16xf32>
    %cst_41 = arith.constant dense<0.000000e+00> : vector<8x16xf32>
    %131 = tpu.matmul %129, %130, %cst_41 {dimension_numbers = #tpu.dot_dimension_numbers<[1], [0], [0], [1], [0, 0, 1, 1], [], []>} : vector<8x8xf32>, vector<8x16xf32>, vector<8x16xf32> -> vector<8x16xf32>
    %132 = tpu.concatenate %119, %123, %127, %131 in 0 : vector<8x16xf32>, vector<8x16xf32>, vector<8x16xf32>, vector<8x16xf32> -> vector<32x16xf32>
    %133 = arith.addf %132, %114 : vector<32x16xf32>
    %cst_42 = arith.constant dense<0xFF800000> : vector<32xf32>
    %134 = vector.multi_reduction <maximumf>, %133, %cst_42 [1] : vector<32x16xf32> to vector<32xf32>
    %135 = vector.shape_cast %134 : vector<32xf32> to vector<32x1xf32>
    %136 = vector.broadcast %135 : vector<32x1xf32> to vector<32x16xf32>
    %137 = arith.subf %133, %136 : vector<32x16xf32>
    %138 = math.exp %137 : vector<32x16xf32>
    %cst_43 = arith.constant dense<0.000000e+00> : vector<32xf32>
    %139 = vector.multi_reduction <add>, %138, %cst_43 [1] : vector<32x16xf32> to vector<32xf32>
    %140 = vector.shape_cast %139 : vector<32xf32> to vector<32x1xf32>
    %141 = vector.broadcast %140 : vector<32x1xf32> to vector<32x16xf32>
    %142 = arith.divf %138, %141 : vector<32x16xf32>
    %143 = vector.extract_strided_slice %142 {offsets = [0, 0], sizes = [8, 16], strides = [1, 1]} : vector<32x16xf32> to vector<8x16xf32>
    %144 = vector.extract_strided_slice %88 {offsets = [0, 0], sizes = [8, 16], strides = [1, 1]} : vector<32x16xf32> to vector<8x16xf32>
    %145 = tpu.transpose %144, [1, 0] : vector<8x16xf32> -> vector<16x8xf32>
    %cst_44 = arith.constant dense<0.000000e+00> : vector<8x8xf32>
    %146 = tpu.matmul %143, %145, %cst_44 {dimension_numbers = #tpu.dot_dimension_numbers<[1], [0], [0], [1], [0, 0, 1, 1], [], []>} : vector<8x16xf32>, vector<16x8xf32>, vector<8x8xf32> -> vector<8x8xf32>
    %147 = vector.extract_strided_slice %142 {offsets = [8, 0], sizes = [8, 16], strides = [1, 1]} : vector<32x16xf32> to vector<8x16xf32>
    %148 = vector.extract_strided_slice %88 {offsets = [8, 0], sizes = [8, 16], strides = [1, 1]} : vector<32x16xf32> to vector<8x16xf32>
    %149 = tpu.transpose %148, [1, 0] : vector<8x16xf32> -> vector<16x8xf32>
    %cst_45 = arith.constant dense<0.000000e+00> : vector<8x8xf32>
    %150 = tpu.matmul %147, %149, %cst_45 {dimension_numbers = #tpu.dot_dimension_numbers<[1], [0], [0], [1], [0, 0, 1, 1], [], []>} : vector<8x16xf32>, vector<16x8xf32>, vector<8x8xf32> -> vector<8x8xf32>
    %151 = vector.extract_strided_slice %142 {offsets = [16, 0], sizes = [8, 16], strides = [1, 1]} : vector<32x16xf32> to vector<8x16xf32>
    %152 = vector.extract_strided_slice %88 {offsets = [16, 0], sizes = [8, 16], strides = [1, 1]} : vector<32x16xf32> to vector<8x16xf32>
    %153 = tpu.transpose %152, [1, 0] : vector<8x16xf32> -> vector<16x8xf32>
    %cst_46 = arith.constant dense<0.000000e+00> : vector<8x8xf32>
    %154 = tpu.matmul %151, %153, %cst_46 {dimension_numbers = #tpu.dot_dimension_numbers<[1], [0], [0], [1], [0, 0, 1, 1], [], []>} : vector<8x16xf32>, vector<16x8xf32>, vector<8x8xf32> -> vector<8x8xf32>
    %155 = vector.extract_strided_slice %142 {offsets = [24, 0], sizes = [8, 16], strides = [1, 1]} : vector<32x16xf32> to vector<8x16xf32>
    %156 = vector.extract_strided_slice %88 {offsets = [24, 0], sizes = [8, 16], strides = [1, 1]} : vector<32x16xf32> to vector<8x16xf32>
    %157 = tpu.transpose %156, [1, 0] : vector<8x16xf32> -> vector<16x8xf32>
    %cst_47 = arith.constant dense<0.000000e+00> : vector<8x8xf32>
    %158 = tpu.matmul %155, %157, %cst_47 {dimension_numbers = #tpu.dot_dimension_numbers<[1], [0], [0], [1], [0, 0, 1, 1], [], []>} : vector<8x16xf32>, vector<16x8xf32>, vector<8x8xf32> -> vector<8x8xf32>
    %159 = tpu.concatenate %146, %150, %154, %158 in 1 : vector<8x8xf32>, vector<8x8xf32>, vector<8x8xf32>, vector<8x8xf32> -> vector<8x32xf32>
    %cst_48 = arith.constant dense<0.000000e+00> : vector<8x32xf32>
    %160 = tpu.matmul %159, %115, %cst_48 {dimension_numbers = #tpu.dot_dimension_numbers<[1], [0], [0], [1], [0, 0, 1, 1], [], []>} : vector<8x32xf32>, vector<32x32xf32>, vector<8x32xf32> -> vector<8x32xf32>
    %161 = arith.addf %160, %83 : vector<8x32xf32>
    %c0_49 = arith.constant 0 : index
    %c0_50 = arith.constant 0 : index
    %c0_51 = arith.constant 0 : index
    %162 = vector.load %arg4[%c0_49, %c0_50, %c0_51] : memref<2x32x16xf32, #tpu.memory_space<vmem>>, vector<1x32x16xf32>
    %163 = vector.shape_cast %162 : vector<1x32x16xf32> to vector<32x16xf32>
    %164 = vector.shape_cast %142 : vector<32x16xf32> to vector<1x32x16xf32>
    tpu.vector_store %arg4[%c0_49, %c0_50, %c0_51], %164 {strides = array<i32>} : memref<2x32x16xf32, #tpu.memory_space<vmem>>, vector<1x32x16xf32>,
    %c1 = arith.constant 1 : index
    %c0_52 = arith.constant 0 : index
    %c0_53 = arith.constant 0 : index
    %165 = vector.load %arg0[%c1, %c0_52, %c0_53] : memref<2x104x32xf32, #tpu.memory_space<vmem>>, vector<1x8x32xf32>
    %166 = vector.shape_cast %165 : vector<1x8x32xf32> to vector<8x32xf32>
    %cst_54 = arith.constant dense<0.000000e+00> : vector<8xf32>
    %167 = vector.multi_reduction <add>, %166, %cst_54 [1] : vector<8x32xf32> to vector<8xf32>
    %168 = vector.shape_cast %167 : vector<8xf32> to vector<8x1xf32>
    %cst_55 = arith.constant 3.200000e+01 : f32
    %169 = vector.broadcast %cst_55 : f32 to vector<8x1xf32>
    %170 = arith.divf %168, %169 : vector<8x1xf32>
    %171 = vector.broadcast %170 : vector<8x1xf32> to vector<8x32xf32>
    %172 = arith.subf %166, %171 : vector<8x32xf32>
    %173 = arith.mulf %172, %172 : vector<8x32xf32>
    %cst_56 = arith.constant dense<0.000000e+00> : vector<8xf32>
    %174 = vector.multi_reduction <add>, %173, %cst_56 [1] : vector<8x32xf32> to vector<8xf32>
    %175 = vector.shape_cast %174 : vector<8xf32> to vector<8x1xf32>
    %cst_57 = arith.constant 3.200000e+01 : f32
    %176 = vector.broadcast %cst_57 : f32 to vector<8x1xf32>
    %177 = arith.divf %175, %176 : vector<8x1xf32>
    %cst_58 = arith.constant 9.99999974E-6 : f32
    %178 = vector.broadcast %cst_58 : f32 to vector<8x1xf32>
    %179 = arith.addf %177, %178 : vector<8x1xf32>
    %180 = math.rsqrt %179 : vector<8x1xf32>
    %181 = vector.broadcast %180 : vector<8x1xf32> to vector<8x32xf32>
    %182 = arith.mulf %172, %181 : vector<8x32xf32>
    %183 = vector.broadcast %1 : vector<1x32xf32> to vector<8x32xf32>
    %184 = arith.mulf %182, %183 : vector<8x32xf32>
    %185 = vector.broadcast %2 : vector<1x32xf32> to vector<8x32xf32>
    %186 = arith.addf %184, %185 : vector<8x32xf32>
    %c0_59 = arith.constant 0 : index
    %c0_60 = arith.constant 0 : index
    %187 = vector.load %arg1[%c0_59, %c0_60] : memref<264x32xf32, #tpu.memory_space<vmem>>, vector<64x32xf32>
    %188 = tpu.transpose %186, [1, 0] : vector<8x32xf32> -> vector<32x8xf32>
    %cst_61 = arith.constant dense<0.000000e+00> : vector<64x8xf32>
    %189 = tpu.matmul %187, %188, %cst_61 {dimension_numbers = #tpu.dot_dimension_numbers<[1], [0], [0], [1], [0, 0, 1, 1], [], []>} : vector<64x32xf32>, vector<32x8xf32>, vector<64x8xf32> -> vector<64x8xf32>
    %c1_62 = arith.constant 1 : index
    %c40_63 = arith.constant 40 : index
    %c0_64 = arith.constant 0 : index
    %190 = vector.load %arg0[%c1_62, %c40_63, %c0_64] : memref<2x104x32xf32, #tpu.memory_space<vmem>>, vector<1x32x32xf32>
    %191 = vector.shape_cast %190 : vector<1x32x32xf32> to vector<32x32xf32>
    %192 = vector.extract_strided_slice %191 {offsets = [0, 0], sizes = [32, 8], strides = [1, 1]} : vector<32x32xf32> to vector<32x8xf32>
    %193 = vector.extract_strided_slice %189 {offsets = [0, 0], sizes = [32, 8], strides = [1, 1]} : vector<64x8xf32> to vector<32x8xf32>
    %194 = vector.extract_strided_slice %189 {offsets = [32, 0], sizes = [32, 8], strides = [1, 1]} : vector<64x8xf32> to vector<32x8xf32>
    %c64_65 = arith.constant 64 : index
    %c0_66 = arith.constant 0 : index
    %195 = vector.load %arg1[%c64_65, %c0_66] : memref<264x32xf32, #tpu.memory_space<vmem>>, vector<32x32xf32>
    %196 = vector.extract_strided_slice %193 {offsets = [0, 0], sizes = [8, 8], strides = [1, 1]} : vector<32x8xf32> to vector<8x8xf32>
    %197 = tpu.transpose %196, [1, 0] : vector<8x8xf32> -> vector<8x8xf32>
    %198 = vector.extract_strided_slice %194 {offsets = [0, 0], sizes = [8, 8], strides = [1, 1]} : vector<32x8xf32> to vector<8x8xf32>
    %cst_67 = arith.constant dense<0.000000e+00> : vector<8x8xf32>
    %199 = tpu.matmul %197, %198, %cst_67 {dimension_numbers = #tpu.dot_dimension_numbers<[1], [0], [0], [1], [0, 0, 1, 1], [], []>} : vector<8x8xf32>, vector<8x8xf32>, vector<8x8xf32> -> vector<8x8xf32>
    %200 = vector.extract_strided_slice %193 {offsets = [8, 0], sizes = [8, 8], strides = [1, 1]} : vector<32x8xf32> to vector<8x8xf32>
    %201 = tpu.transpose %200, [1, 0] : vector<8x8xf32> -> vector<8x8xf32>
    %202 = vector.extract_strided_slice %194 {offsets = [8, 0], sizes = [8, 8], strides = [1, 1]} : vector<32x8xf32> to vector<8x8xf32>
    %cst_68 = arith.constant dense<0.000000e+00> : vector<8x8xf32>
    %203 = tpu.matmul %201, %202, %cst_68 {dimension_numbers = #tpu.dot_dimension_numbers<[1], [0], [0], [1], [0, 0, 1, 1], [], []>} : vector<8x8xf32>, vector<8x8xf32>, vector<8x8xf32> -> vector<8x8xf32>
    %204 = vector.extract_strided_slice %193 {offsets = [16, 0], sizes = [8, 8], strides = [1, 1]} : vector<32x8xf32> to vector<8x8xf32>
    %205 = tpu.transpose %204, [1, 0] : vector<8x8xf32> -> vector<8x8xf32>
    %206 = vector.extract_strided_slice %194 {offsets = [16, 0], sizes = [8, 8], strides = [1, 1]} : vector<32x8xf32> to vector<8x8xf32>
    %cst_69 = arith.constant dense<0.000000e+00> : vector<8x8xf32>
    %207 = tpu.matmul %205, %206, %cst_69 {dimension_numbers = #tpu.dot_dimension_numbers<[1], [0], [0], [1], [0, 0, 1, 1], [], []>} : vector<8x8xf32>, vector<8x8xf32>, vector<8x8xf32> -> vector<8x8xf32>
    %208 = vector.extract_strided_slice %193 {offsets = [24, 0], sizes = [8, 8], strides = [1, 1]} : vector<32x8xf32> to vector<8x8xf32>
    %209 = tpu.transpose %208, [1, 0] : vector<8x8xf32> -> vector<8x8xf32>
    %210 = vector.extract_strided_slice %194 {offsets = [24, 0], sizes = [8, 8], strides = [1, 1]} : vector<32x8xf32> to vector<8x8xf32>
    %cst_70 = arith.constant dense<0.000000e+00> : vector<8x8xf32>
    %211 = tpu.matmul %209, %210, %cst_70 {dimension_numbers = #tpu.dot_dimension_numbers<[1], [0], [0], [1], [0, 0, 1, 1], [], []>} : vector<8x8xf32>, vector<8x8xf32>, vector<8x8xf32> -> vector<8x8xf32>
    %212 = tpu.concatenate %199, %203, %207, %211 in 0 : vector<8x8xf32>, vector<8x8xf32>, vector<8x8xf32>, vector<8x8xf32> -> vector<32x8xf32>
    %213 = arith.addf %212, %192 : vector<32x8xf32>
    %cst_71 = arith.constant dense<0xFF800000> : vector<32xf32>
    %214 = vector.multi_reduction <maximumf>, %213, %cst_71 [1] : vector<32x8xf32> to vector<32xf32>
    %215 = vector.shape_cast %214 : vector<32xf32> to vector<32x1xf32>
    %216 = vector.broadcast %215 : vector<32x1xf32> to vector<32x8xf32>
    %217 = arith.subf %213, %216 : vector<32x8xf32>
    %218 = math.exp %217 : vector<32x8xf32>
    %cst_72 = arith.constant dense<0.000000e+00> : vector<32xf32>
    %219 = vector.multi_reduction <add>, %218, %cst_72 [1] : vector<32x8xf32> to vector<32xf32>
    %220 = vector.shape_cast %219 : vector<32xf32> to vector<32x1xf32>
    %221 = vector.broadcast %220 : vector<32x1xf32> to vector<32x8xf32>
    %222 = arith.divf %218, %221 : vector<32x8xf32>
    %223 = vector.extract_strided_slice %222 {offsets = [0, 0], sizes = [8, 8], strides = [1, 1]} : vector<32x8xf32> to vector<8x8xf32>
    %224 = vector.extract_strided_slice %194 {offsets = [0, 0], sizes = [8, 8], strides = [1, 1]} : vector<32x8xf32> to vector<8x8xf32>
    %225 = tpu.transpose %224, [1, 0] : vector<8x8xf32> -> vector<8x8xf32>
    %cst_73 = arith.constant dense<0.000000e+00> : vector<8x8xf32>
    %226 = tpu.matmul %223, %225, %cst_73 {dimension_numbers = #tpu.dot_dimension_numbers<[1], [0], [0], [1], [0, 0, 1, 1], [], []>} : vector<8x8xf32>, vector<8x8xf32>, vector<8x8xf32> -> vector<8x8xf32>
    %227 = vector.extract_strided_slice %222 {offsets = [8, 0], sizes = [8, 8], strides = [1, 1]} : vector<32x8xf32> to vector<8x8xf32>
    %228 = vector.extract_strided_slice %194 {offsets = [8, 0], sizes = [8, 8], strides = [1, 1]} : vector<32x8xf32> to vector<8x8xf32>
    %229 = tpu.transpose %228, [1, 0] : vector<8x8xf32> -> vector<8x8xf32>
    %cst_74 = arith.constant dense<0.000000e+00> : vector<8x8xf32>
    %230 = tpu.matmul %227, %229, %cst_74 {dimension_numbers = #tpu.dot_dimension_numbers<[1], [0], [0], [1], [0, 0, 1, 1], [], []>} : vector<8x8xf32>, vector<8x8xf32>, vector<8x8xf32> -> vector<8x8xf32>
    %231 = vector.extract_strided_slice %222 {offsets = [16, 0], sizes = [8, 8], strides = [1, 1]} : vector<32x8xf32> to vector<8x8xf32>
    %232 = vector.extract_strided_slice %194 {offsets = [16, 0], sizes = [8, 8], strides = [1, 1]} : vector<32x8xf32> to vector<8x8xf32>
    %233 = tpu.transpose %232, [1, 0] : vector<8x8xf32> -> vector<8x8xf32>
    %cst_75 = arith.constant dense<0.000000e+00> : vector<8x8xf32>
    %234 = tpu.matmul %231, %233, %cst_75 {dimension_numbers = #tpu.dot_dimension_numbers<[1], [0], [0], [1], [0, 0, 1, 1], [], []>} : vector<8x8xf32>, vector<8x8xf32>, vector<8x8xf32> -> vector<8x8xf32>
    %235 = vector.extract_strided_slice %222 {offsets = [24, 0], sizes = [8, 8], strides = [1, 1]} : vector<32x8xf32> to vector<8x8xf32>
    %236 = vector.extract_strided_slice %194 {offsets = [24, 0], sizes = [8, 8], strides = [1, 1]} : vector<32x8xf32> to vector<8x8xf32>
    %237 = tpu.transpose %236, [1, 0] : vector<8x8xf32> -> vector<8x8xf32>
    %cst_76 = arith.constant dense<0.000000e+00> : vector<8x8xf32>
    %238 = tpu.matmul %235, %237, %cst_76 {dimension_numbers = #tpu.dot_dimension_numbers<[1], [0], [0], [1], [0, 0, 1, 1], [], []>} : vector<8x8xf32>, vector<8x8xf32>, vector<8x8xf32> -> vector<8x8xf32>
    %239 = tpu.concatenate %226, %230, %234, %238 in 1 : vector<8x8xf32>, vector<8x8xf32>, vector<8x8xf32>, vector<8x8xf32> -> vector<8x32xf32>
    %cst_77 = arith.constant dense<0.000000e+00> : vector<8x32xf32>
    %240 = tpu.matmul %239, %195, %cst_77 {dimension_numbers = #tpu.dot_dimension_numbers<[1], [0], [0], [1], [0, 0, 1, 1], [], []>} : vector<8x32xf32>, vector<32x32xf32>, vector<8x32xf32> -> vector<8x32xf32>
    %241 = arith.addf %240, %166 : vector<8x32xf32>
    %c1_78 = arith.constant 1 : index
    %c8_79 = arith.constant 8 : index
    %c0_80 = arith.constant 0 : index
    %242 = vector.load %arg0[%c1_78, %c8_79, %c0_80] : memref<2x104x32xf32, #tpu.memory_space<vmem>>, vector<1x32x32xf32>
    %243 = vector.shape_cast %242 : vector<1x32x32xf32> to vector<32x32xf32>
    %244 = vector.extract_strided_slice %243 {offsets = [0, 0], sizes = [32, 16], strides = [1, 1]} : vector<32x32xf32> to vector<32x16xf32>
    %c128_81 = arith.constant 128 : index
    %c0_82 = arith.constant 0 : index
    %245 = vector.load %arg1[%c128_81, %c0_82] : memref<264x32xf32, #tpu.memory_space<vmem>>, vector<32x32xf32>
    %cst_83 = arith.constant dense<0.000000e+00> : vector<32x16xf32>
    %246 = tpu.matmul %245, %244, %cst_83 {dimension_numbers = #tpu.dot_dimension_numbers<[1], [0], [0], [1], [0, 0, 1, 1], [], []>} : vector<32x32xf32>, vector<32x16xf32>, vector<32x16xf32> -> vector<32x16xf32>
    %cst_84 = arith.constant dense<0.000000e+00> : vector<8xf32>
    %247 = vector.multi_reduction <add>, %241, %cst_84 [1] : vector<8x32xf32> to vector<8xf32>
    %248 = vector.shape_cast %247 : vector<8xf32> to vector<8x1xf32>
    %cst_85 = arith.constant 3.200000e+01 : f32
    %249 = vector.broadcast %cst_85 : f32 to vector<8x1xf32>
    %250 = arith.divf %248, %249 : vector<8x1xf32>
    %251 = vector.broadcast %250 : vector<8x1xf32> to vector<8x32xf32>
    %252 = arith.subf %241, %251 : vector<8x32xf32>
    %253 = arith.mulf %252, %252 : vector<8x32xf32>
    %cst_86 = arith.constant dense<0.000000e+00> : vector<8xf32>
    %254 = vector.multi_reduction <add>, %253, %cst_86 [1] : vector<8x32xf32> to vector<8xf32>
    %255 = vector.shape_cast %254 : vector<8xf32> to vector<8x1xf32>
    %cst_87 = arith.constant 3.200000e+01 : f32
    %256 = vector.broadcast %cst_87 : f32 to vector<8x1xf32>
    %257 = arith.divf %255, %256 : vector<8x1xf32>
    %cst_88 = arith.constant 9.99999974E-6 : f32
    %258 = vector.broadcast %cst_88 : f32 to vector<8x1xf32>
    %259 = arith.addf %257, %258 : vector<8x1xf32>
    %260 = math.rsqrt %259 : vector<8x1xf32>
    %261 = vector.broadcast %260 : vector<8x1xf32> to vector<8x32xf32>
    %262 = arith.mulf %252, %261 : vector<8x32xf32>
    %263 = vector.broadcast %3 : vector<1x32xf32> to vector<8x32xf32>
    %264 = arith.mulf %262, %263 : vector<8x32xf32>
    %265 = vector.broadcast %4 : vector<1x32xf32> to vector<8x32xf32>
    %266 = arith.addf %264, %265 : vector<8x32xf32>
    %c96_89 = arith.constant 96 : index
    %c0_90 = arith.constant 0 : index
    %267 = vector.load %arg1[%c96_89, %c0_90] : memref<264x32xf32, #tpu.memory_space<vmem>>, vector<32x32xf32>
    %268 = tpu.transpose %266, [1, 0] : vector<8x32xf32> -> vector<32x8xf32>
    %cst_91 = arith.constant dense<0.000000e+00> : vector<32x8xf32>
    %269 = tpu.matmul %267, %268, %cst_91 {dimension_numbers = #tpu.dot_dimension_numbers<[1], [0], [0], [1], [0, 0, 1, 1], [], []>} : vector<32x32xf32>, vector<32x8xf32>, vector<32x8xf32> -> vector<32x8xf32>
    %c1_92 = arith.constant 1 : index
    %c72_93 = arith.constant 72 : index
    %c0_94 = arith.constant 0 : index
    %270 = vector.load %arg0[%c1_92, %c72_93, %c0_94] : memref<2x104x32xf32, #tpu.memory_space<vmem>>, vector<1x32x32xf32>
    %271 = vector.shape_cast %270 : vector<1x32x32xf32> to vector<32x32xf32>
    %272 = vector.extract_strided_slice %271 {offsets = [0, 0], sizes = [32, 16], strides = [1, 1]} : vector<32x32xf32> to vector<32x16xf32>
    %c160_95 = arith.constant 160 : index
    %c0_96 = arith.constant 0 : index
    %273 = vector.load %arg1[%c160_95, %c0_96] : memref<264x32xf32, #tpu.memory_space<vmem>>, vector<32x32xf32>
    %274 = vector.extract_strided_slice %269 {offsets = [0, 0], sizes = [8, 8], strides = [1, 1]} : vector<32x8xf32> to vector<8x8xf32>
    %275 = tpu.transpose %274, [1, 0] : vector<8x8xf32> -> vector<8x8xf32>
    %276 = vector.extract_strided_slice %246 {offsets = [0, 0], sizes = [8, 16], strides = [1, 1]} : vector<32x16xf32> to vector<8x16xf32>
    %cst_97 = arith.constant dense<0.000000e+00> : vector<8x16xf32>
    %277 = tpu.matmul %275, %276, %cst_97 {dimension_numbers = #tpu.dot_dimension_numbers<[1], [0], [0], [1], [0, 0, 1, 1], [], []>} : vector<8x8xf32>, vector<8x16xf32>, vector<8x16xf32> -> vector<8x16xf32>
    %278 = vector.extract_strided_slice %269 {offsets = [8, 0], sizes = [8, 8], strides = [1, 1]} : vector<32x8xf32> to vector<8x8xf32>
    %279 = tpu.transpose %278, [1, 0] : vector<8x8xf32> -> vector<8x8xf32>
    %280 = vector.extract_strided_slice %246 {offsets = [8, 0], sizes = [8, 16], strides = [1, 1]} : vector<32x16xf32> to vector<8x16xf32>
    %cst_98 = arith.constant dense<0.000000e+00> : vector<8x16xf32>
    %281 = tpu.matmul %279, %280, %cst_98 {dimension_numbers = #tpu.dot_dimension_numbers<[1], [0], [0], [1], [0, 0, 1, 1], [], []>} : vector<8x8xf32>, vector<8x16xf32>, vector<8x16xf32> -> vector<8x16xf32>
    %282 = vector.extract_strided_slice %269 {offsets = [16, 0], sizes = [8, 8], strides = [1, 1]} : vector<32x8xf32> to vector<8x8xf32>
    %283 = tpu.transpose %282, [1, 0] : vector<8x8xf32> -> vector<8x8xf32>
    %284 = vector.extract_strided_slice %246 {offsets = [16, 0], sizes = [8, 16], strides = [1, 1]} : vector<32x16xf32> to vector<8x16xf32>
    %cst_99 = arith.constant dense<0.000000e+00> : vector<8x16xf32>
    %285 = tpu.matmul %283, %284, %cst_99 {dimension_numbers = #tpu.dot_dimension_numbers<[1], [0], [0], [1], [0, 0, 1, 1], [], []>} : vector<8x8xf32>, vector<8x16xf32>, vector<8x16xf32> -> vector<8x16xf32>
    %286 = vector.extract_strided_slice %269 {offsets = [24, 0], sizes = [8, 8], strides = [1, 1]} : vector<32x8xf32> to vector<8x8xf32>
    %287 = tpu.transpose %286, [1, 0] : vector<8x8xf32> -> vector<8x8xf32>
    %288 = vector.extract_strided_slice %246 {offsets = [24, 0], sizes = [8, 16], strides = [1, 1]} : vector<32x16xf32> to vector<8x16xf32>
    %cst_100 = arith.constant dense<0.000000e+00> : vector<8x16xf32>
    %289 = tpu.matmul %287, %288, %cst_100 {dimension_numbers = #tpu.dot_dimension_numbers<[1], [0], [0], [1], [0, 0, 1, 1], [], []>} : vector<8x8xf32>, vector<8x16xf32>, vector<8x16xf32> -> vector<8x16xf32>
    %290 = tpu.concatenate %277, %281, %285, %289 in 0 : vector<8x16xf32>, vector<8x16xf32>, vector<8x16xf32>, vector<8x16xf32> -> vector<32x16xf32>
    %291 = arith.addf %290, %272 : vector<32x16xf32>
    %cst_101 = arith.constant dense<0xFF800000> : vector<32xf32>
    %292 = vector.multi_reduction <maximumf>, %291, %cst_101 [1] : vector<32x16xf32> to vector<32xf32>
    %293 = vector.shape_cast %292 : vector<32xf32> to vector<32x1xf32>
    %294 = vector.broadcast %293 : vector<32x1xf32> to vector<32x16xf32>
    %295 = arith.subf %291, %294 : vector<32x16xf32>
    %296 = math.exp %295 : vector<32x16xf32>
    %cst_102 = arith.constant dense<0.000000e+00> : vector<32xf32>
    %297 = vector.multi_reduction <add>, %296, %cst_102 [1] : vector<32x16xf32> to vector<32xf32>
    %298 = vector.shape_cast %297 : vector<32xf32> to vector<32x1xf32>
    %299 = vector.broadcast %298 : vector<32x1xf32> to vector<32x16xf32>
    %300 = arith.divf %296, %299 : vector<32x16xf32>
    %301 = vector.extract_strided_slice %300 {offsets = [0, 0], sizes = [8, 16], strides = [1, 1]} : vector<32x16xf32> to vector<8x16xf32>
    %302 = vector.extract_strided_slice %246 {offsets = [0, 0], sizes = [8, 16], strides = [1, 1]} : vector<32x16xf32> to vector<8x16xf32>
    %303 = tpu.transpose %302, [1, 0] : vector<8x16xf32> -> vector<16x8xf32>
    %cst_103 = arith.constant dense<0.000000e+00> : vector<8x8xf32>
    %304 = tpu.matmul %301, %303, %cst_103 {dimension_numbers = #tpu.dot_dimension_numbers<[1], [0], [0], [1], [0, 0, 1, 1], [], []>} : vector<8x16xf32>, vector<16x8xf32>, vector<8x8xf32> -> vector<8x8xf32>
    %305 = vector.extract_strided_slice %300 {offsets = [8, 0], sizes = [8, 16], strides = [1, 1]} : vector<32x16xf32> to vector<8x16xf32>
    %306 = vector.extract_strided_slice %246 {offsets = [8, 0], sizes = [8, 16], strides = [1, 1]} : vector<32x16xf32> to vector<8x16xf32>
    %307 = tpu.transpose %306, [1, 0] : vector<8x16xf32> -> vector<16x8xf32>
    %cst_104 = arith.constant dense<0.000000e+00> : vector<8x8xf32>
    %308 = tpu.matmul %305, %307, %cst_104 {dimension_numbers = #tpu.dot_dimension_numbers<[1], [0], [0], [1], [0, 0, 1, 1], [], []>} : vector<8x16xf32>, vector<16x8xf32>, vector<8x8xf32> -> vector<8x8xf32>
    %309 = vector.extract_strided_slice %300 {offsets = [16, 0], sizes = [8, 16], strides = [1, 1]} : vector<32x16xf32> to vector<8x16xf32>
    %310 = vector.extract_strided_slice %246 {offsets = [16, 0], sizes = [8, 16], strides = [1, 1]} : vector<32x16xf32> to vector<8x16xf32>
    %311 = tpu.transpose %310, [1, 0] : vector<8x16xf32> -> vector<16x8xf32>
    %cst_105 = arith.constant dense<0.000000e+00> : vector<8x8xf32>
    %312 = tpu.matmul %309, %311, %cst_105 {dimension_numbers = #tpu.dot_dimension_numbers<[1], [0], [0], [1], [0, 0, 1, 1], [], []>} : vector<8x16xf32>, vector<16x8xf32>, vector<8x8xf32> -> vector<8x8xf32>
    %313 = vector.extract_strided_slice %300 {offsets = [24, 0], sizes = [8, 16], strides = [1, 1]} : vector<32x16xf32> to vector<8x16xf32>
    %314 = vector.extract_strided_slice %246 {offsets = [24, 0], sizes = [8, 16], strides = [1, 1]} : vector<32x16xf32> to vector<8x16xf32>
    %315 = tpu.transpose %314, [1, 0] : vector<8x16xf32> -> vector<16x8xf32>
    %cst_106 = arith.constant dense<0.000000e+00> : vector<8x8xf32>
    %316 = tpu.matmul %313, %315, %cst_106 {dimension_numbers = #tpu.dot_dimension_numbers<[1], [0], [0], [1], [0, 0, 1, 1], [], []>} : vector<8x16xf32>, vector<16x8xf32>, vector<8x8xf32> -> vector<8x8xf32>
    %317 = tpu.concatenate %304, %308, %312, %316 in 1 : vector<8x8xf32>, vector<8x8xf32>, vector<8x8xf32>, vector<8x8xf32> -> vector<8x32xf32>
    %cst_107 = arith.constant dense<0.000000e+00> : vector<8x32xf32>
    %318 = tpu.matmul %317, %273, %cst_107 {dimension_numbers = #tpu.dot_dimension_numbers<[1], [0], [0], [1], [0, 0, 1, 1], [], []>} : vector<8x32xf32>, vector<32x32xf32>, vector<8x32xf32> -> vector<8x32xf32>
    %319 = arith.addf %318, %241 : vector<8x32xf32>
    %c1_108 = arith.constant 1 : index
    %c0_109 = arith.constant 0 : index
    %c0_110 = arith.constant 0 : index
    %320 = vector.load %arg4[%c1_108, %c0_109, %c0_110] : memref<2x32x16xf32, #tpu.memory_space<vmem>>, vector<1x32x16xf32>
    %321 = vector.shape_cast %320 : vector<1x32x16xf32> to vector<32x16xf32>
    %322 = vector.shape_cast %300 : vector<32x16xf32> to vector<1x32x16xf32>
    tpu.vector_store %arg4[%c1_108, %c0_109, %c0_110], %322 {strides = array<i32>} : memref<2x32x16xf32, #tpu.memory_space<vmem>>, vector<1x32x16xf32>,
    %323 = tpu.concatenate %161, %319 in 0 : vector<8x32xf32>, vector<8x32xf32> -> vector<16x32xf32>
    %cst_111 = arith.constant dense<0.000000e+00> : vector<16xf32>
    %324 = vector.multi_reduction <add>, %323, %cst_111 [1] : vector<16x32xf32> to vector<16xf32>
    %325 = vector.shape_cast %324 : vector<16xf32> to vector<16x1xf32>
    %cst_112 = arith.constant 3.200000e+01 : f32
    %326 = vector.broadcast %cst_112 : f32 to vector<16x1xf32>
    %327 = arith.divf %325, %326 : vector<16x1xf32>
    %328 = vector.broadcast %327 : vector<16x1xf32> to vector<16x32xf32>
    %329 = arith.subf %323, %328 : vector<16x32xf32>
    %330 = arith.mulf %329, %329 : vector<16x32xf32>
    %cst_113 = arith.constant dense<0.000000e+00> : vector<16xf32>
    %331 = vector.multi_reduction <add>, %330, %cst_113 [1] : vector<16x32xf32> to vector<16xf32>
    %332 = vector.shape_cast %331 : vector<16xf32> to vector<16x1xf32>
    %cst_114 = arith.constant 3.200000e+01 : f32
    %333 = vector.broadcast %cst_114 : f32 to vector<16x1xf32>
    %334 = arith.divf %332, %333 : vector<16x1xf32>
    %cst_115 = arith.constant 9.99999974E-6 : f32
    %335 = vector.broadcast %cst_115 : f32 to vector<16x1xf32>
    %336 = arith.addf %334, %335 : vector<16x1xf32>
    %337 = math.rsqrt %336 : vector<16x1xf32>
    %338 = vector.broadcast %337 : vector<16x1xf32> to vector<16x32xf32>
    %339 = arith.mulf %329, %338 : vector<16x32xf32>
    %340 = vector.broadcast %5 : vector<1x32xf32> to vector<16x32xf32>
    %341 = arith.mulf %339, %340 : vector<16x32xf32>
    %342 = vector.broadcast %6 : vector<1x32xf32> to vector<16x32xf32>
    %343 = arith.addf %341, %342 : vector<16x32xf32>
    %c0_116 = arith.constant 0 : index
    %c0_117 = arith.constant 0 : index
    %344 = vector.load %arg2[%c0_116, %c0_117] : memref<32x64xf32, #tpu.memory_space<vmem>>, vector<32x64xf32>
    %cst_118 = arith.constant dense<0.000000e+00> : vector<16x64xf32>
    %345 = tpu.matmul %343, %344, %cst_118 {dimension_numbers = #tpu.dot_dimension_numbers<[1], [0], [0], [1], [0, 0, 1, 1], [], []>} : vector<16x32xf32>, vector<32x64xf32>, vector<16x64xf32> -> vector<16x64xf32>
    %cst_119 = arith.constant 0.000000e+00 : f32
    %346 = vector.broadcast %cst_119 : f32 to vector<16x64xf32>
    %347 = arith.maximumf %345, %346 : vector<16x64xf32>
    %c192 = arith.constant 192 : index
    %c0_120 = arith.constant 0 : index
    %348 = vector.load %arg1[%c192, %c0_120] : memref<264x32xf32, #tpu.memory_space<vmem>>, vector<64x32xf32>
    %cst_121 = arith.constant dense<0.000000e+00> : vector<16x32xf32>
    %349 = tpu.matmul %347, %348, %cst_121 {dimension_numbers = #tpu.dot_dimension_numbers<[1], [0], [0], [1], [0, 0, 1, 1], [], []>} : vector<16x64xf32>, vector<64x32xf32>, vector<16x32xf32> -> vector<16x32xf32>
    %350 = arith.addf %349, %323 : vector<16x32xf32>
    %351 = vector.extract_strided_slice %350 {offsets = [0, 0], sizes = [8, 32], strides = [1, 1]} : vector<16x32xf32> to vector<8x32xf32>
    %c0_122 = arith.constant 0 : index
    %c0_123 = arith.constant 0 : index
    %c0_124 = arith.constant 0 : index
    %352 = vector.load %arg3[%c0_122, %c0_123, %c0_124] : memref<2x8x32xf32, #tpu.memory_space<vmem>>, vector<1x8x32xf32>
    %353 = vector.shape_cast %352 : vector<1x8x32xf32> to vector<8x32xf32>
    %354 = vector.shape_cast %351 : vector<8x32xf32> to vector<1x8x32xf32>
    tpu.vector_store %arg3[%c0_122, %c0_123, %c0_124], %354 {strides = array<i32>} : memref<2x8x32xf32, #tpu.memory_space<vmem>>, vector<1x8x32xf32>,
    %355 = vector.extract_strided_slice %350 {offsets = [8, 0], sizes = [8, 32], strides = [1, 1]} : vector<16x32xf32> to vector<8x32xf32>
    %c1_125 = arith.constant 1 : index
    %c0_126 = arith.constant 0 : index
    %c0_127 = arith.constant 0 : index
    %356 = vector.load %arg3[%c1_125, %c0_126, %c0_127] : memref<2x8x32xf32, #tpu.memory_space<vmem>>, vector<1x8x32xf32>
    %357 = vector.shape_cast %356 : vector<1x8x32xf32> to vector<8x32xf32>
    %358 = vector.shape_cast %355 : vector<8x32xf32> to vector<1x8x32xf32>
    tpu.vector_store %arg3[%c1_125, %c0_126, %c0_127], %358 {strides = array<i32>} : memref<2x8x32xf32, #tpu.memory_space<vmem>>, vector<1x8x32xf32>,
    return
  }
}

</mosaic_0001>

<llo_original>
// kernel: tpu_custom_call.1
$region0: #{tpu_custom_call.1}
  #allocation0 [shape = 'u32[]', space=smem, size = 0x4, offset = 0x4, fixed_abs, tag = 'smem constant byte address 0x4 - core index']
  #allocation1 [shape = 'u32[144,128]{1,0:T(1,128)}', space=vmem, size = 0x12000, scoped, tag = 'internal scratch']
  %s0 = inlined_call_operand.vmem [shape: f32[2,104,32], index: 0, kind: input, shape index: {}]
  %s1 = inlined_call_operand.vmem [shape: f32[264,32], index: 1, kind: input, shape index: {}]
  %s2 = inlined_call_operand.vmem [shape: f32[32,64], index: 2, kind: input, shape index: {}]
  %s3 = inlined_call_operand.hbm [shape: f32[2,8,32], index: 3, kind: output, shape index: {0}]
  %s4 = inlined_call_operand.vmem [shape: f32[2,32,16], index: 4, kind: output, shape index: {1}]
  %5 = xla_tuple %s3, %s4
  %s6 = sld [smem:[#allocation0]]
  $region30: #{tpu_custom_call.1} parent=0
    _
  %s8 = ssub.s32 1, %s6
  %s9 = scalar_select 0, %s8, %s6
  $region1: #{tpu_custom_call.1} parent=0
    #allocation2 [shape = 'u8[8192]{0}', space=vmem, size = 0x2000, scoped, tag = 'output window, operand 0, single buffered']
    #allocation3 [shape = 's32[1]{0}', space=sflag, size = 0x4, scoped, tag = 'scoped memory for tpu_custom_call.1']
    %10 = vsyncpa [#allocation3], 0
    // Predicated region
    $region2: #{tpu_custom_call.1} parent=1 // pred_check
      _
    $region3: #{tpu_custom_call.1} parent=1 // pred_check_branch
      %12 = sbr.rel (0) target = $region5
    $region4: #{tpu_custom_call.1} parent=1 // pred_region
      _
    $region5: #{tpu_custom_call.1} parent=1 // pred_fallthru
      _
    // Predicated region
    $region6: #{tpu_custom_call.1} parent=1 // pred_check
      _
    $region7: #{tpu_custom_call.1} parent=1 // pred_check_branch
      %14 = sbr.rel (0) target = $region9
    $region8: #{tpu_custom_call.1} parent=1 // pred_region
      _
    $region9: #{tpu_custom_call.1} parent=1 // pred_fallthru
      _
    // Predicated region
    $region10: #{tpu_custom_call.1} parent=1 // pred_check
      _
    $region11: #{tpu_custom_call.1} parent=1 // pred_check_branch
      %16 = sbr.rel (0) target = $region13
    $region12: #{tpu_custom_call.1} parent=1 // pred_region
      _
    $region13: #{tpu_custom_call.1} parent=1 // pred_fallthru
      _
    %v17 = vld [vmem:[%s1 + $0x100] sm:$0xff]
    %v18 = vld [vmem:[%s0] sm:$0xff]
    %vm19 = vcmask 261120
    %v20 = vsel %vm19, %v18, 0.0
    %21 = vadd.xlane.f32.xlu0 %v20
    %v22 = vpop.xlane.xlu0 %21
    %v23 = vrcp.pop 32.0
    %v24 = vmul.f32 %v22, %v23
    %v25 = vsub.f32 %v18, %v24
    %v26 = vmul.f32 %v25, %v25
    %v27 = vsel %vm19, %v26, 0.0
    %28 = vadd.xlane.f32.xlu0 %v27
    %v29 = vpop.xlane.xlu0 %28
    %v30 = vmul.f32 %v29, %v23
    %v31 = vadd.f32 %v30, 1e-05
    %v32 = vrsqrt.pop %v31
    %v33 = vmul.f32 %v25, %v32
    %v34 = vlaneseq
    %v35 = vshrl.u32 %v34, 7
    %v36 = vsub.s32 0, %v35
    %v37 = vrot.slane %v17, %v36
    %v38 = vmul.f32 %v33, %v37
    %v39 = vlaneseq
    %v40 = vshrl.u32 %v39, 7
    %v41 = vsub.s32 1, %v40
    %v42 = vrot.slane %v17, %v41
    %v43 = vadd.f32 %v38, %v42
    %v44 = vld [vmem:[%s1] sm:$0xff]
    %v45 = vld [vmem:[%s1 + $0x8] sm:$0xff]
    %v46 = vld [vmem:[%s1 + $0x10] sm:$0xff]
    %v47 = vld [vmem:[%s1 + $0x18] sm:$0xff]
    %v48 = vld [vmem:[%s1 + $0x20] sm:$0xff]
    %v49 = vld [vmem:[%s1 + $0x28] sm:$0xff]
    %v50 = vld [vmem:[%s1 + $0x30] sm:$0xff]
    %v51 = vld [vmem:[%s1 + $0x38] sm:$0xff]
    %v53 = vsel %vm19, %v44, 0
    %v56 = vsel %vm19, %v45, 0
    %v59 = vsel %vm19, %v46, 0
    %v62 = vsel %vm19, %v47, 0
    %v65 = vsel %vm19, %v48, 0
    %v68 = vsel %vm19, %v49, 0
    %v71 = vsel %vm19, %v50, 0
    %v74 = vsel %vm19, %v51, 0
    %v77 = vsel %vm19, %v43, 0
    %79 = vmatprep.subr.mxu0 0.0
    %80 = vmatpush1.xpose.msra.mxu0 0.0
    %81 = vmatprep.subr.mxu0 0.0
    %82 = vmatpush1.xpose.msra.mxu0 0.0
    %83 = vmatprep.subr.mxu0 0.0
    %84 = vmatpush1.xpose.msra.mxu0 0.0
    %85 = vmatprep.subr.mxu0 0.0
    %86 = vmatpush1.xpose.msra.mxu0 0.0
    %87 = vmatprep.subr.mxu0 0.0
    %88 = vmatpush1.xpose.msra.mxu0 0.0
    %89 = vmatprep.subr.mxu0 0.0
    %90 = vmatpush1.xpose.msra.mxu0 0.0
    %91 = vmatprep.subr.mxu0 0.0
    %92 = vmatpush1.xpose.msra.mxu0 0.0
    %93 = vmatprep.subr.mxu0 0.0
    %94 = vmatpush1.xpose.msra.mxu0 0.0
    %95 = vmatprep.subr.mxu0 0.0
    %96 = vmatpush1.xpose.msra.mxu0 0.0
    %97 = vmatprep.subr.mxu0 0.0
    %98 = vmatpush1.xpose.msra.mxu0 0.0
    %99 = vmatprep.subr.mxu0 0.0
    %100 = vmatpush1.xpose.msra.mxu0 0.0
    %101 = vmatprep.subr.mxu0 0.0
    %102 = vmatpush1.xpose.msra.mxu0 0.0
    %103 = vmatprep.subr.mxu0 0.0
    %104 = vmatpush1.xpose.msra.mxu0 0.0
    %105 = vmatprep.subr.mxu0 0.0
    %106 = vmatpush1.xpose.msra.mxu0 0.0
    %107 = vmatprep.subr.mxu0 0.0
    %108 = vmatpush1.xpose.msra.mxu0 0.0
    %109 = vmatprep.subr.mxu0 0.0
    %110 = vmatpush1.xpose.msra.mxu0 %v77
    %111 = vmatprep.subr.mxu0 0.0
    %112 = vmatpush2.xpose.msra.mxu0 0.0
    %113 = vmatprep.subr.mxu0 0.0
    %114 = vmatpush2.xpose.msra.mxu0 0.0
    %115 = vmatprep.subr.mxu0 0.0
    %116 = vmatpush2.xpose.msra.mxu0 0.0
    %117 = vmatprep.subr.mxu0 0.0
    %118 = vmatpush2.xpose.msra.mxu0 0.0
    %119 = vmatprep.subr.mxu0 0.0
    %120 = vmatpush2.xpose.msra.mxu0 0.0
    %121 = vmatprep.subr.mxu0 0.0
    %122 = vmatpush2.xpose.msra.mxu0 0.0
    %123 = vmatprep.subr.mxu0 0.0
    %124 = vmatpush2.xpose.msra.mxu0 0.0
    %125 = vmatprep.subr.mxu0 0.0
    %126 = vmatpush2.xpose.msra.mxu0 0.0
    %127 = vmatprep.subr.mxu0 0.0
    %128 = vmatpush2.xpose.msra.mxu0 0.0
    %129 = vmatprep.subr.mxu0 0.0
    %130 = vmatpush2.xpose.msra.mxu0 0.0
    %131 = vmatprep.subr.mxu0 0.0
    %132 = vmatpush2.xpose.msra.mxu0 0.0
    %133 = vmatprep.subr.mxu0 0.0
    %134 = vmatpush2.xpose.msra.mxu0 0.0
    %135 = vmatprep.subr.mxu0 0.0
    %136 = vmatpush2.xpose.msra.mxu0 0.0
    %137 = vmatprep.subr.mxu0 0.0
    %138 = vmatpush2.xpose.msra.mxu0 0.0
    %139 = vmatprep.subr.mxu0 0.0
    %140 = vmatpush2.xpose.msra.mxu0 0.0
    %141 = vmatprep.subr.mxu0 0.0
    %142 = vmatpush2.xpose.msra.mxu0 0.0
    %143 = vmatprep.mubr.f32.mxu0 0.0
    %144 = vmatmul.mubr.f32.gmra.mxu0 %v53
    %v145 = vpop.f32.mrf.mxu0
    %v146 = vadd.f32 0.0, %v145
    %v147 = vpop.f32.mrf.mxu0
    %148 = vmatprep.mubr.f32.mxu0 0.0
    %149 = vmatmul.mubr.f32.gmra.mxu0 %v56
    %v150 = vpop.f32.mrf.mxu0
    %v151 = vadd.f32 0.0, %v150
    %v152 = vpop.f32.mrf.mxu0
    %153 = vmatprep.mubr.f32.mxu0 0.0
    %154 = vmatmul.mubr.f32.gmra.mxu0 %v59
    %v155 = vpop.f32.mrf.mxu0
    %v156 = vadd.f32 0.0, %v155
    %v157 = vpop.f32.mrf.mxu0
    %158 = vmatprep.mubr.f32.mxu0 0.0
    %159 = vmatmul.mubr.f32.gmra.mxu0 %v62
    %v160 = vpop.f32.mrf.mxu0
    %v161 = vadd.f32 0.0, %v160
    %v162 = vpop.f32.mrf.mxu0
    %163 = vmatprep.mubr.f32.mxu0 0.0
    %164 = vmatmul.mubr.f32.gmra.mxu0 %v65
    %v165 = vpop.f32.mrf.mxu0
    %v166 = vadd.f32 0.0, %v165
    %v167 = vpop.f32.mrf.mxu0
    %168 = vmatprep.mubr.f32.mxu0 0.0
    %169 = vmatmul.mubr.f32.gmra.mxu0 %v68
    %v170 = vpop.f32.mrf.mxu0
    %v171 = vadd.f32 0.0, %v170
    %v172 = vpop.f32.mrf.mxu0
    %173 = vmatprep.mubr.f32.mxu0 0.0
    %174 = vmatmul.mubr.f32.gmra.mxu0 %v71
    %v175 = vpop.f32.mrf.mxu0
    %v176 = vadd.f32 0.0, %v175
    %v177 = vpop.f32.mrf.mxu0
    %178 = vmatprep.mubr.f32.mxu0 0.0
    %179 = vmatmul.mubr.f32.gmra.mxu0 %v74
    %v180 = vpop.f32.mrf.mxu0
    %v181 = vadd.f32 0.0, %v180
    %v182 = vpop.f32.mrf.mxu0
    %183 = vdwg.mxu0
    %v184 = vld [vmem:[%s0 + $0x28] sm:$0xff]
    %v185 = vld [vmem:[%s0 + $0x30] sm:$0xff]
    %v186 = vld [vmem:[%s0 + $0x38] sm:$0xff]
    %v187 = vld [vmem:[%s0 + $0x40] sm:$0xff]
    %v188 = vld [vmem:[%s1 + $0x40] sm:$0xff]
    %v189 = vld [vmem:[%s1 + $0x48] sm:$0xff]
    %v190 = vld [vmem:[%s1 + $0x50] sm:$0xff]
    %v191 = vld [vmem:[%s1 + $0x58] sm:$0xff]
    %192 = vxpose.xlu0.b32.start [1/16] %v146, 128
    %193 = vxpose.xlu0.b32.cont [2/16] 0.0, 128
    %194 = vxpose.xlu0.b32.cont [3/16] 0.0, 128
    %195 = vxpose.xlu0.b32.cont [4/16] 0.0, 128
    %196 = vxpose.xlu0.b32.cont [5/16] 0.0, 128
    %197 = vxpose.xlu0.b32.cont [6/16] 0.0, 128
    %198 = vxpose.xlu0.b32.cont [7/16] 0.0, 128
    %199 = vxpose.xlu0.b32.cont [8/16] 0.0, 128
    %200 = vxpose.xlu0.b32.cont [9/16] 0.0, 128
    %201 = vxpose.xlu0.b32.cont [10/16] 0.0, 128
    %202 = vxpose.xlu0.b32.cont [11/16] 0.0, 128
    %203 = vxpose.xlu0.b32.cont [12/16] 0.0, 128
    %204 = vxpose.xlu0.b32.cont [13/16] 0.0, 128
    %205 = vxpose.xlu0.b32.cont [14/16] 0.0, 128
    %206 = vxpose.xlu0.b32.cont [15/16] 0.0, 128
    %207 = vxpose.xlu0.b32.end [16/16] 0.0, 128
    %v208 = vpop.trf.xlu0
    %v209 = vpop.trf.xlu0
    %v210 = vpop.trf.xlu0
    %v211 = vpop.trf.xlu0
    %v212 = vpop.trf.xlu0
    %v213 = vpop.trf.xlu0
    %v214 = vpop.trf.xlu0
    %v215 = vpop.trf.xlu0
    %v216 = vpop.trf.xlu0
    %v217 = vpop.trf.xlu0
    %v218 = vpop.trf.xlu0
    %v219 = vpop.trf.xlu0
    %v220 = vpop.trf.xlu0
    %v221 = vpop.trf.xlu0
    %v222 = vpop.trf.xlu0
    %v223 = vpop.trf.xlu0
    %vm224 = vcmask 64512
    %v226 = vsel %vm224, %v208, 0
    %228 = vmatprep.subr.mxu0 0.0
    %229 = vmatpush1.msra.mxu0 0.0
    %230 = vmatprep.subr.mxu0 0.0
    %231 = vmatpush1.msra.mxu0 0.0
    %232 = vmatprep.subr.mxu0 0.0
    %233 = vmatpush1.msra.mxu0 0.0
    %234 = vmatprep.subr.mxu0 0.0
    %235 = vmatpush1.msra.mxu0 0.0
    %236 = vmatprep.subr.mxu0 0.0
    %237 = vmatpush1.msra.mxu0 0.0
    %238 = vmatprep.subr.mxu0 0.0
    %239 = vmatpush1.msra.mxu0 0.0
    %240 = vmatprep.subr.mxu0 0.0
    %241 = vmatpush1.msra.mxu0 0.0
    %242 = vmatprep.subr.mxu0 0.0
    %243 = vmatpush1.msra.mxu0 0.0
    %244 = vmatprep.subr.mxu0 0.0
    %245 = vmatpush1.msra.mxu0 0.0
    %246 = vmatprep.subr.mxu0 0.0
    %247 = vmatpush1.msra.mxu0 0.0
    %248 = vmatprep.subr.mxu0 0.0
    %249 = vmatpush1.msra.mxu0 0.0
    %250 = vmatprep.subr.mxu0 0.0
    %251 = vmatpush1.msra.mxu0 0.0
    %252 = vmatprep.subr.mxu0 0.0
    %253 = vmatpush1.msra.mxu0 0.0
    %254 = vmatprep.subr.mxu0 0.0
    %255 = vmatpush1.msra.mxu0 0.0
    %256 = vmatprep.subr.mxu0 0.0
    %257 = vmatpush1.msra.mxu0 0.0
    %258 = vmatprep.subr.mxu0 0.0
    %259 = vmatpush1.msra.mxu0 %v166
    %260 = vmatprep.subr.mxu0 0.0
    %261 = vmatpush2.msra.mxu0 0.0
    %262 = vmatprep.subr.mxu0 0.0
    %263 = vmatpush2.msra.mxu0 0.0
    %264 = vmatprep.subr.mxu0 0.0
    %265 = vmatpush2.msra.mxu0 0.0
    %266 = vmatprep.subr.mxu0 0.0
    %267 = vmatpush2.msra.mxu0 0.0
    %268 = vmatprep.subr.mxu0 0.0
    %269 = vmatpush2.msra.mxu0 0.0
    %270 = vmatprep.subr.mxu0 0.0
    %271 = vmatpush2.msra.mxu0 0.0
    %272 = vmatprep.subr.mxu0 0.0
    %273 = vmatpush2.msra.mxu0 0.0
    %274 = vmatprep.subr.mxu0 0.0
    %275 = vmatpush2.msra.mxu0 0.0
    %276 = vmatprep.subr.mxu0 0.0
    %277 = vmatpush2.msra.mxu0 0.0
    %278 = vmatprep.subr.mxu0 0.0
    %279 = vmatpush2.msra.mxu0 0.0
    %280 = vmatprep.subr.mxu0 0.0
    %281 = vmatpush2.msra.mxu0 0.0
    %282 = vmatprep.subr.mxu0 0.0
    %283 = vmatpush2.msra.mxu0 0.0
    %284 = vmatprep.subr.mxu0 0.0
    %285 = vmatpush2.msra.mxu0 0.0
    %286 = vmatprep.subr.mxu0 0.0
    %287 = vmatpush2.msra.mxu0 0.0
    %288 = vmatprep.subr.mxu0 0.0
    %289 = vmatpush2.msra.mxu0 0.0
    %290 = vmatprep.subr.mxu0 0.0
    %291 = vmatpush2.msra.mxu0 0.0
    %292 = vmatprep.mubr.f32.mxu0 0.0
    %293 = vmatmul.mubr.f32.gmra.mxu0 %v226
    %v294 = vpop.f32.mrf.mxu0
    %v295 = vadd.f32 0.0, %v294
    %v296 = vpop.f32.mrf.mxu0
    %297 = vdwg.mxu0
    %298 = vxpose.xlu0.b32.start [1/16] %v151, 128
    %299 = vxpose.xlu0.b32.cont [2/16] 0.0, 128
    %300 = vxpose.xlu0.b32.cont [3/16] 0.0, 128
    %301 = vxpose.xlu0.b32.cont [4/16] 0.0, 128
    %302 = vxpose.xlu0.b32.cont [5/16] 0.0, 128
    %303 = vxpose.xlu0.b32.cont [6/16] 0.0, 128
    %304 = vxpose.xlu0.b32.cont [7/16] 0.0, 128
    %305 = vxpose.xlu0.b32.cont [8/16] 0.0, 128
    %306 = vxpose.xlu0.b32.cont [9/16] 0.0, 128
    %307 = vxpose.xlu0.b32.cont [10/16] 0.0, 128
    %308 = vxpose.xlu0.b32.cont [11/16] 0.0, 128
    %309 = vxpose.xlu0.b32.cont [12/16] 0.0, 128
    %310 = vxpose.xlu0.b32.cont [13/16] 0.0, 128
    %311 = vxpose.xlu0.b32.cont [14/16] 0.0, 128
    %312 = vxpose.xlu0.b32.cont [15/16] 0.0, 128
    %313 = vxpose.xlu0.b32.end [16/16] 0.0, 128
    %v314 = vpop.trf.xlu0
    %v315 = vpop.trf.xlu0
    %v316 = vpop.trf.xlu0
    %v317 = vpop.trf.xlu0
    %v318 = vpop.trf.xlu0
    %v319 = vpop.trf.xlu0
    %v320 = vpop.trf.xlu0
    %v321 = vpop.trf.xlu0
    %v322 = vpop.trf.xlu0
    %v323 = vpop.trf.xlu0
    %v324 = vpop.trf.xlu0
    %v325 = vpop.trf.xlu0
    %v326 = vpop.trf.xlu0
    %v327 = vpop.trf.xlu0
    %v328 = vpop.trf.xlu0
    %v329 = vpop.trf.xlu0
    %v331 = vsel %vm224, %v314, 0
    %333 = vmatprep.subr.mxu0 0.0
    %334 = vmatpush1.msra.mxu0 0.0
    %335 = vmatprep.subr.mxu0 0.0
    %336 = vmatpush1.msra.mxu0 0.0
    %337 = vmatprep.subr.mxu0 0.0
    %338 = vmatpush1.msra.mxu0 0.0
    %339 = vmatprep.subr.mxu0 0.0
    %340 = vmatpush1.msra.mxu0 0.0
    %341 = vmatprep.subr.mxu0 0.0
    %342 = vmatpush1.msra.mxu0 0.0
    %343 = vmatprep.subr.mxu0 0.0
    %344 = vmatpush1.msra.mxu0 0.0
    %345 = vmatprep.subr.mxu0 0.0
    %346 = vmatpush1.msra.mxu0 0.0
    %347 = vmatprep.subr.mxu0 0.0
    %348 = vmatpush1.msra.mxu0 0.0
    %349 = vmatprep.subr.mxu0 0.0
    %350 = vmatpush1.msra.mxu0 0.0
    %351 = vmatprep.subr.mxu0 0.0
    %352 = vmatpush1.msra.mxu0 0.0
    %353 = vmatprep.subr.mxu0 0.0
    %354 = vmatpush1.msra.mxu0 0.0
    %355 = vmatprep.subr.mxu0 0.0
    %356 = vmatpush1.msra.mxu0 0.0
    %357 = vmatprep.subr.mxu0 0.0
    %358 = vmatpush1.msra.mxu0 0.0
    %359 = vmatprep.subr.mxu0 0.0
    %360 = vmatpush1.msra.mxu0 0.0
    %361 = vmatprep.subr.mxu0 0.0
    %362 = vmatpush1.msra.mxu0 0.0
    %363 = vmatprep.subr.mxu0 0.0
    %364 = vmatpush1.msra.mxu0 %v171
    %365 = vmatprep.subr.mxu0 0.0
    %366 = vmatpush2.msra.mxu0 0.0
    %367 = vmatprep.subr.mxu0 0.0
    %368 = vmatpush2.msra.mxu0 0.0
    %369 = vmatprep.subr.mxu0 0.0
    %370 = vmatpush2.msra.mxu0 0.0
    %371 = vmatprep.subr.mxu0 0.0
    %372 = vmatpush2.msra.mxu0 0.0
    %373 = vmatprep.subr.mxu0 0.0
    %374 = vmatpush2.msra.mxu0 0.0
    %375 = vmatprep.subr.mxu0 0.0
    %376 = vmatpush2.msra.mxu0 0.0
    %377 = vmatprep.subr.mxu0 0.0
    %378 = vmatpush2.msra.mxu0 0.0
    %379 = vmatprep.subr.mxu0 0.0
    %380 = vmatpush2.msra.mxu0 0.0
    %381 = vmatprep.subr.mxu0 0.0
    %382 = vmatpush2.msra.mxu0 0.0
    %383 = vmatprep.subr.mxu0 0.0
    %384 = vmatpush2.msra.mxu0 0.0
    %385 = vmatprep.subr.mxu0 0.0
    %386 = vmatpush2.msra.mxu0 0.0
    %387 = vmatprep.subr.mxu0 0.0
    %388 = vmatpush2.msra.mxu0 0.0
    %389 = vmatprep.subr.mxu0 0.0
    %390 = vmatpush2.msra.mxu0 0.0
    %391 = vmatprep.subr.mxu0 0.0
    %392 = vmatpush2.msra.mxu0 0.0
    %393 = vmatprep.subr.mxu0 0.0
    %394 = vmatpush2.msra.mxu0 0.0
    %395 = vmatprep.subr.mxu0 0.0
    %396 = vmatpush2.msra.mxu0 0.0
    %397 = vmatprep.mubr.f32.mxu0 0.0
    %398 = vmatmul.mubr.f32.gmra.mxu0 %v331
    %v399 = vpop.f32.mrf.mxu0
    %v400 = vadd.f32 0.0, %v399
    %v401 = vpop.f32.mrf.mxu0
    %402 = vdwg.mxu0
    %403 = vxpose.xlu0.b32.start [1/16] %v156, 128
    %404 = vxpose.xlu0.b32.cont [2/16] 0.0, 128
    %405 = vxpose.xlu0.b32.cont [3/16] 0.0, 128
    %406 = vxpose.xlu0.b32.cont [4/16] 0.0, 128
    %407 = vxpose.xlu0.b32.cont [5/16] 0.0, 128
    %408 = vxpose.xlu0.b32.cont [6/16] 0.0, 128
    %409 = vxpose.xlu0.b32.cont [7/16] 0.0, 128
    %410 = vxpose.xlu0.b32.cont [8/16] 0.0, 128
    %411 = vxpose.xlu0.b32.cont [9/16] 0.0, 128
    %412 = vxpose.xlu0.b32.cont [10/16] 0.0, 128
    %413 = vxpose.xlu0.b32.cont [11/16] 0.0, 128
    %414 = vxpose.xlu0.b32.cont [12/16] 0.0, 128
    %415 = vxpose.xlu0.b32.cont [13/16] 0.0, 128
    %416 = vxpose.xlu0.b32.cont [14/16] 0.0, 128
    %417 = vxpose.xlu0.b32.cont [15/16] 0.0, 128
    %418 = vxpose.xlu0.b32.end [16/16] 0.0, 128
    %v419 = vpop.trf.xlu0
    %v420 = vpop.trf.xlu0
    %v421 = vpop.trf.xlu0
    %v422 = vpop.trf.xlu0
    %v423 = vpop.trf.xlu0
    %v424 = vpop.trf.xlu0
    %v425 = vpop.trf.xlu0
    %v426 = vpop.trf.xlu0
    %v427 = vpop.trf.xlu0
    %v428 = vpop.trf.xlu0
    %v429 = vpop.trf.xlu0
    %v430 = vpop.trf.xlu0
    %v431 = vpop.trf.xlu0
    %v432 = vpop.trf.xlu0
    %v433 = vpop.trf.xlu0
    %v434 = vpop.trf.xlu0
    %v436 = vsel %vm224, %v419, 0
    %438 = vmatprep.subr.mxu0 0.0
    %439 = vmatpush1.msra.mxu0 0.0
    %440 = vmatprep.subr.mxu0 0.0
    %441 = vmatpush1.msra.mxu0 0.0
    %442 = vmatprep.subr.mxu0 0.0
    %443 = vmatpush1.msra.mxu0 0.0
    %444 = vmatprep.subr.mxu0 0.0
    %445 = vmatpush1.msra.mxu0 0.0
    %446 = vmatprep.subr.mxu0 0.0
    %447 = vmatpush1.msra.mxu0 0.0
    %448 = vmatprep.subr.mxu0 0.0
    %449 = vmatpush1.msra.mxu0 0.0
    %450 = vmatprep.subr.mxu0 0.0
    %451 = vmatpush1.msra.mxu0 0.0
    %452 = vmatprep.subr.mxu0 0.0
    %453 = vmatpush1.msra.mxu0 0.0
    %454 = vmatprep.subr.mxu0 0.0
    %455 = vmatpush1.msra.mxu0 0.0
    %456 = vmatprep.subr.mxu0 0.0
    %457 = vmatpush1.msra.mxu0 0.0
    %458 = vmatprep.subr.mxu0 0.0
    %459 = vmatpush1.msra.mxu0 0.0
    %460 = vmatprep.subr.mxu0 0.0
    %461 = vmatpush1.msra.mxu0 0.0
    %462 = vmatprep.subr.mxu0 0.0
    %463 = vmatpush1.msra.mxu0 0.0
    %464 = vmatprep.subr.mxu0 0.0
    %465 = vmatpush1.msra.mxu0 0.0
    %466 = vmatprep.subr.mxu0 0.0
    %467 = vmatpush1.msra.mxu0 0.0
    %468 = vmatprep.subr.mxu0 0.0
    %469 = vmatpush1.msra.mxu0 %v176
    %470 = vmatprep.subr.mxu0 0.0
    %471 = vmatpush2.msra.mxu0 0.0
    %472 = vmatprep.subr.mxu0 0.0
    %473 = vmatpush2.msra.mxu0 0.0
    %474 = vmatprep.subr.mxu0 0.0
    %475 = vmatpush2.msra.mxu0 0.0
    %476 = vmatprep.subr.mxu0 0.0
    %477 = vmatpush2.msra.mxu0 0.0
    %478 = vmatprep.subr.mxu0 0.0
    %479 = vmatpush2.msra.mxu0 0.0
    %480 = vmatprep.subr.mxu0 0.0
    %481 = vmatpush2.msra.mxu0 0.0
    %482 = vmatprep.subr.mxu0 0.0
    %483 = vmatpush2.msra.mxu0 0.0
    %484 = vmatprep.subr.mxu0 0.0
    %485 = vmatpush2.msra.mxu0 0.0
    %486 = vmatprep.subr.mxu0 0.0
    %487 = vmatpush2.msra.mxu0 0.0
    %488 = vmatprep.subr.mxu0 0.0
    %489 = vmatpush2.msra.mxu0 0.0
    %490 = vmatprep.subr.mxu0 0.0
    %491 = vmatpush2.msra.mxu0 0.0
    %492 = vmatprep.subr.mxu0 0.0
    %493 = vmatpush2.msra.mxu0 0.0
    %494 = vmatprep.subr.mxu0 0.0
    %495 = vmatpush2.msra.mxu0 0.0
    %496 = vmatprep.subr.mxu0 0.0
    %497 = vmatpush2.msra.mxu0 0.0
    %498 = vmatprep.subr.mxu0 0.0
    %499 = vmatpush2.msra.mxu0 0.0
    %500 = vmatprep.subr.mxu0 0.0
    %501 = vmatpush2.msra.mxu0 0.0
    %502 = vmatprep.mubr.f32.mxu0 0.0
    %503 = vmatmul.mubr.f32.gmra.mxu0 %v436
    %v504 = vpop.f32.mrf.mxu0
    %v505 = vadd.f32 0.0, %v504
    %v506 = vpop.f32.mrf.mxu0
    %507 = vdwg.mxu0
    %508 = vxpose.xlu0.b32.start [1/16] %v161, 128
    %509 = vxpose.xlu0.b32.cont [2/16] 0.0, 128
    %510 = vxpose.xlu0.b32.cont [3/16] 0.0, 128
    %511 = vxpose.xlu0.b32.cont [4/16] 0.0, 128
    %512 = vxpose.xlu0.b32.cont [5/16] 0.0, 128
    %513 = vxpose.xlu0.b32.cont [6/16] 0.0, 128
    %514 = vxpose.xlu0.b32.cont [7/16] 0.0, 128
    %515 = vxpose.xlu0.b32.cont [8/16] 0.0, 128
    %516 = vxpose.xlu0.b32.cont [9/16] 0.0, 128
    %517 = vxpose.xlu0.b32.cont [10/16] 0.0, 128
    %518 = vxpose.xlu0.b32.cont [11/16] 0.0, 128
    %519 = vxpose.xlu0.b32.cont [12/16] 0.0, 128
    %520 = vxpose.xlu0.b32.cont [13/16] 0.0, 128
    %521 = vxpose.xlu0.b32.cont [14/16] 0.0, 128
    %522 = vxpose.xlu0.b32.cont [15/16] 0.0, 128
    %523 = vxpose.xlu0.b32.end [16/16] 0.0, 128
    %v524 = vpop.trf.xlu0
    %v525 = vpop.trf.xlu0
    %v526 = vpop.trf.xlu0
    %v527 = vpop.trf.xlu0
    %v528 = vpop.trf.xlu0
    %v529 = vpop.trf.xlu0
    %v530 = vpop.trf.xlu0
    %v531 = vpop.trf.xlu0
    %v532 = vpop.trf.xlu0
    %v533 = vpop.trf.xlu0
    %v534 = vpop.trf.xlu0
    %v535 = vpop.trf.xlu0
    %v536 = vpop.trf.xlu0
    %v537 = vpop.trf.xlu0
    %v538 = vpop.trf.xlu0
    %v539 = vpop.trf.xlu0
    %v541 = vsel %vm224, %v524, 0
    %543 = vmatprep.subr.mxu0 0.0
    %544 = vmatpush1.msra.mxu0 0.0
    %545 = vmatprep.subr.mxu0 0.0
    %546 = vmatpush1.msra.mxu0 0.0
    %547 = vmatprep.subr.mxu0 0.0
    %548 = vmatpush1.msra.mxu0 0.0
    %549 = vmatprep.subr.mxu0 0.0
    %550 = vmatpush1.msra.mxu0 0.0
    %551 = vmatprep.subr.mxu0 0.0
    %552 = vmatpush1.msra.mxu0 0.0
    %553 = vmatprep.subr.mxu0 0.0
    %554 = vmatpush1.msra.mxu0 0.0
    %555 = vmatprep.subr.mxu0 0.0
    %556 = vmatpush1.msra.mxu0 0.0
    %557 = vmatprep.subr.mxu0 0.0
    %558 = vmatpush1.msra.mxu0 0.0
    %559 = vmatprep.subr.mxu0 0.0
    %560 = vmatpush1.msra.mxu0 0.0
    %561 = vmatprep.subr.mxu0 0.0
    %562 = vmatpush1.msra.mxu0 0.0
    %563 = vmatprep.subr.mxu0 0.0
    %564 = vmatpush1.msra.mxu0 0.0
    %565 = vmatprep.subr.mxu0 0.0
    %566 = vmatpush1.msra.mxu0 0.0
    %567 = vmatprep.subr.mxu0 0.0
    %568 = vmatpush1.msra.mxu0 0.0
    %569 = vmatprep.subr.mxu0 0.0
    %570 = vmatpush1.msra.mxu0 0.0
    %571 = vmatprep.subr.mxu0 0.0
    %572 = vmatpush1.msra.mxu0 0.0
    %573 = vmatprep.subr.mxu0 0.0
    %574 = vmatpush1.msra.mxu0 %v181
    %575 = vmatprep.subr.mxu0 0.0
    %576 = vmatpush2.msra.mxu0 0.0
    %577 = vmatprep.subr.mxu0 0.0
    %578 = vmatpush2.msra.mxu0 0.0
    %579 = vmatprep.subr.mxu0 0.0
    %580 = vmatpush2.msra.mxu0 0.0
    %581 = vmatprep.subr.mxu0 0.0
    %582 = vmatpush2.msra.mxu0 0.0
    %583 = vmatprep.subr.mxu0 0.0
    %584 = vmatpush2.msra.mxu0 0.0
    %585 = vmatprep.subr.mxu0 0.0
    %586 = vmatpush2.msra.mxu0 0.0
    %587 = vmatprep.subr.mxu0 0.0
    %588 = vmatpush2.msra.mxu0 0.0
    %589 = vmatprep.subr.mxu0 0.0
    %590 = vmatpush2.msra.mxu0 0.0
    %591 = vmatprep.subr.mxu0 0.0
    %592 = vmatpush2.msra.mxu0 0.0
    %593 = vmatprep.subr.mxu0 0.0
    %594 = vmatpush2.msra.mxu0 0.0
    %595 = vmatprep.subr.mxu0 0.0
    %596 = vmatpush2.msra.mxu0 0.0
    %597 = vmatprep.subr.mxu0 0.0
    %598 = vmatpush2.msra.mxu0 0.0
    %599 = vmatprep.subr.mxu0 0.0
    %600 = vmatpush2.msra.mxu0 0.0
    %601 = vmatprep.subr.mxu0 0.0
    %602 = vmatpush2.msra.mxu0 0.0
    %603 = vmatprep.subr.mxu0 0.0
    %604 = vmatpush2.msra.mxu0 0.0
    %605 = vmatprep.subr.mxu0 0.0
    %606 = vmatpush2.msra.mxu0 0.0
    %607 = vmatprep.mubr.f32.mxu0 0.0
    %608 = vmatmul.mubr.f32.gmra.mxu0 %v541
    %v609 = vpop.f32.mrf.mxu0
    %v610 = vadd.f32 0.0, %v609
    %v611 = vpop.f32.mrf.mxu0
    %612 = vdwg.mxu0
    %v613 = vadd.f32 %v295, %v184
    %v614 = vadd.f32 %v400, %v185
    %v615 = vadd.f32 %v505, %v186
    %v616 = vadd.f32 %v610, %v187
    %v617 = vsel %vm224, %v613, -inf
    %618 = vmax.xlane.f32.xlu0 %v617
    %v619 = vpop.xlane.xlu0 %618
    %v620 = vsel %vm224, %v614, -inf
    %621 = vmax.xlane.f32.xlu0 %v620
    %v622 = vpop.xlane.xlu0 %621
    %v623 = vsel %vm224, %v615, -inf
    %624 = vmax.xlane.f32.xlu0 %v623
    %v625 = vpop.xlane.xlu0 %624
    %v626 = vsel %vm224, %v616, -inf
    %627 = vmax.xlane.f32.xlu0 %v626
    %v628 = vpop.xlane.xlu0 %627
    %v629 = vsub.f32 %v613, %v619
    %v630 = vsub.f32 %v614, %v622
    %v631 = vsub.f32 %v615, %v625
    %v632 = vsub.f32 %v616, %v628
    %v633 = vmul.f32 %v629, 1.442695
    %v634 = vpow.pop %v633
    %v635 = vmul.f32 %v630, 1.442695
    %v636 = vpow.pop %v635
    %v637 = vmul.f32 %v631, 1.442695
    %v638 = vpow.pop %v637
    %v639 = vmul.f32 %v632, 1.442695
    %v640 = vpow.pop %v639
    %v641 = vsel %vm224, %v634, 0.0
    %642 = vadd.xlane.f32.xlu0 %v641
    %v643 = vpop.xlane.xlu0 %642
    %v644 = vsel %vm224, %v636, 0.0
    %645 = vadd.xlane.f32.xlu0 %v644
    %v646 = vpop.xlane.xlu0 %645
    %v647 = vsel %vm224, %v638, 0.0
    %648 = vadd.xlane.f32.xlu0 %v647
    %v649 = vpop.xlane.xlu0 %648
    %v650 = vsel %vm224, %v640, 0.0
    %651 = vadd.xlane.f32.xlu0 %v650
    %v652 = vpop.xlane.xlu0 %651
    %v653 = vrcp.pop %v643
    %v654 = vmul.f32 %v634, %v653
    %v655 = vrcp.pop %v646
    %v656 = vmul.f32 %v636, %v655
    %v657 = vrcp.pop %v649
    %v658 = vmul.f32 %v638, %v657
    %v659 = vrcp.pop %v652
    %v660 = vmul.f32 %v640, %v659
    %v662 = vsel %vm224, %v654, 0
    %v665 = vsel %vm224, %v166, 0
    %667 = vmatprep.subr.mxu0 0.0
    %668 = vmatpush1.xpose.msra.mxu0 0.0
    %669 = vmatprep.subr.mxu0 0.0
    %670 = vmatpush1.xpose.msra.mxu0 0.0
    %671 = vmatprep.subr.mxu0 0.0
    %672 = vmatpush1.xpose.msra.mxu0 0.0
    %673 = vmatprep.subr.mxu0 0.0
    %674 = vmatpush1.xpose.msra.mxu0 0.0
    %675 = vmatprep.subr.mxu0 0.0
    %676 = vmatpush1.xpose.msra.mxu0 0.0
    %677 = vmatprep.subr.mxu0 0.0
    %678 = vmatpush1.xpose.msra.mxu0 0.0
    %679 = vmatprep.subr.mxu0 0.0
    %680 = vmatpush1.xpose.msra.mxu0 0.0
    %681 = vmatprep.subr.mxu0 0.0
    %682 = vmatpush1.xpose.msra.mxu0 0.0
    %683 = vmatprep.subr.mxu0 0.0
    %684 = vmatpush1.xpose.msra.mxu0 0.0
    %685 = vmatprep.subr.mxu0 0.0
    %686 = vmatpush1.xpose.msra.mxu0 0.0
    %687 = vmatprep.subr.mxu0 0.0
    %688 = vmatpush1.xpose.msra.mxu0 0.0
    %689 = vmatprep.subr.mxu0 0.0
    %690 = vmatpush1.xpose.msra.mxu0 0.0
    %691 = vmatprep.subr.mxu0 0.0
    %692 = vmatpush1.xpose.msra.mxu0 0.0
    %693 = vmatprep.subr.mxu0 0.0
    %694 = vmatpush1.xpose.msra.mxu0 0.0
    %695 = vmatprep.subr.mxu0 0.0
    %696 = vmatpush1.xpose.msra.mxu0 0.0
    %697 = vmatprep.subr.mxu0 0.0
    %698 = vmatpush1.xpose.msra.mxu0 %v665
    %699 = vmatprep.subr.mxu0 0.0
    %700 = vmatpush2.xpose.msra.mxu0 0.0
    %701 = vmatprep.subr.mxu0 0.0
    %702 = vmatpush2.xpose.msra.mxu0 0.0
    %703 = vmatprep.subr.mxu0 0.0
    %704 = vmatpush2.xpose.msra.mxu0 0.0
    %705 = vmatprep.subr.mxu0 0.0
    %706 = vmatpush2.xpose.msra.mxu0 0.0
    %707 = vmatprep.subr.mxu0 0.0
    %708 = vmatpush2.xpose.msra.mxu0 0.0
    %709 = vmatprep.subr.mxu0 0.0
    %710 = vmatpush2.xpose.msra.mxu0 0.0
    %711 = vmatprep.subr.mxu0 0.0
    %712 = vmatpush2.xpose.msra.mxu0 0.0
    %713 = vmatprep.subr.mxu0 0.0
    %714 = vmatpush2.xpose.msra.mxu0 0.0
    %715 = vmatprep.subr.mxu0 0.0
    %716 = vmatpush2.xpose.msra.mxu0 0.0
    %717 = vmatprep.subr.mxu0 0.0
    %718 = vmatpush2.xpose.msra.mxu0 0.0
    %719 = vmatprep.subr.mxu0 0.0
    %720 = vmatpush2.xpose.msra.mxu0 0.0
    %721 = vmatprep.subr.mxu0 0.0
    %722 = vmatpush2.xpose.msra.mxu0 0.0
    %723 = vmatprep.subr.mxu0 0.0
    %724 = vmatpush2.xpose.msra.mxu0 0.0
    %725 = vmatprep.subr.mxu0 0.0
    %726 = vmatpush2.xpose.msra.mxu0 0.0
    %727 = vmatprep.subr.mxu0 0.0
    %728 = vmatpush2.xpose.msra.mxu0 0.0
    %729 = vmatprep.subr.mxu0 0.0
    %730 = vmatpush2.xpose.msra.mxu0 0.0
    %731 = vmatprep.mubr.f32.mxu0 0.0
    %732 = vmatmul.mubr.f32.gmra.mxu0 %v662
    %v733 = vpop.f32.mrf.mxu0
    %v734 = vadd.f32 0.0, %v733
    %v735 = vpop.f32.mrf.mxu0
    %736 = vdwg.mxu0
    %v738 = vsel %vm224, %v656, 0
    %v741 = vsel %vm224, %v171, 0
    %743 = vmatprep.subr.mxu0 0.0
    %744 = vmatpush1.xpose.msra.mxu0 0.0
    %745 = vmatprep.subr.mxu0 0.0
    %746 = vmatpush1.xpose.msra.mxu0 0.0
    %747 = vmatprep.subr.mxu0 0.0
    %748 = vmatpush1.xpose.msra.mxu0 0.0
    %749 = vmatprep.subr.mxu0 0.0
    %750 = vmatpush1.xpose.msra.mxu0 0.0
    %751 = vmatprep.subr.mxu0 0.0
    %752 = vmatpush1.xpose.msra.mxu0 0.0
    %753 = vmatprep.subr.mxu0 0.0
    %754 = vmatpush1.xpose.msra.mxu0 0.0
    %755 = vmatprep.subr.mxu0 0.0
    %756 = vmatpush1.xpose.msra.mxu0 0.0
    %757 = vmatprep.subr.mxu0 0.0
    %758 = vmatpush1.xpose.msra.mxu0 0.0
    %759 = vmatprep.subr.mxu0 0.0
    %760 = vmatpush1.xpose.msra.mxu0 0.0
    %761 = vmatprep.subr.mxu0 0.0
    %762 = vmatpush1.xpose.msra.mxu0 0.0
    %763 = vmatprep.subr.mxu0 0.0
    %764 = vmatpush1.xpose.msra.mxu0 0.0
    %765 = vmatprep.subr.mxu0 0.0
    %766 = vmatpush1.xpose.msra.mxu0 0.0
    %767 = vmatprep.subr.mxu0 0.0
    %768 = vmatpush1.xpose.msra.mxu0 0.0
    %769 = vmatprep.subr.mxu0 0.0
    %770 = vmatpush1.xpose.msra.mxu0 0.0
    %771 = vmatprep.subr.mxu0 0.0
    %772 = vmatpush1.xpose.msra.mxu0 0.0
    %773 = vmatprep.subr.mxu0 0.0
    %774 = vmatpush1.xpose.msra.mxu0 %v741
    %775 = vmatprep.subr.mxu0 0.0
    %776 = vmatpush2.xpose.msra.mxu0 0.0
    %777 = vmatprep.subr.mxu0 0.0
    %778 = vmatpush2.xpose.msra.mxu0 0.0
    %779 = vmatprep.subr.mxu0 0.0
    %780 = vmatpush2.xpose.msra.mxu0 0.0
    %781 = vmatprep.subr.mxu0 0.0
    %782 = vmatpush2.xpose.msra.mxu0 0.0
    %783 = vmatprep.subr.mxu0 0.0
    %784 = vmatpush2.xpose.msra.mxu0 0.0
    %785 = vmatprep.subr.mxu0 0.0
    %786 = vmatpush2.xpose.msra.mxu0 0.0
    %787 = vmatprep.subr.mxu0 0.0
    %788 = vmatpush2.xpose.msra.mxu0 0.0
    %789 = vmatprep.subr.mxu0 0.0
    %790 = vmatpush2.xpose.msra.mxu0 0.0
    %791 = vmatprep.subr.mxu0 0.0
    %792 = vmatpush2.xpose.msra.mxu0 0.0
    %793 = vmatprep.subr.mxu0 0.0
    %794 = vmatpush2.xpose.msra.mxu0 0.0
    %795 = vmatprep.subr.mxu0 0.0
    %796 = vmatpush2.xpose.msra.mxu0 0.0
    %797 = vmatprep.subr.mxu0 0.0
    %798 = vmatpush2.xpose.msra.mxu0 0.0
    %799 = vmatprep.subr.mxu0 0.0
    %800 = vmatpush2.xpose.msra.mxu0 0.0
    %801 = vmatprep.subr.mxu0 0.0
    %802 = vmatpush2.xpose.msra.mxu0 0.0
    %803 = vmatprep.subr.mxu0 0.0
    %804 = vmatpush2.xpose.msra.mxu0 0.0
    %805 = vmatprep.subr.mxu0 0.0
    %806 = vmatpush2.xpose.msra.mxu0 0.0
    %807 = vmatprep.mubr.f32.mxu0 0.0
    %808 = vmatmul.mubr.f32.gmra.mxu0 %v738
    %v809 = vpop.f32.mrf.mxu0
    %v810 = vadd.f32 0.0, %v809
    %v811 = vpop.f32.mrf.mxu0
    %812 = vdwg.mxu0
    %v814 = vsel %vm224, %v658, 0
    %v817 = vsel %vm224, %v176, 0
    %819 = vmatprep.subr.mxu0 0.0
    %820 = vmatpush1.xpose.msra.mxu0 0.0
    %821 = vmatprep.subr.mxu0 0.0
    %822 = vmatpush1.xpose.msra.mxu0 0.0
    %823 = vmatprep.subr.mxu0 0.0
    %824 = vmatpush1.xpose.msra.mxu0 0.0
    %825 = vmatprep.subr.mxu0 0.0
    %826 = vmatpush1.xpose.msra.mxu0 0.0
    %827 = vmatprep.subr.mxu0 0.0
    %828 = vmatpush1.xpose.msra.mxu0 0.0
    %829 = vmatprep.subr.mxu0 0.0
    %830 = vmatpush1.xpose.msra.mxu0 0.0
    %831 = vmatprep.subr.mxu0 0.0
    %832 = vmatpush1.xpose.msra.mxu0 0.0
    %833 = vmatprep.subr.mxu0 0.0
    %834 = vmatpush1.xpose.msra.mxu0 0.0
    %835 = vmatprep.subr.mxu0 0.0
    %836 = vmatpush1.xpose.msra.mxu0 0.0
    %837 = vmatprep.subr.mxu0 0.0
    %838 = vmatpush1.xpose.msra.mxu0 0.0
    %839 = vmatprep.subr.mxu0 0.0
    %840 = vmatpush1.xpose.msra.mxu0 0.0
    %841 = vmatprep.subr.mxu0 0.0
    %842 = vmatpush1.xpose.msra.mxu0 0.0
    %843 = vmatprep.subr.mxu0 0.0
    %844 = vmatpush1.xpose.msra.mxu0 0.0
    %845 = vmatprep.subr.mxu0 0.0
    %846 = vmatpush1.xpose.msra.mxu0 0.0
    %847 = vmatprep.subr.mxu0 0.0
    %848 = vmatpush1.xpose.msra.mxu0 0.0
    %849 = vmatprep.subr.mxu0 0.0
    %850 = vmatpush1.xpose.msra.mxu0 %v817
    %851 = vmatprep.subr.mxu0 0.0
    %852 = vmatpush2.xpose.msra.mxu0 0.0
    %853 = vmatprep.subr.mxu0 0.0
    %854 = vmatpush2.xpose.msra.mxu0 0.0
    %855 = vmatprep.subr.mxu0 0.0
    %856 = vmatpush2.xpose.msra.mxu0 0.0
    %857 = vmatprep.subr.mxu0 0.0
    %858 = vmatpush2.xpose.msra.mxu0 0.0
    %859 = vmatprep.subr.mxu0 0.0
    %860 = vmatpush2.xpose.msra.mxu0 0.0
    %861 = vmatprep.subr.mxu0 0.0
    %862 = vmatpush2.xpose.msra.mxu0 0.0
    %863 = vmatprep.subr.mxu0 0.0
    %864 = vmatpush2.xpose.msra.mxu0 0.0
    %865 = vmatprep.subr.mxu0 0.0
    %866 = vmatpush2.xpose.msra.mxu0 0.0
    %867 = vmatprep.subr.mxu0 0.0
    %868 = vmatpush2.xpose.msra.mxu0 0.0
    %869 = vmatprep.subr.mxu0 0.0
    %870 = vmatpush2.xpose.msra.mxu0 0.0
    %871 = vmatprep.subr.mxu0 0.0
    %872 = vmatpush2.xpose.msra.mxu0 0.0
    %873 = vmatprep.subr.mxu0 0.0
    %874 = vmatpush2.xpose.msra.mxu0 0.0
    %875 = vmatprep.subr.mxu0 0.0
    %876 = vmatpush2.xpose.msra.mxu0 0.0
    %877 = vmatprep.subr.mxu0 0.0
    %878 = vmatpush2.xpose.msra.mxu0 0.0
    %879 = vmatprep.subr.mxu0 0.0
    %880 = vmatpush2.xpose.msra.mxu0 0.0
    %881 = vmatprep.subr.mxu0 0.0
    %882 = vmatpush2.xpose.msra.mxu0 0.0
    %883 = vmatprep.mubr.f32.mxu0 0.0
    %884 = vmatmul.mubr.f32.gmra.mxu0 %v814
    %v885 = vpop.f32.mrf.mxu0
    %v886 = vadd.f32 0.0, %v885
    %v887 = vpop.f32.mrf.mxu0
    %888 = vdwg.mxu0
    %v890 = vsel %vm224, %v660, 0
    %v893 = vsel %vm224, %v181, 0
    %895 = vmatprep.subr.mxu0 0.0
    %896 = vmatpush1.xpose.msra.mxu0 0.0
    %897 = vmatprep.subr.mxu0 0.0
    %898 = vmatpush1.xpose.msra.mxu0 0.0
    %899 = vmatprep.subr.mxu0 0.0
    %900 = vmatpush1.xpose.msra.mxu0 0.0
    %901 = vmatprep.subr.mxu0 0.0
    %902 = vmatpush1.xpose.msra.mxu0 0.0
    %903 = vmatprep.subr.mxu0 0.0
    %904 = vmatpush1.xpose.msra.mxu0 0.0
    %905 = vmatprep.subr.mxu0 0.0
    %906 = vmatpush1.xpose.msra.mxu0 0.0
    %907 = vmatprep.subr.mxu0 0.0
    %908 = vmatpush1.xpose.msra.mxu0 0.0
    %909 = vmatprep.subr.mxu0 0.0
    %910 = vmatpush1.xpose.msra.mxu0 0.0
    %911 = vmatprep.subr.mxu0 0.0
    %912 = vmatpush1.xpose.msra.mxu0 0.0
    %913 = vmatprep.subr.mxu0 0.0
    %914 = vmatpush1.xpose.msra.mxu0 0.0
    %915 = vmatprep.subr.mxu0 0.0
    %916 = vmatpush1.xpose.msra.mxu0 0.0
    %917 = vmatprep.subr.mxu0 0.0
    %918 = vmatpush1.xpose.msra.mxu0 0.0
    %919 = vmatprep.subr.mxu0 0.0
    %920 = vmatpush1.xpose.msra.mxu0 0.0
    %921 = vmatprep.subr.mxu0 0.0
    %922 = vmatpush1.xpose.msra.mxu0 0.0
    %923 = vmatprep.subr.mxu0 0.0
    %924 = vmatpush1.xpose.msra.mxu0 0.0
    %925 = vmatprep.subr.mxu0 0.0
    %926 = vmatpush1.xpose.msra.mxu0 %v893
    %927 = vmatprep.subr.mxu0 0.0
    %928 = vmatpush2.xpose.msra.mxu0 0.0
    %929 = vmatprep.subr.mxu0 0.0
    %930 = vmatpush2.xpose.msra.mxu0 0.0
    %931 = vmatprep.subr.mxu0 0.0
    %932 = vmatpush2.xpose.msra.mxu0 0.0
    %933 = vmatprep.subr.mxu0 0.0
    %934 = vmatpush2.xpose.msra.mxu0 0.0
    %935 = vmatprep.subr.mxu0 0.0
    %936 = vmatpush2.xpose.msra.mxu0 0.0
    %937 = vmatprep.subr.mxu0 0.0
    %938 = vmatpush2.xpose.msra.mxu0 0.0
    %939 = vmatprep.subr.mxu0 0.0
    %940 = vmatpush2.xpose.msra.mxu0 0.0
    %941 = vmatprep.subr.mxu0 0.0
    %942 = vmatpush2.xpose.msra.mxu0 0.0
    %943 = vmatprep.subr.mxu0 0.0
    %944 = vmatpush2.xpose.msra.mxu0 0.0
    %945 = vmatprep.subr.mxu0 0.0
    %946 = vmatpush2.xpose.msra.mxu0 0.0
    %947 = vmatprep.subr.mxu0 0.0
    %948 = vmatpush2.xpose.msra.mxu0 0.0
    %949 = vmatprep.subr.mxu0 0.0
    %950 = vmatpush2.xpose.msra.mxu0 0.0
    %951 = vmatprep.subr.mxu0 0.0
    %952 = vmatpush2.xpose.msra.mxu0 0.0
    %953 = vmatprep.subr.mxu0 0.0
    %954 = vmatpush2.xpose.msra.mxu0 0.0
    %955 = vmatprep.subr.mxu0 0.0
    %956 = vmatpush2.xpose.msra.mxu0 0.0
    %957 = vmatprep.subr.mxu0 0.0
    %958 = vmatpush2.xpose.msra.mxu0 0.0
    %959 = vmatprep.mubr.f32.mxu0 0.0
    %960 = vmatmul.mubr.f32.gmra.mxu0 %v890
    %v961 = vpop.f32.mrf.mxu0
    %v962 = vadd.f32 0.0, %v961
    %v963 = vpop.f32.mrf.mxu0
    %964 = vdwg.mxu0
    %966 = vrot.lane.b32.xlu0 %v810, 8
    %v967 = vpop.permute.xlu0 %966
    %970 = vrot.lane.b32.xlu0 %v886, 16
    %v971 = vpop.permute.xlu0 %970
    %974 = vrot.lane.b32.xlu0 %v962, 24
    %v975 = vpop.permute.xlu0 %974
    %v977 = vsel %vm224, %v734, %v967
    %vm978 = vcmask 130048
    %v979 = vsel %vm978, %v977, %v971
    %vm980 = vcmask 195584
    %v981 = vsel %vm980, %v979, %v975
    %v983 = vsel %vm19, %v981, 0
    %985 = vmatprep.subr.mxu0 0.0
    %986 = vmatpush1.msra.mxu0 0.0
    %987 = vmatprep.subr.mxu0 0.0
    %988 = vmatpush1.msra.mxu0 0.0
    %989 = vmatprep.subr.mxu0 0.0
    %990 = vmatpush1.msra.mxu0 0.0
    %991 = vmatprep.subr.mxu0 0.0
    %992 = vmatpush1.msra.mxu0 0.0
    %993 = vmatprep.subr.mxu0 0.0
    %994 = vmatpush1.msra.mxu0 0.0
    %995 = vmatprep.subr.mxu0 0.0
    %996 = vmatpush1.msra.mxu0 0.0
    %997 = vmatprep.subr.mxu0 0.0
    %998 = vmatpush1.msra.mxu0 0.0
    %999 = vmatprep.subr.mxu0 0.0
    %1000 = vmatpush1.msra.mxu0 0.0
    %1001 = vmatprep.subr.mxu0 0.0
    %1002 = vmatpush1.msra.mxu0 0.0
    %1003 = vmatprep.subr.mxu0 0.0
    %1004 = vmatpush1.msra.mxu0 0.0
    %1005 = vmatprep.subr.mxu0 0.0
    %1006 = vmatpush1.msra.mxu0 0.0
    %1007 = vmatprep.subr.mxu0 0.0
    %1008 = vmatpush1.msra.mxu0 0.0
    %1009 = vmatprep.subr.mxu0 0.0
    %1010 = vmatpush1.msra.mxu0 %v191
    %1011 = vmatprep.subr.mxu0 0.0
    %1012 = vmatpush1.msra.mxu0 %v190
    %1013 = vmatprep.subr.mxu0 0.0
    %1014 = vmatpush1.msra.mxu0 %v189
    %1015 = vmatprep.subr.mxu0 0.0
    %1016 = vmatpush1.msra.mxu0 %v188
    %1017 = vmatprep.subr.mxu0 0.0
    %1018 = vmatpush2.msra.mxu0 0.0
    %1019 = vmatprep.subr.mxu0 0.0
    %1020 = vmatpush2.msra.mxu0 0.0
    %1021 = vmatprep.subr.mxu0 0.0
    %1022 = vmatpush2.msra.mxu0 0.0
    %1023 = vmatprep.subr.mxu0 0.0
    %1024 = vmatpush2.msra.mxu0 0.0
    %1025 = vmatprep.subr.mxu0 0.0
    %1026 = vmatpush2.msra.mxu0 0.0
    %1027 = vmatprep.subr.mxu0 0.0
    %1028 = vmatpush2.msra.mxu0 0.0
    %1029 = vmatprep.subr.mxu0 0.0
    %1030 = vmatpush2.msra.mxu0 0.0
    %1031 = vmatprep.subr.mxu0 0.0
    %1032 = vmatpush2.msra.mxu0 0.0
    %1033 = vmatprep.subr.mxu0 0.0
    %1034 = vmatpush2.msra.mxu0 0.0
    %1035 = vmatprep.subr.mxu0 0.0
    %1036 = vmatpush2.msra.mxu0 0.0
    %1037 = vmatprep.subr.mxu0 0.0
    %1038 = vmatpush2.msra.mxu0 0.0
    %1039 = vmatprep.subr.mxu0 0.0
    %1040 = vmatpush2.msra.mxu0 0.0
    %1041 = vmatprep.subr.mxu0 0.0
    %1042 = vmatpush2.msra.mxu0 0.0
    %1043 = vmatprep.subr.mxu0 0.0
    %1044 = vmatpush2.msra.mxu0 0.0
    %1045 = vmatprep.subr.mxu0 0.0
    %1046 = vmatpush2.msra.mxu0 0.0
    %1047 = vmatprep.subr.mxu0 0.0
    %1048 = vmatpush2.msra.mxu0 0.0
    %1049 = vmatprep.mubr.f32.mxu0 0.0
    %1050 = vmatmul.mubr.f32.gmra.mxu0 %v983
    %v1051 = vpop.f32.mrf.mxu0
    %v1052 = vadd.f32 %v18, %v1051
    %v1053 = vpop.f32.mrf.mxu0
    %1054 = vdwg.mxu0
    %v1055 = vld [vmem:[%s0 + $0x8] sm:$0xff]
    %v1056 = vld [vmem:[%s0 + $0x10] sm:$0xff]
    %v1057 = vld [vmem:[%s0 + $0x18] sm:$0xff]
    %v1058 = vld [vmem:[%s0 + $0x20] sm:$0xff]
    %v1059 = vld [vmem:[%s1 + $0x80] sm:$0xff]
    %v1060 = vld [vmem:[%s1 + $0x88] sm:$0xff]
    %v1061 = vld [vmem:[%s1 + $0x90] sm:$0xff]
    %v1062 = vld [vmem:[%s1 + $0x98] sm:$0xff]
    %v1064 = vsel %vm19, %v1059, 0
    %v1067 = vsel %vm19, %v1060, 0
    %v1070 = vsel %vm19, %v1061, 0
    %v1073 = vsel %vm19, %v1062, 0
    %1075 = vmatprep.subr.mxu0 0.0
    %1076 = vmatpush1.msra.mxu0 0.0
    %1077 = vmatprep.subr.mxu0 0.0
    %1078 = vmatpush1.msra.mxu0 0.0
    %1079 = vmatprep.subr.mxu0 0.0
    %1080 = vmatpush1.msra.mxu0 0.0
    %1081 = vmatprep.subr.mxu0 0.0
    %1082 = vmatpush1.msra.mxu0 0.0
    %1083 = vmatprep.subr.mxu0 0.0
    %1084 = vmatpush1.msra.mxu0 0.0
    %1085 = vmatprep.subr.mxu0 0.0
    %1086 = vmatpush1.msra.mxu0 0.0
    %1087 = vmatprep.subr.mxu0 0.0
    %1088 = vmatpush1.msra.mxu0 0.0
    %1089 = vmatprep.subr.mxu0 0.0
    %1090 = vmatpush1.msra.mxu0 0.0
    %1091 = vmatprep.subr.mxu0 0.0
    %1092 = vmatpush1.msra.mxu0 0.0
    %1093 = vmatprep.subr.mxu0 0.0
    %1094 = vmatpush1.msra.mxu0 0.0
    %1095 = vmatprep.subr.mxu0 0.0
    %1096 = vmatpush1.msra.mxu0 0.0
    %1097 = vmatprep.subr.mxu0 0.0
    %1098 = vmatpush1.msra.mxu0 0.0
    %1099 = vmatprep.subr.mxu0 0.0
    %1100 = vmatpush1.msra.mxu0 %v1058
    %1101 = vmatprep.subr.mxu0 0.0
    %1102 = vmatpush1.msra.mxu0 %v1057
    %1103 = vmatprep.subr.mxu0 0.0
    %1104 = vmatpush1.msra.mxu0 %v1056
    %1105 = vmatprep.subr.mxu0 0.0
    %1106 = vmatpush1.msra.mxu0 %v1055
    %1107 = vmatprep.subr.mxu0 0.0
    %1108 = vmatpush2.msra.mxu0 0.0
    %1109 = vmatprep.subr.mxu0 0.0
    %1110 = vmatpush2.msra.mxu0 0.0
    %1111 = vmatprep.subr.mxu0 0.0
    %1112 = vmatpush2.msra.mxu0 0.0
    %1113 = vmatprep.subr.mxu0 0.0
    %1114 = vmatpush2.msra.mxu0 0.0
    %1115 = vmatprep.subr.mxu0 0.0
    %1116 = vmatpush2.msra.mxu0 0.0
    %1117 = vmatprep.subr.mxu0 0.0
    %1118 = vmatpush2.msra.mxu0 0.0
    %1119 = vmatprep.subr.mxu0 0.0
    %1120 = vmatpush2.msra.mxu0 0.0
    %1121 = vmatprep.subr.mxu0 0.0
    %1122 = vmatpush2.msra.mxu0 0.0
    %1123 = vmatprep.subr.mxu0 0.0
    %1124 = vmatpush2.msra.mxu0 0.0
    %1125 = vmatprep.subr.mxu0 0.0
    %1126 = vmatpush2.msra.mxu0 0.0
    %1127 = vmatprep.subr.mxu0 0.0
    %1128 = vmatpush2.msra.mxu0 0.0
    %1129 = vmatprep.subr.mxu0 0.0
    %1130 = vmatpush2.msra.mxu0 0.0
    %1131 = vmatprep.subr.mxu0 0.0
    %1132 = vmatpush2.msra.mxu0 0.0
    %1133 = vmatprep.subr.mxu0 0.0
    %1134 = vmatpush2.msra.mxu0 0.0
    %1135 = vmatprep.subr.mxu0 0.0
    %1136 = vmatpush2.msra.mxu0 0.0
    %1137 = vmatprep.subr.mxu0 0.0
    %1138 = vmatpush2.msra.mxu0 0.0
    %1139 = vmatprep.mubr.f32.mxu0 0.0
    %1140 = vmatmul.mubr.f32.gmra.mxu0 %v1064
    %v1141 = vpop.f32.mrf.mxu0
    %v1142 = vadd.f32 0.0, %v1141
    %v1143 = vpop.f32.mrf.mxu0
    %1144 = vmatprep.mubr.f32.mxu0 0.0
    %1145 = vmatmul.mubr.f32.gmra.mxu0 %v1067
    %v1146 = vpop.f32.mrf.mxu0
    %v1147 = vadd.f32 0.0, %v1146
    %v1148 = vpop.f32.mrf.mxu0
    %1149 = vmatprep.mubr.f32.mxu0 0.0
    %1150 = vmatmul.mubr.f32.gmra.mxu0 %v1070
    %v1151 = vpop.f32.mrf.mxu0
    %v1152 = vadd.f32 0.0, %v1151
    %v1153 = vpop.f32.mrf.mxu0
    %1154 = vmatprep.mubr.f32.mxu0 0.0
    %1155 = vmatmul.mubr.f32.gmra.mxu0 %v1073
    %v1156 = vpop.f32.mrf.mxu0
    %v1157 = vadd.f32 0.0, %v1156
    %v1158 = vpop.f32.mrf.mxu0
    %1159 = vdwg.mxu0
    %v1160 = vsel %vm19, %v1052, 0.0
    %1161 = vadd.xlane.f32.xlu0 %v1160
    %v1162 = vpop.xlane.xlu0 %1161
    %v1163 = vmul.f32 %v1162, %v23
    %v1164 = vsub.f32 %v1052, %v1163
    %v1165 = vmul.f32 %v1164, %v1164
    %v1166 = vsel %vm19, %v1165, 0.0
    %1167 = vadd.xlane.f32.xlu0 %v1166
    %v1168 = vpop.xlane.xlu0 %1167
    %v1169 = vmul.f32 %v1168, %v23
    %v1170 = vadd.f32 %v1169, 1e-05
    %v1171 = vrsqrt.pop %v1170
    %v1172 = vmul.f32 %v1164, %v1171
    %v1173 = vlaneseq
    %v1174 = vshrl.u32 %v1173, 7
    %v1175 = vsub.s32 2, %v1174
    %v1176 = vrot.slane %v17, %v1175
    %v1177 = vmul.f32 %v1172, %v1176
    %v1178 = vlaneseq
    %v1179 = vshrl.u32 %v1178, 7
    %v1180 = vsub.s32 3, %v1179
    %v1181 = vrot.slane %v17, %v1180
    %v1182 = vadd.f32 %v1177, %v1181
    %v1183 = vld [vmem:[%s1 + $0x60] sm:$0xff]
    %v1184 = vld [vmem:[%s1 + $0x68] sm:$0xff]
    %v1185 = vld [vmem:[%s1 + $0x70] sm:$0xff]
    %v1186 = vld [vmem:[%s1 + $0x78] sm:$0xff]
    %v1188 = vsel %vm19, %v1183, 0
    %v1191 = vsel %vm19, %v1184, 0
    %v1194 = vsel %vm19, %v1185, 0
    %v1197 = vsel %vm19, %v1186, 0
    %v1200 = vsel %vm19, %v1182, 0
    %1202 = vmatprep.subr.mxu0 0.0
    %1203 = vmatpush1.xpose.msra.mxu0 0.0
    %1204 = vmatprep.subr.mxu0 0.0
    %1205 = vmatpush1.xpose.msra.mxu0 0.0
    %1206 = vmatprep.subr.mxu0 0.0
    %1207 = vmatpush1.xpose.msra.mxu0 0.0
    %1208 = vmatprep.subr.mxu0 0.0
    %1209 = vmatpush1.xpose.msra.mxu0 0.0
    %1210 = vmatprep.subr.mxu0 0.0
    %1211 = vmatpush1.xpose.msra.mxu0 0.0
    %1212 = vmatprep.subr.mxu0 0.0
    %1213 = vmatpush1.xpose.msra.mxu0 0.0
    %1214 = vmatprep.subr.mxu0 0.0
    %1215 = vmatpush1.xpose.msra.mxu0 0.0
    %1216 = vmatprep.subr.mxu0 0.0
    %1217 = vmatpush1.xpose.msra.mxu0 0.0
    %1218 = vmatprep.subr.mxu0 0.0
    %1219 = vmatpush1.xpose.msra.mxu0 0.0
    %1220 = vmatprep.subr.mxu0 0.0
    %1221 = vmatpush1.xpose.msra.mxu0 0.0
    %1222 = vmatprep.subr.mxu0 0.0
    %1223 = vmatpush1.xpose.msra.mxu0 0.0
    %1224 = vmatprep.subr.mxu0 0.0
    %1225 = vmatpush1.xpose.msra.mxu0 0.0
    %1226 = vmatprep.subr.mxu0 0.0
    %1227 = vmatpush1.xpose.msra.mxu0 0.0
    %1228 = vmatprep.subr.mxu0 0.0
    %1229 = vmatpush1.xpose.msra.mxu0 0.0
    %1230 = vmatprep.subr.mxu0 0.0
    %1231 = vmatpush1.xpose.msra.mxu0 0.0
    %1232 = vmatprep.subr.mxu0 0.0
    %1233 = vmatpush1.xpose.msra.mxu0 %v1200
    %1234 = vmatprep.subr.mxu0 0.0
    %1235 = vmatpush2.xpose.msra.mxu0 0.0
    %1236 = vmatprep.subr.mxu0 0.0
    %1237 = vmatpush2.xpose.msra.mxu0 0.0
    %1238 = vmatprep.subr.mxu0 0.0
    %1239 = vmatpush2.xpose.msra.mxu0 0.0
    %1240 = vmatprep.subr.mxu0 0.0
    %1241 = vmatpush2.xpose.msra.mxu0 0.0
    %1242 = vmatprep.subr.mxu0 0.0
    %1243 = vmatpush2.xpose.msra.mxu0 0.0
    %1244 = vmatprep.subr.mxu0 0.0
    %1245 = vmatpush2.xpose.msra.mxu0 0.0
    %1246 = vmatprep.subr.mxu0 0.0
    %1247 = vmatpush2.xpose.msra.mxu0 0.0
    %1248 = vmatprep.subr.mxu0 0.0
    %1249 = vmatpush2.xpose.msra.mxu0 0.0
    %1250 = vmatprep.subr.mxu0 0.0
    %1251 = vmatpush2.xpose.msra.mxu0 0.0
    %1252 = vmatprep.subr.mxu0 0.0
    %1253 = vmatpush2.xpose.msra.mxu0 0.0
    %1254 = vmatprep.subr.mxu0 0.0
    %1255 = vmatpush2.xpose.msra.mxu0 0.0
    %1256 = vmatprep.subr.mxu0 0.0
    %1257 = vmatpush2.xpose.msra.mxu0 0.0
    %1258 = vmatprep.subr.mxu0 0.0
    %1259 = vmatpush2.xpose.msra.mxu0 0.0
    %1260 = vmatprep.subr.mxu0 0.0
    %1261 = vmatpush2.xpose.msra.mxu0 0.0
    %1262 = vmatprep.subr.mxu0 0.0
    %1263 = vmatpush2.xpose.msra.mxu0 0.0
    %1264 = vmatprep.subr.mxu0 0.0
    %1265 = vmatpush2.xpose.msra.mxu0 0.0
    %1266 = vmatprep.mubr.f32.mxu0 0.0
    %1267 = vmatmul.mubr.f32.gmra.mxu0 %v1188
    %v1268 = vpop.f32.mrf.mxu0
    %v1269 = vadd.f32 0.0, %v1268
    %v1270 = vpop.f32.mrf.mxu0
    %1271 = vmatprep.mubr.f32.mxu0 0.0
    %1272 = vmatmul.mubr.f32.gmra.mxu0 %v1191
    %v1273 = vpop.f32.mrf.mxu0
    %v1274 = vadd.f32 0.0, %v1273
    %v1275 = vpop.f32.mrf.mxu0
    %1276 = vmatprep.mubr.f32.mxu0 0.0
    %1277 = vmatmul.mubr.f32.gmra.mxu0 %v1194
    %v1278 = vpop.f32.mrf.mxu0
    %v1279 = vadd.f32 0.0, %v1278
    %v1280 = vpop.f32.mrf.mxu0
    %1281 = vmatprep.mubr.f32.mxu0 0.0
    %1282 = vmatmul.mubr.f32.gmra.mxu0 %v1197
    %v1283 = vpop.f32.mrf.mxu0
    %v1284 = vadd.f32 0.0, %v1283
    %v1285 = vpop.f32.mrf.mxu0
    %1286 = vdwg.mxu0
    %v1287 = vld [vmem:[%s0 + $0x48] sm:$0xff]
    %v1288 = vld [vmem:[%s0 + $0x50] sm:$0xff]
    %v1289 = vld [vmem:[%s0 + $0x58] sm:$0xff]
    %v1290 = vld [vmem:[%s0 + $0x60] sm:$0xff]
    %v1291 = vld [vmem:[%s1 + $0xa0] sm:$0xff]
    %v1292 = vld [vmem:[%s1 + $0xa8] sm:$0xff]
    %v1293 = vld [vmem:[%s1 + $0xb0] sm:$0xff]
    %v1294 = vld [vmem:[%s1 + $0xb8] sm:$0xff]
    %1295 = vxpose.xlu0.b32.start [1/16] %v1269, 128
    %1296 = vxpose.xlu0.b32.cont [2/16] 0.0, 128
    %1297 = vxpose.xlu0.b32.cont [3/16] 0.0, 128
    %1298 = vxpose.xlu0.b32.cont [4/16] 0.0, 128
    %1299 = vxpose.xlu0.b32.cont [5/16] 0.0, 128
    %1300 = vxpose.xlu0.b32.cont [6/16] 0.0, 128
    %1301 = vxpose.xlu0.b32.cont [7/16] 0.0, 128
    %1302 = vxpose.xlu0.b32.cont [8/16] 0.0, 128
    %1303 = vxpose.xlu0.b32.cont [9/16] 0.0, 128
    %1304 = vxpose.xlu0.b32.cont [10/16] 0.0, 128
    %1305 = vxpose.xlu0.b32.cont [11/16] 0.0, 128
    %1306 = vxpose.xlu0.b32.cont [12/16] 0.0, 128
    %1307 = vxpose.xlu0.b32.cont [13/16] 0.0, 128
    %1308 = vxpose.xlu0.b32.cont [14/16] 0.0, 128
    %1309 = vxpose.xlu0.b32.cont [15/16] 0.0, 128
    %1310 = vxpose.xlu0.b32.end [16/16] 0.0, 128
    %v1311 = vpop.trf.xlu0
    %v1312 = vpop.trf.xlu0
    %v1313 = vpop.trf.xlu0
    %v1314 = vpop.trf.xlu0
    %v1315 = vpop.trf.xlu0
    %v1316 = vpop.trf.xlu0
    %v1317 = vpop.trf.xlu0
    %v1318 = vpop.trf.xlu0
    %v1319 = vpop.trf.xlu0
    %v1320 = vpop.trf.xlu0
    %v1321 = vpop.trf.xlu0
    %v1322 = vpop.trf.xlu0
    %v1323 = vpop.trf.xlu0
    %v1324 = vpop.trf.xlu0
    %v1325 = vpop.trf.xlu0
    %v1326 = vpop.trf.xlu0
    %v1328 = vsel %vm224, %v1311, 0
    %1330 = vmatprep.subr.mxu0 0.0
    %1331 = vmatpush1.msra.mxu0 0.0
    %1332 = vmatprep.subr.mxu0 0.0
    %1333 = vmatpush1.msra.mxu0 0.0
    %1334 = vmatprep.subr.mxu0 0.0
    %1335 = vmatpush1.msra.mxu0 0.0
    %1336 = vmatprep.subr.mxu0 0.0
    %1337 = vmatpush1.msra.mxu0 0.0
    %1338 = vmatprep.subr.mxu0 0.0
    %1339 = vmatpush1.msra.mxu0 0.0
    %1340 = vmatprep.subr.mxu0 0.0
    %1341 = vmatpush1.msra.mxu0 0.0
    %1342 = vmatprep.subr.mxu0 0.0
    %1343 = vmatpush1.msra.mxu0 0.0
    %1344 = vmatprep.subr.mxu0 0.0
    %1345 = vmatpush1.msra.mxu0 0.0
    %1346 = vmatprep.subr.mxu0 0.0
    %1347 = vmatpush1.msra.mxu0 0.0
    %1348 = vmatprep.subr.mxu0 0.0
    %1349 = vmatpush1.msra.mxu0 0.0
    %1350 = vmatprep.subr.mxu0 0.0
    %1351 = vmatpush1.msra.mxu0 0.0
    %1352 = vmatprep.subr.mxu0 0.0
    %1353 = vmatpush1.msra.mxu0 0.0
    %1354 = vmatprep.subr.mxu0 0.0
    %1355 = vmatpush1.msra.mxu0 0.0
    %1356 = vmatprep.subr.mxu0 0.0
    %1357 = vmatpush1.msra.mxu0 0.0
    %1358 = vmatprep.subr.mxu0 0.0
    %1359 = vmatpush1.msra.mxu0 0.0
    %1360 = vmatprep.subr.mxu0 0.0
    %1361 = vmatpush1.msra.mxu0 %v1142
    %1362 = vmatprep.subr.mxu0 0.0
    %1363 = vmatpush2.msra.mxu0 0.0
    %1364 = vmatprep.subr.mxu0 0.0
    %1365 = vmatpush2.msra.mxu0 0.0
    %1366 = vmatprep.subr.mxu0 0.0
    %1367 = vmatpush2.msra.mxu0 0.0
    %1368 = vmatprep.subr.mxu0 0.0
    %1369 = vmatpush2.msra.mxu0 0.0
    %1370 = vmatprep.subr.mxu0 0.0
    %1371 = vmatpush2.msra.mxu0 0.0
    %1372 = vmatprep.subr.mxu0 0.0
    %1373 = vmatpush2.msra.mxu0 0.0
    %1374 = vmatprep.subr.mxu0 0.0
    %1375 = vmatpush2.msra.mxu0 0.0
    %1376 = vmatprep.subr.mxu0 0.0
    %1377 = vmatpush2.msra.mxu0 0.0
    %1378 = vmatprep.subr.mxu0 0.0
    %1379 = vmatpush2.msra.mxu0 0.0
    %1380 = vmatprep.subr.mxu0 0.0
    %1381 = vmatpush2.msra.mxu0 0.0
    %1382 = vmatprep.subr.mxu0 0.0
    %1383 = vmatpush2.msra.mxu0 0.0
    %1384 = vmatprep.subr.mxu0 0.0
    %1385 = vmatpush2.msra.mxu0 0.0
    %1386 = vmatprep.subr.mxu0 0.0
    %1387 = vmatpush2.msra.mxu0 0.0
    %1388 = vmatprep.subr.mxu0 0.0
    %1389 = vmatpush2.msra.mxu0 0.0
    %1390 = vmatprep.subr.mxu0 0.0
    %1391 = vmatpush2.msra.mxu0 0.0
    %1392 = vmatprep.subr.mxu0 0.0
    %1393 = vmatpush2.msra.mxu0 0.0
    %1394 = vmatprep.mubr.f32.mxu0 0.0
    %1395 = vmatmul.mubr.f32.gmra.mxu0 %v1328
    %v1396 = vpop.f32.mrf.mxu0
    %v1397 = vadd.f32 0.0, %v1396
    %v1398 = vpop.f32.mrf.mxu0
    %1399 = vdwg.mxu0
    %1400 = vxpose.xlu0.b32.start [1/16] %v1274, 128
    %1401 = vxpose.xlu0.b32.cont [2/16] 0.0, 128
    %1402 = vxpose.xlu0.b32.cont [3/16] 0.0, 128
    %1403 = vxpose.xlu0.b32.cont [4/16] 0.0, 128
    %1404 = vxpose.xlu0.b32.cont [5/16] 0.0, 128
    %1405 = vxpose.xlu0.b32.cont [6/16] 0.0, 128
    %1406 = vxpose.xlu0.b32.cont [7/16] 0.0, 128
    %1407 = vxpose.xlu0.b32.cont [8/16] 0.0, 128
    %1408 = vxpose.xlu0.b32.cont [9/16] 0.0, 128
    %1409 = vxpose.xlu0.b32.cont [10/16] 0.0, 128
    %1410 = vxpose.xlu0.b32.cont [11/16] 0.0, 128
    %1411 = vxpose.xlu0.b32.cont [12/16] 0.0, 128
    %1412 = vxpose.xlu0.b32.cont [13/16] 0.0, 128
    %1413 = vxpose.xlu0.b32.cont [14/16] 0.0, 128
    %1414 = vxpose.xlu0.b32.cont [15/16] 0.0, 128
    %1415 = vxpose.xlu0.b32.end [16/16] 0.0, 128
    %v1416 = vpop.trf.xlu0
    %v1417 = vpop.trf.xlu0
    %v1418 = vpop.trf.xlu0
    %v1419 = vpop.trf.xlu0
    %v1420 = vpop.trf.xlu0
    %v1421 = vpop.trf.xlu0
    %v1422 = vpop.trf.xlu0
    %v1423 = vpop.trf.xlu0
    %v1424 = vpop.trf.xlu0
    %v1425 = vpop.trf.xlu0
    %v1426 = vpop.trf.xlu0
    %v1427 = vpop.trf.xlu0
    %v1428 = vpop.trf.xlu0
    %v1429 = vpop.trf.xlu0
    %v1430 = vpop.trf.xlu0
    %v1431 = vpop.trf.xlu0
    %v1433 = vsel %vm224, %v1416, 0
    %1435 = vmatprep.subr.mxu0 0.0
    %1436 = vmatpush1.msra.mxu0 0.0
    %1437 = vmatprep.subr.mxu0 0.0
    %1438 = vmatpush1.msra.mxu0 0.0
    %1439 = vmatprep.subr.mxu0 0.0
    %1440 = vmatpush1.msra.mxu0 0.0
    %1441 = vmatprep.subr.mxu0 0.0
    %1442 = vmatpush1.msra.mxu0 0.0
    %1443 = vmatprep.subr.mxu0 0.0
    %1444 = vmatpush1.msra.mxu0 0.0
    %1445 = vmatprep.subr.mxu0 0.0
    %1446 = vmatpush1.msra.mxu0 0.0
    %1447 = vmatprep.subr.mxu0 0.0
    %1448 = vmatpush1.msra.mxu0 0.0
    %1449 = vmatprep.subr.mxu0 0.0
    %1450 = vmatpush1.msra.mxu0 0.0
    %1451 = vmatprep.subr.mxu0 0.0
    %1452 = vmatpush1.msra.mxu0 0.0
    %1453 = vmatprep.subr.mxu0 0.0
    %1454 = vmatpush1.msra.mxu0 0.0
    %1455 = vmatprep.subr.mxu0 0.0
    %1456 = vmatpush1.msra.mxu0 0.0
    %1457 = vmatprep.subr.mxu0 0.0
    %1458 = vmatpush1.msra.mxu0 0.0
    %1459 = vmatprep.subr.mxu0 0.0
    %1460 = vmatpush1.msra.mxu0 0.0
    %1461 = vmatprep.subr.mxu0 0.0
    %1462 = vmatpush1.msra.mxu0 0.0
    %1463 = vmatprep.subr.mxu0 0.0
    %1464 = vmatpush1.msra.mxu0 0.0
    %1465 = vmatprep.subr.mxu0 0.0
    %1466 = vmatpush1.msra.mxu0 %v1147
    %1467 = vmatprep.subr.mxu0 0.0
    %1468 = vmatpush2.msra.mxu0 0.0
    %1469 = vmatprep.subr.mxu0 0.0
    %1470 = vmatpush2.msra.mxu0 0.0
    %1471 = vmatprep.subr.mxu0 0.0
    %1472 = vmatpush2.msra.mxu0 0.0
    %1473 = vmatprep.subr.mxu0 0.0
    %1474 = vmatpush2.msra.mxu0 0.0
    %1475 = vmatprep.subr.mxu0 0.0
    %1476 = vmatpush2.msra.mxu0 0.0
    %1477 = vmatprep.subr.mxu0 0.0
    %1478 = vmatpush2.msra.mxu0 0.0
    %1479 = vmatprep.subr.mxu0 0.0
    %1480 = vmatpush2.msra.mxu0 0.0
    %1481 = vmatprep.subr.mxu0 0.0
    %1482 = vmatpush2.msra.mxu0 0.0
    %1483 = vmatprep.subr.mxu0 0.0
    %1484 = vmatpush2.msra.mxu0 0.0
    %1485 = vmatprep.subr.mxu0 0.0
    %1486 = vmatpush2.msra.mxu0 0.0
    %1487 = vmatprep.subr.mxu0 0.0
    %1488 = vmatpush2.msra.mxu0 0.0
    %1489 = vmatprep.subr.mxu0 0.0
    %1490 = vmatpush2.msra.mxu0 0.0
    %1491 = vmatprep.subr.mxu0 0.0
    %1492 = vmatpush2.msra.mxu0 0.0
    %1493 = vmatprep.subr.mxu0 0.0
    %1494 = vmatpush2.msra.mxu0 0.0
    %1495 = vmatprep.subr.mxu0 0.0
    %1496 = vmatpush2.msra.mxu0 0.0
    %1497 = vmatprep.subr.mxu0 0.0
    %1498 = vmatpush2.msra.mxu0 0.0
    %1499 = vmatprep.mubr.f32.mxu0 0.0
    %1500 = vmatmul.mubr.f32.gmra.mxu0 %v1433
    %v1501 = vpop.f32.mrf.mxu0
    %v1502 = vadd.f32 0.0, %v1501
    %v1503 = vpop.f32.mrf.mxu0
    %1504 = vdwg.mxu0
    %1505 = vxpose.xlu0.b32.start [1/16] %v1279, 128
    %1506 = vxpose.xlu0.b32.cont [2/16] 0.0, 128
    %1507 = vxpose.xlu0.b32.cont [3/16] 0.0, 128
    %1508 = vxpose.xlu0.b32.cont [4/16] 0.0, 128
    %1509 = vxpose.xlu0.b32.cont [5/16] 0.0, 128
    %1510 = vxpose.xlu0.b32.cont [6/16] 0.0, 128
    %1511 = vxpose.xlu0.b32.cont [7/16] 0.0, 128
    %1512 = vxpose.xlu0.b32.cont [8/16] 0.0, 128
    %1513 = vxpose.xlu0.b32.cont [9/16] 0.0, 128
    %1514 = vxpose.xlu0.b32.cont [10/16] 0.0, 128
    %1515 = vxpose.xlu0.b32.cont [11/16] 0.0, 128
    %1516 = vxpose.xlu0.b32.cont [12/16] 0.0, 128
    %1517 = vxpose.xlu0.b32.cont [13/16] 0.0, 128
    %1518 = vxpose.xlu0.b32.cont [14/16] 0.0, 128
    %1519 = vxpose.xlu0.b32.cont [15/16] 0.0, 128
    %1520 = vxpose.xlu0.b32.end [16/16] 0.0, 128
    %v1521 = vpop.trf.xlu0
    %v1522 = vpop.trf.xlu0
    %v1523 = vpop.trf.xlu0
    %v1524 = vpop.trf.xlu0
    %v1525 = vpop.trf.xlu0
    %v1526 = vpop.trf.xlu0
    %v1527 = vpop.trf.xlu0
    %v1528 = vpop.trf.xlu0
    %v1529 = vpop.trf.xlu0
    %v1530 = vpop.trf.xlu0
    %v1531 = vpop.trf.xlu0
    %v1532 = vpop.trf.xlu0
    %v1533 = vpop.trf.xlu0
    %v1534 = vpop.trf.xlu0
    %v1535 = vpop.trf.xlu0
    %v1536 = vpop.trf.xlu0
    %v1538 = vsel %vm224, %v1521, 0
    %1540 = vmatprep.subr.mxu0 0.0
    %1541 = vmatpush1.msra.mxu0 0.0
    %1542 = vmatprep.subr.mxu0 0.0
    %1543 = vmatpush1.msra.mxu0 0.0
    %1544 = vmatprep.subr.mxu0 0.0
    %1545 = vmatpush1.msra.mxu0 0.0
    %1546 = vmatprep.subr.mxu0 0.0
    %1547 = vmatpush1.msra.mxu0 0.0
    %1548 = vmatprep.subr.mxu0 0.0
    %1549 = vmatpush1.msra.mxu0 0.0
    %1550 = vmatprep.subr.mxu0 0.0
    %1551 = vmatpush1.msra.mxu0 0.0
    %1552 = vmatprep.subr.mxu0 0.0
    %1553 = vmatpush1.msra.mxu0 0.0
    %1554 = vmatprep.subr.mxu0 0.0
    %1555 = vmatpush1.msra.mxu0 0.0
    %1556 = vmatprep.subr.mxu0 0.0
    %1557 = vmatpush1.msra.mxu0 0.0
    %1558 = vmatprep.subr.mxu0 0.0
    %1559 = vmatpush1.msra.mxu0 0.0
    %1560 = vmatprep.subr.mxu0 0.0
    %1561 = vmatpush1.msra.mxu0 0.0
    %1562 = vmatprep.subr.mxu0 0.0
    %1563 = vmatpush1.msra.mxu0 0.0
    %1564 = vmatprep.subr.mxu0 0.0
    %1565 = vmatpush1.msra.mxu0 0.0
    %1566 = vmatprep.subr.mxu0 0.0
    %1567 = vmatpush1.msra.mxu0 0.0
    %1568 = vmatprep.subr.mxu0 0.0
    %1569 = vmatpush1.msra.mxu0 0.0
    %1570 = vmatprep.subr.mxu0 0.0
    %1571 = vmatpush1.msra.mxu0 %v1152
    %1572 = vmatprep.subr.mxu0 0.0
    %1573 = vmatpush2.msra.mxu0 0.0
    %1574 = vmatprep.subr.mxu0 0.0
    %1575 = vmatpush2.msra.mxu0 0.0
    %1576 = vmatprep.subr.mxu0 0.0
    %1577 = vmatpush2.msra.mxu0 0.0
    %1578 = vmatprep.subr.mxu0 0.0
    %1579 = vmatpush2.msra.mxu0 0.0
    %1580 = vmatprep.subr.mxu0 0.0
    %1581 = vmatpush2.msra.mxu0 0.0
    %1582 = vmatprep.subr.mxu0 0.0
    %1583 = vmatpush2.msra.mxu0 0.0
    %1584 = vmatprep.subr.mxu0 0.0
    %1585 = vmatpush2.msra.mxu0 0.0
    %1586 = vmatprep.subr.mxu0 0.0
    %1587 = vmatpush2.msra.mxu0 0.0
    %1588 = vmatprep.subr.mxu0 0.0
    %1589 = vmatpush2.msra.mxu0 0.0
    %1590 = vmatprep.subr.mxu0 0.0
    %1591 = vmatpush2.msra.mxu0 0.0
    %1592 = vmatprep.subr.mxu0 0.0
    %1593 = vmatpush2.msra.mxu0 0.0
    %1594 = vmatprep.subr.mxu0 0.0
    %1595 = vmatpush2.msra.mxu0 0.0
    %1596 = vmatprep.subr.mxu0 0.0
    %1597 = vmatpush2.msra.mxu0 0.0
    %1598 = vmatprep.subr.mxu0 0.0
    %1599 = vmatpush2.msra.mxu0 0.0
    %1600 = vmatprep.subr.mxu0 0.0
    %1601 = vmatpush2.msra.mxu0 0.0
    %1602 = vmatprep.subr.mxu0 0.0
    %1603 = vmatpush2.msra.mxu0 0.0
    %1604 = vmatprep.mubr.f32.mxu0 0.0
    %1605 = vmatmul.mubr.f32.gmra.mxu0 %v1538
    %v1606 = vpop.f32.mrf.mxu0
    %v1607 = vadd.f32 0.0, %v1606
    %v1608 = vpop.f32.mrf.mxu0
    %1609 = vdwg.mxu0
    %1610 = vxpose.xlu0.b32.start [1/16] %v1284, 128
    %1611 = vxpose.xlu0.b32.cont [2/16] 0.0, 128
    %1612 = vxpose.xlu0.b32.cont [3/16] 0.0, 128
    %1613 = vxpose.xlu0.b32.cont [4/16] 0.0, 128
    %1614 = vxpose.xlu0.b32.cont [5/16] 0.0, 128
    %1615 = vxpose.xlu0.b32.cont [6/16] 0.0, 128
    %1616 = vxpose.xlu0.b32.cont [7/16] 0.0, 128
    %1617 = vxpose.xlu0.b32.cont [8/16] 0.0, 128
    %1618 = vxpose.xlu0.b32.cont [9/16] 0.0, 128
    %1619 = vxpose.xlu0.b32.cont [10/16] 0.0, 128
    %1620 = vxpose.xlu0.b32.cont [11/16] 0.0, 128
    %1621 = vxpose.xlu0.b32.cont [12/16] 0.0, 128
    %1622 = vxpose.xlu0.b32.cont [13/16] 0.0, 128
    %1623 = vxpose.xlu0.b32.cont [14/16] 0.0, 128
    %1624 = vxpose.xlu0.b32.cont [15/16] 0.0, 128
    %1625 = vxpose.xlu0.b32.end [16/16] 0.0, 128
    %v1626 = vpop.trf.xlu0
    %v1627 = vpop.trf.xlu0
    %v1628 = vpop.trf.xlu0
    %v1629 = vpop.trf.xlu0
    %v1630 = vpop.trf.xlu0
    %v1631 = vpop.trf.xlu0
    %v1632 = vpop.trf.xlu0
    %v1633 = vpop.trf.xlu0
    %v1634 = vpop.trf.xlu0
    %v1635 = vpop.trf.xlu0
    %v1636 = vpop.trf.xlu0
    %v1637 = vpop.trf.xlu0
    %v1638 = vpop.trf.xlu0
    %v1639 = vpop.trf.xlu0
    %v1640 = vpop.trf.xlu0
    %v1641 = vpop.trf.xlu0
    %v1643 = vsel %vm224, %v1626, 0
    %1645 = vmatprep.subr.mxu0 0.0
    %1646 = vmatpush1.msra.mxu0 0.0
    %1647 = vmatprep.subr.mxu0 0.0
    %1648 = vmatpush1.msra.mxu0 0.0
    %1649 = vmatprep.subr.mxu0 0.0
    %1650 = vmatpush1.msra.mxu0 0.0
    %1651 = vmatprep.subr.mxu0 0.0
    %1652 = vmatpush1.msra.mxu0 0.0
    %1653 = vmatprep.subr.mxu0 0.0
    %1654 = vmatpush1.msra.mxu0 0.0
    %1655 = vmatprep.subr.mxu0 0.0
    %1656 = vmatpush1.msra.mxu0 0.0
    %1657 = vmatprep.subr.mxu0 0.0
    %1658 = vmatpush1.msra.mxu0 0.0
    %1659 = vmatprep.subr.mxu0 0.0
    %1660 = vmatpush1.msra.mxu0 0.0
    %1661 = vmatprep.subr.mxu0 0.0
    %1662 = vmatpush1.msra.mxu0 0.0
    %1663 = vmatprep.subr.mxu0 0.0
    %1664 = vmatpush1.msra.mxu0 0.0
    %1665 = vmatprep.subr.mxu0 0.0
    %1666 = vmatpush1.msra.mxu0 0.0
    %1667 = vmatprep.subr.mxu0 0.0
    %1668 = vmatpush1.msra.mxu0 0.0
    %1669 = vmatprep.subr.mxu0 0.0
    %1670 = vmatpush1.msra.mxu0 0.0
    %1671 = vmatprep.subr.mxu0 0.0
    %1672 = vmatpush1.msra.mxu0 0.0
    %1673 = vmatprep.subr.mxu0 0.0
    %1674 = vmatpush1.msra.mxu0 0.0
    %1675 = vmatprep.subr.mxu0 0.0
    %1676 = vmatpush1.msra.mxu0 %v1157
    %1677 = vmatprep.subr.mxu0 0.0
    %1678 = vmatpush2.msra.mxu0 0.0
    %1679 = vmatprep.subr.mxu0 0.0
    %1680 = vmatpush2.msra.mxu0 0.0
    %1681 = vmatprep.subr.mxu0 0.0
    %1682 = vmatpush2.msra.mxu0 0.0
    %1683 = vmatprep.subr.mxu0 0.0
    %1684 = vmatpush2.msra.mxu0 0.0
    %1685 = vmatprep.subr.mxu0 0.0
    %1686 = vmatpush2.msra.mxu0 0.0
    %1687 = vmatprep.subr.mxu0 0.0
    %1688 = vmatpush2.msra.mxu0 0.0
    %1689 = vmatprep.subr.mxu0 0.0
    %1690 = vmatpush2.msra.mxu0 0.0
    %1691 = vmatprep.subr.mxu0 0.0
    %1692 = vmatpush2.msra.mxu0 0.0
    %1693 = vmatprep.subr.mxu0 0.0
    %1694 = vmatpush2.msra.mxu0 0.0
    %1695 = vmatprep.subr.mxu0 0.0
    %1696 = vmatpush2.msra.mxu0 0.0
    %1697 = vmatprep.subr.mxu0 0.0
    %1698 = vmatpush2.msra.mxu0 0.0
    %1699 = vmatprep.subr.mxu0 0.0
    %1700 = vmatpush2.msra.mxu0 0.0
    %1701 = vmatprep.subr.mxu0 0.0
    %1702 = vmatpush2.msra.mxu0 0.0
    %1703 = vmatprep.subr.mxu0 0.0
    %1704 = vmatpush2.msra.mxu0 0.0
    %1705 = vmatprep.subr.mxu0 0.0
    %1706 = vmatpush2.msra.mxu0 0.0
    %1707 = vmatprep.subr.mxu0 0.0
    %1708 = vmatpush2.msra.mxu0 0.0
    %1709 = vmatprep.mubr.f32.mxu0 0.0
    %1710 = vmatmul.mubr.f32.gmra.mxu0 %v1643
    %v1711 = vpop.f32.mrf.mxu0
    %v1712 = vadd.f32 0.0, %v1711
    %v1713 = vpop.f32.mrf.mxu0
    %1714 = vdwg.mxu0
    %v1715 = vadd.f32 %v1397, %v1287
    %v1716 = vadd.f32 %v1502, %v1288
    %v1717 = vadd.f32 %v1607, %v1289
    %v1718 = vadd.f32 %v1712, %v1290
    %v1719 = vsel %vm978, %v1715, -inf
    %1720 = vmax.xlane.f32.xlu0 %v1719
    %v1721 = vpop.xlane.xlu0 %1720
    %v1722 = vsel %vm978, %v1716, -inf
    %1723 = vmax.xlane.f32.xlu0 %v1722
    %v1724 = vpop.xlane.xlu0 %1723
    %v1725 = vsel %vm978, %v1717, -inf
    %1726 = vmax.xlane.f32.xlu0 %v1725
    %v1727 = vpop.xlane.xlu0 %1726
    %v1728 = vsel %vm978, %v1718, -inf
    %1729 = vmax.xlane.f32.xlu0 %v1728
    %v1730 = vpop.xlane.xlu0 %1729
    %v1731 = vsub.f32 %v1715, %v1721
    %v1732 = vsub.f32 %v1716, %v1724
    %v1733 = vsub.f32 %v1717, %v1727
    %v1734 = vsub.f32 %v1718, %v1730
    %v1735 = vmul.f32 %v1731, 1.442695
    %v1736 = vpow.pop %v1735
    %v1737 = vmul.f32 %v1732, 1.442695
    %v1738 = vpow.pop %v1737
    %v1739 = vmul.f32 %v1733, 1.442695
    %v1740 = vpow.pop %v1739
    %v1741 = vmul.f32 %v1734, 1.442695
    %v1742 = vpow.pop %v1741
    %v1743 = vsel %vm978, %v1736, 0.0
    %1744 = vadd.xlane.f32.xlu0 %v1743
    %v1745 = vpop.xlane.xlu0 %1744
    %v1746 = vsel %vm978, %v1738, 0.0
    %1747 = vadd.xlane.f32.xlu0 %v1746
    %v1748 = vpop.xlane.xlu0 %1747
    %v1749 = vsel %vm978, %v1740, 0.0
    %1750 = vadd.xlane.f32.xlu0 %v1749
    %v1751 = vpop.xlane.xlu0 %1750
    %v1752 = vsel %vm978, %v1742, 0.0
    %1753 = vadd.xlane.f32.xlu0 %v1752
    %v1754 = vpop.xlane.xlu0 %1753
    %v1755 = vrcp.pop %v1745
    %v1756 = vmul.f32 %v1736, %v1755
    %v1757 = vrcp.pop %v1748
    %v1758 = vmul.f32 %v1738, %v1757
    %v1759 = vrcp.pop %v1751
    %v1760 = vmul.f32 %v1740, %v1759
    %v1761 = vrcp.pop %v1754
    %v1762 = vmul.f32 %v1742, %v1761
    %v1764 = vsel %vm978, %v1756, 0
    %v1767 = vsel %vm978, %v1142, 0
    %1769 = vmatprep.subr.mxu0 0.0
    %1770 = vmatpush1.xpose.msra.mxu0 0.0
    %1771 = vmatprep.subr.mxu0 0.0
    %1772 = vmatpush1.xpose.msra.mxu0 0.0
    %1773 = vmatprep.subr.mxu0 0.0
    %1774 = vmatpush1.xpose.msra.mxu0 0.0
    %1775 = vmatprep.subr.mxu0 0.0
    %1776 = vmatpush1.xpose.msra.mxu0 0.0
    %1777 = vmatprep.subr.mxu0 0.0
    %1778 = vmatpush1.xpose.msra.mxu0 0.0
    %1779 = vmatprep.subr.mxu0 0.0
    %1780 = vmatpush1.xpose.msra.mxu0 0.0
    %1781 = vmatprep.subr.mxu0 0.0
    %1782 = vmatpush1.xpose.msra.mxu0 0.0
    %1783 = vmatprep.subr.mxu0 0.0
    %1784 = vmatpush1.xpose.msra.mxu0 0.0
    %1785 = vmatprep.subr.mxu0 0.0
    %1786 = vmatpush1.xpose.msra.mxu0 0.0
    %1787 = vmatprep.subr.mxu0 0.0
    %1788 = vmatpush1.xpose.msra.mxu0 0.0
    %1789 = vmatprep.subr.mxu0 0.0
    %1790 = vmatpush1.xpose.msra.mxu0 0.0
    %1791 = vmatprep.subr.mxu0 0.0
    %1792 = vmatpush1.xpose.msra.mxu0 0.0
    %1793 = vmatprep.subr.mxu0 0.0
    %1794 = vmatpush1.xpose.msra.mxu0 0.0
    %1795 = vmatprep.subr.mxu0 0.0
    %1796 = vmatpush1.xpose.msra.mxu0 0.0
    %1797 = vmatprep.subr.mxu0 0.0
    %1798 = vmatpush1.xpose.msra.mxu0 0.0
    %1799 = vmatprep.subr.mxu0 0.0
    %1800 = vmatpush1.xpose.msra.mxu0 %v1767
    %1801 = vmatprep.subr.mxu0 0.0
    %1802 = vmatpush2.xpose.msra.mxu0 0.0
    %1803 = vmatprep.subr.mxu0 0.0
    %1804 = vmatpush2.xpose.msra.mxu0 0.0
    %1805 = vmatprep.subr.mxu0 0.0
    %1806 = vmatpush2.xpose.msra.mxu0 0.0
    %1807 = vmatprep.subr.mxu0 0.0
    %1808 = vmatpush2.xpose.msra.mxu0 0.0
    %1809 = vmatprep.subr.mxu0 0.0
    %1810 = vmatpush2.xpose.msra.mxu0 0.0
    %1811 = vmatprep.subr.mxu0 0.0
    %1812 = vmatpush2.xpose.msra.mxu0 0.0
    %1813 = vmatprep.subr.mxu0 0.0
    %1814 = vmatpush2.xpose.msra.mxu0 0.0
    %1815 = vmatprep.subr.mxu0 0.0
    %1816 = vmatpush2.xpose.msra.mxu0 0.0
    %1817 = vmatprep.subr.mxu0 0.0
    %1818 = vmatpush2.xpose.msra.mxu0 0.0
    %1819 = vmatprep.subr.mxu0 0.0
    %1820 = vmatpush2.xpose.msra.mxu0 0.0
    %1821 = vmatprep.subr.mxu0 0.0
    %1822 = vmatpush2.xpose.msra.mxu0 0.0
    %1823 = vmatprep.subr.mxu0 0.0
    %1824 = vmatpush2.xpose.msra.mxu0 0.0
    %1825 = vmatprep.subr.mxu0 0.0
    %1826 = vmatpush2.xpose.msra.mxu0 0.0
    %1827 = vmatprep.subr.mxu0 0.0
    %1828 = vmatpush2.xpose.msra.mxu0 0.0
    %1829 = vmatprep.subr.mxu0 0.0
    %1830 = vmatpush2.xpose.msra.mxu0 0.0
    %1831 = vmatprep.subr.mxu0 0.0
    %1832 = vmatpush2.xpose.msra.mxu0 0.0
    %1833 = vmatprep.mubr.f32.mxu0 0.0
    %1834 = vmatmul.mubr.f32.gmra.mxu0 %v1764
    %v1835 = vpop.f32.mrf.mxu0
    %v1836 = vadd.f32 0.0, %v1835
    %v1837 = vpop.f32.mrf.mxu0
    %1838 = vdwg.mxu0
    %v1840 = vsel %vm978, %v1758, 0
    %v1843 = vsel %vm978, %v1147, 0
    %1845 = vmatprep.subr.mxu0 0.0
    %1846 = vmatpush1.xpose.msra.mxu0 0.0
    %1847 = vmatprep.subr.mxu0 0.0
    %1848 = vmatpush1.xpose.msra.mxu0 0.0
    %1849 = vmatprep.subr.mxu0 0.0
    %1850 = vmatpush1.xpose.msra.mxu0 0.0
    %1851 = vmatprep.subr.mxu0 0.0
    %1852 = vmatpush1.xpose.msra.mxu0 0.0
    %1853 = vmatprep.subr.mxu0 0.0
    %1854 = vmatpush1.xpose.msra.mxu0 0.0
    %1855 = vmatprep.subr.mxu0 0.0
    %1856 = vmatpush1.xpose.msra.mxu0 0.0
    %1857 = vmatprep.subr.mxu0 0.0
    %1858 = vmatpush1.xpose.msra.mxu0 0.0
    %1859 = vmatprep.subr.mxu0 0.0
    %1860 = vmatpush1.xpose.msra.mxu0 0.0
    %1861 = vmatprep.subr.mxu0 0.0
    %1862 = vmatpush1.xpose.msra.mxu0 0.0
    %1863 = vmatprep.subr.mxu0 0.0
    %1864 = vmatpush1.xpose.msra.mxu0 0.0
    %1865 = vmatprep.subr.mxu0 0.0
    %1866 = vmatpush1.xpose.msra.mxu0 0.0
    %1867 = vmatprep.subr.mxu0 0.0
    %1868 = vmatpush1.xpose.msra.mxu0 0.0
    %1869 = vmatprep.subr.mxu0 0.0
    %1870 = vmatpush1.xpose.msra.mxu0 0.0
    %1871 = vmatprep.subr.mxu0 0.0
    %1872 = vmatpush1.xpose.msra.mxu0 0.0
    %1873 = vmatprep.subr.mxu0 0.0
    %1874 = vmatpush1.xpose.msra.mxu0 0.0
    %1875 = vmatprep.subr.mxu0 0.0
    %1876 = vmatpush1.xpose.msra.mxu0 %v1843
    %1877 = vmatprep.subr.mxu0 0.0
    %1878 = vmatpush2.xpose.msra.mxu0 0.0
    %1879 = vmatprep.subr.mxu0 0.0
    %1880 = vmatpush2.xpose.msra.mxu0 0.0
    %1881 = vmatprep.subr.mxu0 0.0
    %1882 = vmatpush2.xpose.msra.mxu0 0.0
    %1883 = vmatprep.subr.mxu0 0.0
    %1884 = vmatpush2.xpose.msra.mxu0 0.0
    %1885 = vmatprep.subr.mxu0 0.0
    %1886 = vmatpush2.xpose.msra.mxu0 0.0
    %1887 = vmatprep.subr.mxu0 0.0
    %1888 = vmatpush2.xpose.msra.mxu0 0.0
    %1889 = vmatprep.subr.mxu0 0.0
    %1890 = vmatpush2.xpose.msra.mxu0 0.0
    %1891 = vmatprep.subr.mxu0 0.0
    %1892 = vmatpush2.xpose.msra.mxu0 0.0
    %1893 = vmatprep.subr.mxu0 0.0
    %1894 = vmatpush2.xpose.msra.mxu0 0.0
    %1895 = vmatprep.subr.mxu0 0.0
    %1896 = vmatpush2.xpose.msra.mxu0 0.0
    %1897 = vmatprep.subr.mxu0 0.0
    %1898 = vmatpush2.xpose.msra.mxu0 0.0
    %1899 = vmatprep.subr.mxu0 0.0
    %1900 = vmatpush2.xpose.msra.mxu0 0.0
    %1901 = vmatprep.subr.mxu0 0.0
    %1902 = vmatpush2.xpose.msra.mxu0 0.0
    %1903 = vmatprep.subr.mxu0 0.0
    %1904 = vmatpush2.xpose.msra.mxu0 0.0
    %1905 = vmatprep.subr.mxu0 0.0
    %1906 = vmatpush2.xpose.msra.mxu0 0.0
    %1907 = vmatprep.subr.mxu0 0.0
    %1908 = vmatpush2.xpose.msra.mxu0 0.0
    %1909 = vmatprep.mubr.f32.mxu0 0.0
    %1910 = vmatmul.mubr.f32.gmra.mxu0 %v1840
    %v1911 = vpop.f32.mrf.mxu0
    %v1912 = vadd.f32 0.0, %v1911
    %v1913 = vpop.f32.mrf.mxu0
    %1914 = vdwg.mxu0
    %v1916 = vsel %vm978, %v1760, 0
    %v1919 = vsel %vm978, %v1152, 0
    %1921 = vmatprep.subr.mxu0 0.0
    %1922 = vmatpush1.xpose.msra.mxu0 0.0
    %1923 = vmatprep.subr.mxu0 0.0
    %1924 = vmatpush1.xpose.msra.mxu0 0.0
    %1925 = vmatprep.subr.mxu0 0.0
    %1926 = vmatpush1.xpose.msra.mxu0 0.0
    %1927 = vmatprep.subr.mxu0 0.0
    %1928 = vmatpush1.xpose.msra.mxu0 0.0
    %1929 = vmatprep.subr.mxu0 0.0
    %1930 = vmatpush1.xpose.msra.mxu0 0.0
    %1931 = vmatprep.subr.mxu0 0.0
    %1932 = vmatpush1.xpose.msra.mxu0 0.0
    %1933 = vmatprep.subr.mxu0 0.0
    %1934 = vmatpush1.xpose.msra.mxu0 0.0
    %1935 = vmatprep.subr.mxu0 0.0
    %1936 = vmatpush1.xpose.msra.mxu0 0.0
    %1937 = vmatprep.subr.mxu0 0.0
    %1938 = vmatpush1.xpose.msra.mxu0 0.0
    %1939 = vmatprep.subr.mxu0 0.0
    %1940 = vmatpush1.xpose.msra.mxu0 0.0
    %1941 = vmatprep.subr.mxu0 0.0
    %1942 = vmatpush1.xpose.msra.mxu0 0.0
    %1943 = vmatprep.subr.mxu0 0.0
    %1944 = vmatpush1.xpose.msra.mxu0 0.0
    %1945 = vmatprep.subr.mxu0 0.0
    %1946 = vmatpush1.xpose.msra.mxu0 0.0
    %1947 = vmatprep.subr.mxu0 0.0
    %1948 = vmatpush1.xpose.msra.mxu0 0.0
    %1949 = vmatprep.subr.mxu0 0.0
    %1950 = vmatpush1.xpose.msra.mxu0 0.0
    %1951 = vmatprep.subr.mxu0 0.0
    %1952 = vmatpush1.xpose.msra.mxu0 %v1919
    %1953 = vmatprep.subr.mxu0 0.0
    %1954 = vmatpush2.xpose.msra.mxu0 0.0
    %1955 = vmatprep.subr.mxu0 0.0
    %1956 = vmatpush2.xpose.msra.mxu0 0.0
    %1957 = vmatprep.subr.mxu0 0.0
    %1958 = vmatpush2.xpose.msra.mxu0 0.0
    %1959 = vmatprep.subr.mxu0 0.0
    %1960 = vmatpush2.xpose.msra.mxu0 0.0
    %1961 = vmatprep.subr.mxu0 0.0
    %1962 = vmatpush2.xpose.msra.mxu0 0.0
    %1963 = vmatprep.subr.mxu0 0.0
    %1964 = vmatpush2.xpose.msra.mxu0 0.0
    %1965 = vmatprep.subr.mxu0 0.0
    %1966 = vmatpush2.xpose.msra.mxu0 0.0
    %1967 = vmatprep.subr.mxu0 0.0
    %1968 = vmatpush2.xpose.msra.mxu0 0.0
    %1969 = vmatprep.subr.mxu0 0.0
    %1970 = vmatpush2.xpose.msra.mxu0 0.0
    %1971 = vmatprep.subr.mxu0 0.0
    %1972 = vmatpush2.xpose.msra.mxu0 0.0
    %1973 = vmatprep.subr.mxu0 0.0
    %1974 = vmatpush2.xpose.msra.mxu0 0.0
    %1975 = vmatprep.subr.mxu0 0.0
    %1976 = vmatpush2.xpose.msra.mxu0 0.0
    %1977 = vmatprep.subr.mxu0 0.0
    %1978 = vmatpush2.xpose.msra.mxu0 0.0
    %1979 = vmatprep.subr.mxu0 0.0
    %1980 = vmatpush2.xpose.msra.mxu0 0.0
    %1981 = vmatprep.subr.mxu0 0.0
    %1982 = vmatpush2.xpose.msra.mxu0 0.0
    %1983 = vmatprep.subr.mxu0 0.0
    %1984 = vmatpush2.xpose.msra.mxu0 0.0
    %1985 = vmatprep.mubr.f32.mxu0 0.0
    %1986 = vmatmul.mubr.f32.gmra.mxu0 %v1916
    %v1987 = vpop.f32.mrf.mxu0
    %v1988 = vadd.f32 0.0, %v1987
    %v1989 = vpop.f32.mrf.mxu0
    %1990 = vdwg.mxu0
    %v1992 = vsel %vm978, %v1762, 0
    %v1995 = vsel %vm978, %v1157, 0
    %1997 = vmatprep.subr.mxu0 0.0
    %1998 = vmatpush1.xpose.msra.mxu0 0.0
    %1999 = vmatprep.subr.mxu0 0.0
    %2000 = vmatpush1.xpose.msra.mxu0 0.0
    %2001 = vmatprep.subr.mxu0 0.0
    %2002 = vmatpush1.xpose.msra.mxu0 0.0
    %2003 = vmatprep.subr.mxu0 0.0
    %2004 = vmatpush1.xpose.msra.mxu0 0.0
    %2005 = vmatprep.subr.mxu0 0.0
    %2006 = vmatpush1.xpose.msra.mxu0 0.0
    %2007 = vmatprep.subr.mxu0 0.0
    %2008 = vmatpush1.xpose.msra.mxu0 0.0
    %2009 = vmatprep.subr.mxu0 0.0
    %2010 = vmatpush1.xpose.msra.mxu0 0.0
    %2011 = vmatprep.subr.mxu0 0.0
    %2012 = vmatpush1.xpose.msra.mxu0 0.0
    %2013 = vmatprep.subr.mxu0 0.0
    %2014 = vmatpush1.xpose.msra.mxu0 0.0
    %2015 = vmatprep.subr.mxu0 0.0
    %2016 = vmatpush1.xpose.msra.mxu0 0.0
    %2017 = vmatprep.subr.mxu0 0.0
    %2018 = vmatpush1.xpose.msra.mxu0 0.0
    %2019 = vmatprep.subr.mxu0 0.0
    %2020 = vmatpush1.xpose.msra.mxu0 0.0
    %2021 = vmatprep.subr.mxu0 0.0
    %2022 = vmatpush1.xpose.msra.mxu0 0.0
    %2023 = vmatprep.subr.mxu0 0.0
    %2024 = vmatpush1.xpose.msra.mxu0 0.0
    %2025 = vmatprep.subr.mxu0 0.0
    %2026 = vmatpush1.xpose.msra.mxu0 0.0
    %2027 = vmatprep.subr.mxu0 0.0
    %2028 = vmatpush1.xpose.msra.mxu0 %v1995
    %2029 = vmatprep.subr.mxu0 0.0
    %2030 = vmatpush2.xpose.msra.mxu0 0.0
    %2031 = vmatprep.subr.mxu0 0.0
    %2032 = vmatpush2.xpose.msra.mxu0 0.0
    %2033 = vmatprep.subr.mxu0 0.0
    %2034 = vmatpush2.xpose.msra.mxu0 0.0
    %2035 = vmatprep.subr.mxu0 0.0
    %2036 = vmatpush2.xpose.msra.mxu0 0.0
    %2037 = vmatprep.subr.mxu0 0.0
    %2038 = vmatpush2.xpose.msra.mxu0 0.0
    %2039 = vmatprep.subr.mxu0 0.0
    %2040 = vmatpush2.xpose.msra.mxu0 0.0
    %2041 = vmatprep.subr.mxu0 0.0
    %2042 = vmatpush2.xpose.msra.mxu0 0.0
    %2043 = vmatprep.subr.mxu0 0.0
    %2044 = vmatpush2.xpose.msra.mxu0 0.0
    %2045 = vmatprep.subr.mxu0 0.0
    %2046 = vmatpush2.xpose.msra.mxu0 0.0
    %2047 = vmatprep.subr.mxu0 0.0
    %2048 = vmatpush2.xpose.msra.mxu0 0.0
    %2049 = vmatprep.subr.mxu0 0.0
    %2050 = vmatpush2.xpose.msra.mxu0 0.0
    %2051 = vmatprep.subr.mxu0 0.0
    %2052 = vmatpush2.xpose.msra.mxu0 0.0
    %2053 = vmatprep.subr.mxu0 0.0
    %2054 = vmatpush2.xpose.msra.mxu0 0.0
    %2055 = vmatprep.subr.mxu0 0.0
    %2056 = vmatpush2.xpose.msra.mxu0 0.0
    %2057 = vmatprep.subr.mxu0 0.0
    %2058 = vmatpush2.xpose.msra.mxu0 0.0
    %2059 = vmatprep.subr.mxu0 0.0
    %2060 = vmatpush2.xpose.msra.mxu0 0.0
    %2061 = vmatprep.mubr.f32.mxu0 0.0
    %2062 = vmatmul.mubr.f32.gmra.mxu0 %v1992
    %v2063 = vpop.f32.mrf.mxu0
    %v2064 = vadd.f32 0.0, %v2063
    %v2065 = vpop.f32.mrf.mxu0
    %2066 = vdwg.mxu0
    %2068 = vrot.lane.b32.xlu0 %v1912, 8
    %v2069 = vpop.permute.xlu0 %2068
    %2072 = vrot.lane.b32.xlu0 %v1988, 16
    %v2073 = vpop.permute.xlu0 %2072
    %2076 = vrot.lane.b32.xlu0 %v2064, 24
    %v2077 = vpop.permute.xlu0 %2076
    %v2079 = vsel %vm224, %v1836, %v2069
    %v2080 = vsel %vm978, %v2079, %v2073
    %v2081 = vsel %vm980, %v2080, %v2077
    %v2083 = vsel %vm19, %v2081, 0
    %2085 = vmatprep.subr.mxu0 0.0
    %2086 = vmatpush1.msra.mxu0 0.0
    %2087 = vmatprep.subr.mxu0 0.0
    %2088 = vmatpush1.msra.mxu0 0.0
    %2089 = vmatprep.subr.mxu0 0.0
    %2090 = vmatpush1.msra.mxu0 0.0
    %2091 = vmatprep.subr.mxu0 0.0
    %2092 = vmatpush1.msra.mxu0 0.0
    %2093 = vmatprep.subr.mxu0 0.0
    %2094 = vmatpush1.msra.mxu0 0.0
    %2095 = vmatprep.subr.mxu0 0.0
    %2096 = vmatpush1.msra.mxu0 0.0
    %2097 = vmatprep.subr.mxu0 0.0
    %2098 = vmatpush1.msra.mxu0 0.0
    %2099 = vmatprep.subr.mxu0 0.0
    %2100 = vmatpush1.msra.mxu0 0.0
    %2101 = vmatprep.subr.mxu0 0.0
    %2102 = vmatpush1.msra.mxu0 0.0
    %2103 = vmatprep.subr.mxu0 0.0
    %2104 = vmatpush1.msra.mxu0 0.0
    %2105 = vmatprep.subr.mxu0 0.0
    %2106 = vmatpush1.msra.mxu0 0.0
    %2107 = vmatprep.subr.mxu0 0.0
    %2108 = vmatpush1.msra.mxu0 0.0
    %2109 = vmatprep.subr.mxu0 0.0
    %2110 = vmatpush1.msra.mxu0 %v1294
    %2111 = vmatprep.subr.mxu0 0.0
    %2112 = vmatpush1.msra.mxu0 %v1293
    %2113 = vmatprep.subr.mxu0 0.0
    %2114 = vmatpush1.msra.mxu0 %v1292
    %2115 = vmatprep.subr.mxu0 0.0
    %2116 = vmatpush1.msra.mxu0 %v1291
    %2117 = vmatprep.subr.mxu0 0.0
    %2118 = vmatpush2.msra.mxu0 0.0
    %2119 = vmatprep.subr.mxu0 0.0
    %2120 = vmatpush2.msra.mxu0 0.0
    %2121 = vmatprep.subr.mxu0 0.0
    %2122 = vmatpush2.msra.mxu0 0.0
    %2123 = vmatprep.subr.mxu0 0.0
    %2124 = vmatpush2.msra.mxu0 0.0
    %2125 = vmatprep.subr.mxu0 0.0
    %2126 = vmatpush2.msra.mxu0 0.0
    %2127 = vmatprep.subr.mxu0 0.0
    %2128 = vmatpush2.msra.mxu0 0.0
    %2129 = vmatprep.subr.mxu0 0.0
    %2130 = vmatpush2.msra.mxu0 0.0
    %2131 = vmatprep.subr.mxu0 0.0
    %2132 = vmatpush2.msra.mxu0 0.0
    %2133 = vmatprep.subr.mxu0 0.0
    %2134 = vmatpush2.msra.mxu0 0.0
    %2135 = vmatprep.subr.mxu0 0.0
    %2136 = vmatpush2.msra.mxu0 0.0
    %2137 = vmatprep.subr.mxu0 0.0
    %2138 = vmatpush2.msra.mxu0 0.0
    %2139 = vmatprep.subr.mxu0 0.0
    %2140 = vmatpush2.msra.mxu0 0.0
    %2141 = vmatprep.subr.mxu0 0.0
    %2142 = vmatpush2.msra.mxu0 0.0
    %2143 = vmatprep.subr.mxu0 0.0
    %2144 = vmatpush2.msra.mxu0 0.0
    %2145 = vmatprep.subr.mxu0 0.0
    %2146 = vmatpush2.msra.mxu0 0.0
    %2147 = vmatprep.subr.mxu0 0.0
    %2148 = vmatpush2.msra.mxu0 0.0
    %2149 = vmatprep.mubr.f32.mxu0 0.0
    %2150 = vmatmul.mubr.f32.gmra.mxu0 %v2083
    %v2151 = vpop.f32.mrf.mxu0
    %v2152 = vadd.f32 %v1052, %v2151
    %v2153 = vpop.f32.mrf.mxu0
    %2154 = vdwg.mxu0
    %2155 = vst.msk [vmem:[%s4] sm:$0xff] %vm978, %v1756
    %2156 = vst.msk [vmem:[%s4 + $0x8] sm:$0xff] %vm978, %v1758
    %2157 = vst.msk [vmem:[%s4 + $0x10] sm:$0xff] %vm978, %v1760
    %2158 = vst.msk [vmem:[%s4 + $0x18] sm:$0xff] %vm978, %v1762
    %s2159 = scalar_lea.vmem %s0, 104
    %v2160 = vld [vmem:[%s2159] sm:$0xff]
    %v2161 = vsel %vm19, %v2160, 0.0
    %2162 = vadd.xlane.f32.xlu0 %v2161
    %v2163 = vpop.xlane.xlu0 %2162
    %v2164 = vmul.f32 %v2163, %v23
    %v2165 = vsub.f32 %v2160, %v2164
    %v2166 = vmul.f32 %v2165, %v2165
    %v2167 = vsel %vm19, %v2166, 0.0
    %2168 = vadd.xlane.f32.xlu0 %v2167
    %v2169 = vpop.xlane.xlu0 %2168
    %v2170 = vmul.f32 %v2169, %v23
    %v2171 = vadd.f32 %v2170, 1e-05
    %v2172 = vrsqrt.pop %v2171
    %v2173 = vmul.f32 %v2165, %v2172
    %v2174 = vmul.f32 %v2173, %v37
    %v2175 = vadd.f32 %v2174, %v42
    %v2176 = vld [vmem:[%s1] sm:$0xff]
    %v2177 = vld [vmem:[%s1 + $0x8] sm:$0xff]
    %v2178 = vld [vmem:[%s1 + $0x10] sm:$0xff]
    %v2179 = vld [vmem:[%s1 + $0x18] sm:$0xff]
    %v2180 = vld [vmem:[%s1 + $0x20] sm:$0xff]
    %v2181 = vld [vmem:[%s1 + $0x28] sm:$0xff]
    %v2182 = vld [vmem:[%s1 + $0x30] sm:$0xff]
    %v2183 = vld [vmem:[%s1 + $0x38] sm:$0xff]
    %v2185 = vsel %vm19, %v2176, 0
    %v2188 = vsel %vm19, %v2177, 0
    %v2191 = vsel %vm19, %v2178, 0
    %v2194 = vsel %vm19, %v2179, 0
    %v2197 = vsel %vm19, %v2180, 0
    %v2200 = vsel %vm19, %v2181, 0
    %v2203 = vsel %vm19, %v2182, 0
    %v2206 = vsel %vm19, %v2183, 0
    %v2209 = vsel %vm19, %v2175, 0
    %2211 = vmatprep.subr.mxu0 0.0
    %2212 = vmatpush1.xpose.msra.mxu0 0.0
    %2213 = vmatprep.subr.mxu0 0.0
    %2214 = vmatpush1.xpose.msra.mxu0 0.0
    %2215 = vmatprep.subr.mxu0 0.0
    %2216 = vmatpush1.xpose.msra.mxu0 0.0
    %2217 = vmatprep.subr.mxu0 0.0
    %2218 = vmatpush1.xpose.msra.mxu0 0.0
    %2219 = vmatprep.subr.mxu0 0.0
    %2220 = vmatpush1.xpose.msra.mxu0 0.0
    %2221 = vmatprep.subr.mxu0 0.0
    %2222 = vmatpush1.xpose.msra.mxu0 0.0
    %2223 = vmatprep.subr.mxu0 0.0
    %2224 = vmatpush1.xpose.msra.mxu0 0.0
    %2225 = vmatprep.subr.mxu0 0.0
    %2226 = vmatpush1.xpose.msra.mxu0 0.0
    %2227 = vmatprep.subr.mxu0 0.0
    %2228 = vmatpush1.xpose.msra.mxu0 0.0
    %2229 = vmatprep.subr.mxu0 0.0
    %2230 = vmatpush1.xpose.msra.mxu0 0.0
    %2231 = vmatprep.subr.mxu0 0.0
    %2232 = vmatpush1.xpose.msra.mxu0 0.0
    %2233 = vmatprep.subr.mxu0 0.0
    %2234 = vmatpush1.xpose.msra.mxu0 0.0
    %2235 = vmatprep.subr.mxu0 0.0
    %2236 = vmatpush1.xpose.msra.mxu0 0.0
    %2237 = vmatprep.subr.mxu0 0.0
    %2238 = vmatpush1.xpose.msra.mxu0 0.0
    %2239 = vmatprep.subr.mxu0 0.0
    %2240 = vmatpush1.xpose.msra.mxu0 0.0
    %2241 = vmatprep.subr.mxu0 0.0
    %2242 = vmatpush1.xpose.msra.mxu0 %v2209
    %2243 = vmatprep.subr.mxu0 0.0
    %2244 = vmatpush2.xpose.msra.mxu0 0.0
    %2245 = vmatprep.subr.mxu0 0.0
    %2246 = vmatpush2.xpose.msra.mxu0 0.0
    %2247 = vmatprep.subr.mxu0 0.0
    %2248 = vmatpush2.xpose.msra.mxu0 0.0
    %2249 = vmatprep.subr.mxu0 0.0
    %2250 = vmatpush2.xpose.msra.mxu0 0.0
    %2251 = vmatprep.subr.mxu0 0.0
    %2252 = vmatpush2.xpose.msra.mxu0 0.0
    %2253 = vmatprep.subr.mxu0 0.0
    %2254 = vmatpush2.xpose.msra.mxu0 0.0
    %2255 = vmatprep.subr.mxu0 0.0
    %2256 = vmatpush2.xpose.msra.mxu0 0.0
    %2257 = vmatprep.subr.mxu0 0.0
    %2258 = vmatpush2.xpose.msra.mxu0 0.0
    %2259 = vmatprep.subr.mxu0 0.0
    %2260 = vmatpush2.xpose.msra.mxu0 0.0
    %2261 = vmatprep.subr.mxu0 0.0
    %2262 = vmatpush2.xpose.msra.mxu0 0.0
    %2263 = vmatprep.subr.mxu0 0.0
    %2264 = vmatpush2.xpose.msra.mxu0 0.0
    %2265 = vmatprep.subr.mxu0 0.0
    %2266 = vmatpush2.xpose.msra.mxu0 0.0
    %2267 = vmatprep.subr.mxu0 0.0
    %2268 = vmatpush2.xpose.msra.mxu0 0.0
    %2269 = vmatprep.subr.mxu0 0.0
    %2270 = vmatpush2.xpose.msra.mxu0 0.0
    %2271 = vmatprep.subr.mxu0 0.0
    %2272 = vmatpush2.xpose.msra.mxu0 0.0
    %2273 = vmatprep.subr.mxu0 0.0
    %2274 = vmatpush2.xpose.msra.mxu0 0.0
    %2275 = vmatprep.mubr.f32.mxu0 0.0
    %2276 = vmatmul.mubr.f32.gmra.mxu0 %v2185
    %v2277 = vpop.f32.mrf.mxu0
    %v2278 = vadd.f32 0.0, %v2277
    %v2279 = vpop.f32.mrf.mxu0
    %2280 = vmatprep.mubr.f32.mxu0 0.0
    %2281 = vmatmul.mubr.f32.gmra.mxu0 %v2188
    %v2282 = vpop.f32.mrf.mxu0
    %v2283 = vadd.f32 0.0, %v2282
    %v2284 = vpop.f32.mrf.mxu0
    %2285 = vmatprep.mubr.f32.mxu0 0.0
    %2286 = vmatmul.mubr.f32.gmra.mxu0 %v2191
    %v2287 = vpop.f32.mrf.mxu0
    %v2288 = vadd.f32 0.0, %v2287
    %v2289 = vpop.f32.mrf.mxu0
    %2290 = vmatprep.mubr.f32.mxu0 0.0
    %2291 = vmatmul.mubr.f32.gmra.mxu0 %v2194
    %v2292 = vpop.f32.mrf.mxu0
    %v2293 = vadd.f32 0.0, %v2292
    %v2294 = vpop.f32.mrf.mxu0
    %2295 = vmatprep.mubr.f32.mxu0 0.0
    %2296 = vmatmul.mubr.f32.gmra.mxu0 %v2197
    %v2297 = vpop.f32.mrf.mxu0
    %v2298 = vadd.f32 0.0, %v2297
    %v2299 = vpop.f32.mrf.mxu0
    %2300 = vmatprep.mubr.f32.mxu0 0.0
    %2301 = vmatmul.mubr.f32.gmra.mxu0 %v2200
    %v2302 = vpop.f32.mrf.mxu0
    %v2303 = vadd.f32 0.0, %v2302
    %v2304 = vpop.f32.mrf.mxu0
    %2305 = vmatprep.mubr.f32.mxu0 0.0
    %2306 = vmatmul.mubr.f32.gmra.mxu0 %v2203
    %v2307 = vpop.f32.mrf.mxu0
    %v2308 = vadd.f32 0.0, %v2307
    %v2309 = vpop.f32.mrf.mxu0
    %2310 = vmatprep.mubr.f32.mxu0 0.0
    %2311 = vmatmul.mubr.f32.gmra.mxu0 %v2206
    %v2312 = vpop.f32.mrf.mxu0
    %v2313 = vadd.f32 0.0, %v2312
    %v2314 = vpop.f32.mrf.mxu0
    %2315 = vdwg.mxu0
    %v2316 = vld [vmem:[%s2159 + $0x28] sm:$0xff]
    %v2317 = vld [vmem:[%s2159 + $0x30] sm:$0xff]
    %v2318 = vld [vmem:[%s2159 + $0x38] sm:$0xff]
    %v2319 = vld [vmem:[%s2159 + $0x40] sm:$0xff]
    %v2320 = vld [vmem:[%s1 + $0x40] sm:$0xff]
    %v2321 = vld [vmem:[%s1 + $0x48] sm:$0xff]
    %v2322 = vld [vmem:[%s1 + $0x50] sm:$0xff]
    %v2323 = vld [vmem:[%s1 + $0x58] sm:$0xff]
    %2324 = vxpose.xlu0.b32.start [1/16] %v2278, 128
    %2325 = vxpose.xlu0.b32.cont [2/16] 0.0, 128
    %2326 = vxpose.xlu0.b32.cont [3/16] 0.0, 128
    %2327 = vxpose.xlu0.b32.cont [4/16] 0.0, 128
    %2328 = vxpose.xlu0.b32.cont [5/16] 0.0, 128
    %2329 = vxpose.xlu0.b32.cont [6/16] 0.0, 128
    %2330 = vxpose.xlu0.b32.cont [7/16] 0.0, 128
    %2331 = vxpose.xlu0.b32.cont [8/16] 0.0, 128
    %2332 = vxpose.xlu0.b32.cont [9/16] 0.0, 128
    %2333 = vxpose.xlu0.b32.cont [10/16] 0.0, 128
    %2334 = vxpose.xlu0.b32.cont [11/16] 0.0, 128
    %2335 = vxpose.xlu0.b32.cont [12/16] 0.0, 128
    %2336 = vxpose.xlu0.b32.cont [13/16] 0.0, 128
    %2337 = vxpose.xlu0.b32.cont [14/16] 0.0, 128
    %2338 = vxpose.xlu0.b32.cont [15/16] 0.0, 128
    %2339 = vxpose.xlu0.b32.end [16/16] 0.0, 128
    %v2340 = vpop.trf.xlu0
    %v2341 = vpop.trf.xlu0
    %v2342 = vpop.trf.xlu0
    %v2343 = vpop.trf.xlu0
    %v2344 = vpop.trf.xlu0
    %v2345 = vpop.trf.xlu0
    %v2346 = vpop.trf.xlu0
    %v2347 = vpop.trf.xlu0
    %v2348 = vpop.trf.xlu0
    %v2349 = vpop.trf.xlu0
    %v2350 = vpop.trf.xlu0
    %v2351 = vpop.trf.xlu0
    %v2352 = vpop.trf.xlu0
    %v2353 = vpop.trf.xlu0
    %v2354 = vpop.trf.xlu0
    %v2355 = vpop.trf.xlu0
    %v2357 = vsel %vm224, %v2340, 0
    %2359 = vmatprep.subr.mxu0 0.0
    %2360 = vmatpush1.msra.mxu0 0.0
    %2361 = vmatprep.subr.mxu0 0.0
    %2362 = vmatpush1.msra.mxu0 0.0
    %2363 = vmatprep.subr.mxu0 0.0
    %2364 = vmatpush1.msra.mxu0 0.0
    %2365 = vmatprep.subr.mxu0 0.0
    %2366 = vmatpush1.msra.mxu0 0.0
    %2367 = vmatprep.subr.mxu0 0.0
    %2368 = vmatpush1.msra.mxu0 0.0
    %2369 = vmatprep.subr.mxu0 0.0
    %2370 = vmatpush1.msra.mxu0 0.0
    %2371 = vmatprep.subr.mxu0 0.0
    %2372 = vmatpush1.msra.mxu0 0.0
    %2373 = vmatprep.subr.mxu0 0.0
    %2374 = vmatpush1.msra.mxu0 0.0
    %2375 = vmatprep.subr.mxu0 0.0
    %2376 = vmatpush1.msra.mxu0 0.0
    %2377 = vmatprep.subr.mxu0 0.0
    %2378 = vmatpush1.msra.mxu0 0.0
    %2379 = vmatprep.subr.mxu0 0.0
    %2380 = vmatpush1.msra.mxu0 0.0
    %2381 = vmatprep.subr.mxu0 0.0
    %2382 = vmatpush1.msra.mxu0 0.0
    %2383 = vmatprep.subr.mxu0 0.0
    %2384 = vmatpush1.msra.mxu0 0.0
    %2385 = vmatprep.subr.mxu0 0.0
    %2386 = vmatpush1.msra.mxu0 0.0
    %2387 = vmatprep.subr.mxu0 0.0
    %2388 = vmatpush1.msra.mxu0 0.0
    %2389 = vmatprep.subr.mxu0 0.0
    %2390 = vmatpush1.msra.mxu0 %v2298
    %2391 = vmatprep.subr.mxu0 0.0
    %2392 = vmatpush2.msra.mxu0 0.0
    %2393 = vmatprep.subr.mxu0 0.0
    %2394 = vmatpush2.msra.mxu0 0.0
    %2395 = vmatprep.subr.mxu0 0.0
    %2396 = vmatpush2.msra.mxu0 0.0
    %2397 = vmatprep.subr.mxu0 0.0
    %2398 = vmatpush2.msra.mxu0 0.0
    %2399 = vmatprep.subr.mxu0 0.0
    %2400 = vmatpush2.msra.mxu0 0.0
    %2401 = vmatprep.subr.mxu0 0.0
    %2402 = vmatpush2.msra.mxu0 0.0
    %2403 = vmatprep.subr.mxu0 0.0
    %2404 = vmatpush2.msra.mxu0 0.0
    %2405 = vmatprep.subr.mxu0 0.0
    %2406 = vmatpush2.msra.mxu0 0.0
    %2407 = vmatprep.subr.mxu0 0.0
    %2408 = vmatpush2.msra.mxu0 0.0
    %2409 = vmatprep.subr.mxu0 0.0
    %2410 = vmatpush2.msra.mxu0 0.0
    %2411 = vmatprep.subr.mxu0 0.0
    %2412 = vmatpush2.msra.mxu0 0.0
    %2413 = vmatprep.subr.mxu0 0.0
    %2414 = vmatpush2.msra.mxu0 0.0
    %2415 = vmatprep.subr.mxu0 0.0
    %2416 = vmatpush2.msra.mxu0 0.0
    %2417 = vmatprep.subr.mxu0 0.0
    %2418 = vmatpush2.msra.mxu0 0.0
    %2419 = vmatprep.subr.mxu0 0.0
    %2420 = vmatpush2.msra.mxu0 0.0
    %2421 = vmatprep.subr.mxu0 0.0
    %2422 = vmatpush2.msra.mxu0 0.0
    %2423 = vmatprep.mubr.f32.mxu0 0.0
    %2424 = vmatmul.mubr.f32.gmra.mxu0 %v2357
    %v2425 = vpop.f32.mrf.mxu0
    %v2426 = vadd.f32 0.0, %v2425
    %v2427 = vpop.f32.mrf.mxu0
    %2428 = vdwg.mxu0
    %2429 = vxpose.xlu0.b32.start [1/16] %v2283, 128
    %2430 = vxpose.xlu0.b32.cont [2/16] 0.0, 128
    %2431 = vxpose.xlu0.b32.cont [3/16] 0.0, 128
    %2432 = vxpose.xlu0.b32.cont [4/16] 0.0, 128
    %2433 = vxpose.xlu0.b32.cont [5/16] 0.0, 128
    %2434 = vxpose.xlu0.b32.cont [6/16] 0.0, 128
    %2435 = vxpose.xlu0.b32.cont [7/16] 0.0, 128
    %2436 = vxpose.xlu0.b32.cont [8/16] 0.0, 128
    %2437 = vxpose.xlu0.b32.cont [9/16] 0.0, 128
    %2438 = vxpose.xlu0.b32.cont [10/16] 0.0, 128
    %2439 = vxpose.xlu0.b32.cont [11/16] 0.0, 128
    %2440 = vxpose.xlu0.b32.cont [12/16] 0.0, 128
    %2441 = vxpose.xlu0.b32.cont [13/16] 0.0, 128
    %2442 = vxpose.xlu0.b32.cont [14/16] 0.0, 128
    %2443 = vxpose.xlu0.b32.cont [15/16] 0.0, 128
    %2444 = vxpose.xlu0.b32.end [16/16] 0.0, 128
    %v2445 = vpop.trf.xlu0
    %v2446 = vpop.trf.xlu0
    %v2447 = vpop.trf.xlu0
    %v2448 = vpop.trf.xlu0
    %v2449 = vpop.trf.xlu0
    %v2450 = vpop.trf.xlu0
    %v2451 = vpop.trf.xlu0
    %v2452 = vpop.trf.xlu0
    %v2453 = vpop.trf.xlu0
    %v2454 = vpop.trf.xlu0
    %v2455 = vpop.trf.xlu0
    %v2456 = vpop.trf.xlu0
    %v2457 = vpop.trf.xlu0
    %v2458 = vpop.trf.xlu0
    %v2459 = vpop.trf.xlu0
    %v2460 = vpop.trf.xlu0
    %v2462 = vsel %vm224, %v2445, 0
    %2464 = vmatprep.subr.mxu0 0.0
    %2465 = vmatpush1.msra.mxu0 0.0
    %2466 = vmatprep.subr.mxu0 0.0
    %2467 = vmatpush1.msra.mxu0 0.0
    %2468 = vmatprep.subr.mxu0 0.0
    %2469 = vmatpush1.msra.mxu0 0.0
    %2470 = vmatprep.subr.mxu0 0.0
    %2471 = vmatpush1.msra.mxu0 0.0
    %2472 = vmatprep.subr.mxu0 0.0
    %2473 = vmatpush1.msra.mxu0 0.0
    %2474 = vmatprep.subr.mxu0 0.0
    %2475 = vmatpush1.msra.mxu0 0.0
    %2476 = vmatprep.subr.mxu0 0.0
    %2477 = vmatpush1.msra.mxu0 0.0
    %2478 = vmatprep.subr.mxu0 0.0
    %2479 = vmatpush1.msra.mxu0 0.0
    %2480 = vmatprep.subr.mxu0 0.0
    %2481 = vmatpush1.msra.mxu0 0.0
    %2482 = vmatprep.subr.mxu0 0.0
    %2483 = vmatpush1.msra.mxu0 0.0
    %2484 = vmatprep.subr.mxu0 0.0
    %2485 = vmatpush1.msra.mxu0 0.0
    %2486 = vmatprep.subr.mxu0 0.0
    %2487 = vmatpush1.msra.mxu0 0.0
    %2488 = vmatprep.subr.mxu0 0.0
    %2489 = vmatpush1.msra.mxu0 0.0
    %2490 = vmatprep.subr.mxu0 0.0
    %2491 = vmatpush1.msra.mxu0 0.0
    %2492 = vmatprep.subr.mxu0 0.0
    %2493 = vmatpush1.msra.mxu0 0.0
    %2494 = vmatprep.subr.mxu0 0.0
    %2495 = vmatpush1.msra.mxu0 %v2303
    %2496 = vmatprep.subr.mxu0 0.0
    %2497 = vmatpush2.msra.mxu0 0.0
    %2498 = vmatprep.subr.mxu0 0.0
    %2499 = vmatpush2.msra.mxu0 0.0
    %2500 = vmatprep.subr.mxu0 0.0
    %2501 = vmatpush2.msra.mxu0 0.0
    %2502 = vmatprep.subr.mxu0 0.0
    %2503 = vmatpush2.msra.mxu0 0.0
    %2504 = vmatprep.subr.mxu0 0.0
    %2505 = vmatpush2.msra.mxu0 0.0
    %2506 = vmatprep.subr.mxu0 0.0
    %2507 = vmatpush2.msra.mxu0 0.0
    %2508 = vmatprep.subr.mxu0 0.0
    %2509 = vmatpush2.msra.mxu0 0.0
    %2510 = vmatprep.subr.mxu0 0.0
    %2511 = vmatpush2.msra.mxu0 0.0
    %2512 = vmatprep.subr.mxu0 0.0
    %2513 = vmatpush2.msra.mxu0 0.0
    %2514 = vmatprep.subr.mxu0 0.0
    %2515 = vmatpush2.msra.mxu0 0.0
    %2516 = vmatprep.subr.mxu0 0.0
    %2517 = vmatpush2.msra.mxu0 0.0
    %2518 = vmatprep.subr.mxu0 0.0
    %2519 = vmatpush2.msra.mxu0 0.0
    %2520 = vmatprep.subr.mxu0 0.0
    %2521 = vmatpush2.msra.mxu0 0.0
    %2522 = vmatprep.subr.mxu0 0.0
    %2523 = vmatpush2.msra.mxu0 0.0
    %2524 = vmatprep.subr.mxu0 0.0
    %2525 = vmatpush2.msra.mxu0 0.0
    %2526 = vmatprep.subr.mxu0 0.0
    %2527 = vmatpush2.msra.mxu0 0.0
    %2528 = vmatprep.mubr.f32.mxu0 0.0
    %2529 = vmatmul.mubr.f32.gmra.mxu0 %v2462
    %v2530 = vpop.f32.mrf.mxu0
    %v2531 = vadd.f32 0.0, %v2530
    %v2532 = vpop.f32.mrf.mxu0
    %2533 = vdwg.mxu0
    %2534 = vxpose.xlu0.b32.start [1/16] %v2288, 128
    %2535 = vxpose.xlu0.b32.cont [2/16] 0.0, 128
    %2536 = vxpose.xlu0.b32.cont [3/16] 0.0, 128
    %2537 = vxpose.xlu0.b32.cont [4/16] 0.0, 128
    %2538 = vxpose.xlu0.b32.cont [5/16] 0.0, 128
    %2539 = vxpose.xlu0.b32.cont [6/16] 0.0, 128
    %2540 = vxpose.xlu0.b32.cont [7/16] 0.0, 128
    %2541 = vxpose.xlu0.b32.cont [8/16] 0.0, 128
    %2542 = vxpose.xlu0.b32.cont [9/16] 0.0, 128
    %2543 = vxpose.xlu0.b32.cont [10/16] 0.0, 128
    %2544 = vxpose.xlu0.b32.cont [11/16] 0.0, 128
    %2545 = vxpose.xlu0.b32.cont [12/16] 0.0, 128
    %2546 = vxpose.xlu0.b32.cont [13/16] 0.0, 128
    %2547 = vxpose.xlu0.b32.cont [14/16] 0.0, 128
    %2548 = vxpose.xlu0.b32.cont [15/16] 0.0, 128
    %2549 = vxpose.xlu0.b32.end [16/16] 0.0, 128
    %v2550 = vpop.trf.xlu0
    %v2551 = vpop.trf.xlu0
    %v2552 = vpop.trf.xlu0
    %v2553 = vpop.trf.xlu0
    %v2554 = vpop.trf.xlu0
    %v2555 = vpop.trf.xlu0
    %v2556 = vpop.trf.xlu0
    %v2557 = vpop.trf.xlu0
    %v2558 = vpop.trf.xlu0
    %v2559 = vpop.trf.xlu0
    %v2560 = vpop.trf.xlu0
    %v2561 = vpop.trf.xlu0
    %v2562 = vpop.trf.xlu0
    %v2563 = vpop.trf.xlu0
    %v2564 = vpop.trf.xlu0
    %v2565 = vpop.trf.xlu0
    %v2567 = vsel %vm224, %v2550, 0
    %2569 = vmatprep.subr.mxu0 0.0
    %2570 = vmatpush1.msra.mxu0 0.0
    %2571 = vmatprep.subr.mxu0 0.0
    %2572 = vmatpush1.msra.mxu0 0.0
    %2573 = vmatprep.subr.mxu0 0.0
    %2574 = vmatpush1.msra.mxu0 0.0
    %2575 = vmatprep.subr.mxu0 0.0
    %2576 = vmatpush1.msra.mxu0 0.0
    %2577 = vmatprep.subr.mxu0 0.0
    %2578 = vmatpush1.msra.mxu0 0.0
    %2579 = vmatprep.subr.mxu0 0.0
    %2580 = vmatpush1.msra.mxu0 0.0
    %2581 = vmatprep.subr.mxu0 0.0
    %2582 = vmatpush1.msra.mxu0 0.0
    %2583 = vmatprep.subr.mxu0 0.0
    %2584 = vmatpush1.msra.mxu0 0.0
    %2585 = vmatprep.subr.mxu0 0.0
    %2586 = vmatpush1.msra.mxu0 0.0
    %2587 = vmatprep.subr.mxu0 0.0
    %2588 = vmatpush1.msra.mxu0 0.0
    %2589 = vmatprep.subr.mxu0 0.0
    %2590 = vmatpush1.msra.mxu0 0.0
    %2591 = vmatprep.subr.mxu0 0.0
    %2592 = vmatpush1.msra.mxu0 0.0
    %2593 = vmatprep.subr.mxu0 0.0
    %2594 = vmatpush1.msra.mxu0 0.0
    %2595 = vmatprep.subr.mxu0 0.0
    %2596 = vmatpush1.msra.mxu0 0.0
    %2597 = vmatprep.subr.mxu0 0.0
    %2598 = vmatpush1.msra.mxu0 0.0
    %2599 = vmatprep.subr.mxu0 0.0
    %2600 = vmatpush1.msra.mxu0 %v2308
    %2601 = vmatprep.subr.mxu0 0.0
    %2602 = vmatpush2.msra.mxu0 0.0
    %2603 = vmatprep.subr.mxu0 0.0
    %2604 = vmatpush2.msra.mxu0 0.0
    %2605 = vmatprep.subr.mxu0 0.0
    %2606 = vmatpush2.msra.mxu0 0.0
    %2607 = vmatprep.subr.mxu0 0.0
    %2608 = vmatpush2.msra.mxu0 0.0
    %2609 = vmatprep.subr.mxu0 0.0
    %2610 = vmatpush2.msra.mxu0 0.0
    %2611 = vmatprep.subr.mxu0 0.0
    %2612 = vmatpush2.msra.mxu0 0.0
    %2613 = vmatprep.subr.mxu0 0.0
    %2614 = vmatpush2.msra.mxu0 0.0
    %2615 = vmatprep.subr.mxu0 0.0
    %2616 = vmatpush2.msra.mxu0 0.0
    %2617 = vmatprep.subr.mxu0 0.0
    %2618 = vmatpush2.msra.mxu0 0.0
    %2619 = vmatprep.subr.mxu0 0.0
    %2620 = vmatpush2.msra.mxu0 0.0
    %2621 = vmatprep.subr.mxu0 0.0
    %2622 = vmatpush2.msra.mxu0 0.0
    %2623 = vmatprep.subr.mxu0 0.0
    %2624 = vmatpush2.msra.mxu0 0.0
    %2625 = vmatprep.subr.mxu0 0.0
    %2626 = vmatpush2.msra.mxu0 0.0
    %2627 = vmatprep.subr.mxu0 0.0
    %2628 = vmatpush2.msra.mxu0 0.0
    %2629 = vmatprep.subr.mxu0 0.0
    %2630 = vmatpush2.msra.mxu0 0.0
    %2631 = vmatprep.subr.mxu0 0.0
    %2632 = vmatpush2.msra.mxu0 0.0
    %2633 = vmatprep.mubr.f32.mxu0 0.0
    %2634 = vmatmul.mubr.f32.gmra.mxu0 %v2567
    %v2635 = vpop.f32.mrf.mxu0
    %v2636 = vadd.f32 0.0, %v2635
    %v2637 = vpop.f32.mrf.mxu0
    %2638 = vdwg.mxu0
    %2639 = vxpose.xlu0.b32.start [1/16] %v2293, 128
    %2640 = vxpose.xlu0.b32.cont [2/16] 0.0, 128
    %2641 = vxpose.xlu0.b32.cont [3/16] 0.0, 128
    %2642 = vxpose.xlu0.b32.cont [4/16] 0.0, 128
    %2643 = vxpose.xlu0.b32.cont [5/16] 0.0, 128
    %2644 = vxpose.xlu0.b32.cont [6/16] 0.0, 128
    %2645 = vxpose.xlu0.b32.cont [7/16] 0.0, 128
    %2646 = vxpose.xlu0.b32.cont [8/16] 0.0, 128
    %2647 = vxpose.xlu0.b32.cont [9/16] 0.0, 128
    %2648 = vxpose.xlu0.b32.cont [10/16] 0.0, 128
    %2649 = vxpose.xlu0.b32.cont [11/16] 0.0, 128
    %2650 = vxpose.xlu0.b32.cont [12/16] 0.0, 128
    %2651 = vxpose.xlu0.b32.cont [13/16] 0.0, 128
    %2652 = vxpose.xlu0.b32.cont [14/16] 0.0, 128
    %2653 = vxpose.xlu0.b32.cont [15/16] 0.0, 128
    %2654 = vxpose.xlu0.b32.end [16/16] 0.0, 128
    %v2655 = vpop.trf.xlu0
    %v2656 = vpop.trf.xlu0
    %v2657 = vpop.trf.xlu0
    %v2658 = vpop.trf.xlu0
    %v2659 = vpop.trf.xlu0
    %v2660 = vpop.trf.xlu0
    %v2661 = vpop.trf.xlu0
    %v2662 = vpop.trf.xlu0
    %v2663 = vpop.trf.xlu0
    %v2664 = vpop.trf.xlu0
    %v2665 = vpop.trf.xlu0
    %v2666 = vpop.trf.xlu0
    %v2667 = vpop.trf.xlu0
    %v2668 = vpop.trf.xlu0
    %v2669 = vpop.trf.xlu0
    %v2670 = vpop.trf.xlu0
    %v2672 = vsel %vm224, %v2655, 0
    %2674 = vmatprep.subr.mxu0 0.0
    %2675 = vmatpush1.msra.mxu0 0.0
    %2676 = vmatprep.subr.mxu0 0.0
    %2677 = vmatpush1.msra.mxu0 0.0
    %2678 = vmatprep.subr.mxu0 0.0
    %2679 = vmatpush1.msra.mxu0 0.0
    %2680 = vmatprep.subr.mxu0 0.0
    %2681 = vmatpush1.msra.mxu0 0.0
    %2682 = vmatprep.subr.mxu0 0.0
    %2683 = vmatpush1.msra.mxu0 0.0
    %2684 = vmatprep.subr.mxu0 0.0
    %2685 = vmatpush1.msra.mxu0 0.0
    %2686 = vmatprep.subr.mxu0 0.0
    %2687 = vmatpush1.msra.mxu0 0.0
    %2688 = vmatprep.subr.mxu0 0.0
    %2689 = vmatpush1.msra.mxu0 0.0
    %2690 = vmatprep.subr.mxu0 0.0
    %2691 = vmatpush1.msra.mxu0 0.0
    %2692 = vmatprep.subr.mxu0 0.0
    %2693 = vmatpush1.msra.mxu0 0.0
    %2694 = vmatprep.subr.mxu0 0.0
    %2695 = vmatpush1.msra.mxu0 0.0
    %2696 = vmatprep.subr.mxu0 0.0
    %2697 = vmatpush1.msra.mxu0 0.0
    %2698 = vmatprep.subr.mxu0 0.0
    %2699 = vmatpush1.msra.mxu0 0.0
    %2700 = vmatprep.subr.mxu0 0.0
    %2701 = vmatpush1.msra.mxu0 0.0
    %2702 = vmatprep.subr.mxu0 0.0
    %2703 = vmatpush1.msra.mxu0 0.0
    %2704 = vmatprep.subr.mxu0 0.0
    %2705 = vmatpush1.msra.mxu0 %v2313
    %2706 = vmatprep.subr.mxu0 0.0
    %2707 = vmatpush2.msra.mxu0 0.0
    %2708 = vmatprep.subr.mxu0 0.0
    %2709 = vmatpush2.msra.mxu0 0.0
    %2710 = vmatprep.subr.mxu0 0.0
    %2711 = vmatpush2.msra.mxu0 0.0
    %2712 = vmatprep.subr.mxu0 0.0
    %2713 = vmatpush2.msra.mxu0 0.0
    %2714 = vmatprep.subr.mxu0 0.0
    %2715 = vmatpush2.msra.mxu0 0.0
    %2716 = vmatprep.subr.mxu0 0.0
    %2717 = vmatpush2.msra.mxu0 0.0
    %2718 = vmatprep.subr.mxu0 0.0
    %2719 = vmatpush2.msra.mxu0 0.0
    %2720 = vmatprep.subr.mxu0 0.0
    %2721 = vmatpush2.msra.mxu0 0.0
    %2722 = vmatprep.subr.mxu0 0.0
    %2723 = vmatpush2.msra.mxu0 0.0
    %2724 = vmatprep.subr.mxu0 0.0
    %2725 = vmatpush2.msra.mxu0 0.0
    %2726 = vmatprep.subr.mxu0 0.0
    %2727 = vmatpush2.msra.mxu0 0.0
    %2728 = vmatprep.subr.mxu0 0.0
    %2729 = vmatpush2.msra.mxu0 0.0
    %2730 = vmatprep.subr.mxu0 0.0
    %2731 = vmatpush2.msra.mxu0 0.0
    %2732 = vmatprep.subr.mxu0 0.0
    %2733 = vmatpush2.msra.mxu0 0.0
    %2734 = vmatprep.subr.mxu0 0.0
    %2735 = vmatpush2.msra.mxu0 0.0
    %2736 = vmatprep.subr.mxu0 0.0
    %2737 = vmatpush2.msra.mxu0 0.0
    %2738 = vmatprep.mubr.f32.mxu0 0.0
    %2739 = vmatmul.mubr.f32.gmra.mxu0 %v2672
    %v2740 = vpop.f32.mrf.mxu0
    %v2741 = vadd.f32 0.0, %v2740
    %v2742 = vpop.f32.mrf.mxu0
    %2743 = vdwg.mxu0
    %v2744 = vadd.f32 %v2426, %v2316
    %v2745 = vadd.f32 %v2531, %v2317
    %v2746 = vadd.f32 %v2636, %v2318
    %v2747 = vadd.f32 %v2741, %v2319
    %v2748 = vsel %vm224, %v2744, -inf
    %2749 = vmax.xlane.f32.xlu0 %v2748
    %v2750 = vpop.xlane.xlu0 %2749
    %v2751 = vsel %vm224, %v2745, -inf
    %2752 = vmax.xlane.f32.xlu0 %v2751
    %v2753 = vpop.xlane.xlu0 %2752
    %v2754 = vsel %vm224, %v2746, -inf
    %2755 = vmax.xlane.f32.xlu0 %v2754
    %v2756 = vpop.xlane.xlu0 %2755
    %v2757 = vsel %vm224, %v2747, -inf
    %2758 = vmax.xlane.f32.xlu0 %v2757
    %v2759 = vpop.xlane.xlu0 %2758
    %v2760 = vsub.f32 %v2744, %v2750
    %v2761 = vsub.f32 %v2745, %v2753
    %v2762 = vsub.f32 %v2746, %v2756
    %v2763 = vsub.f32 %v2747, %v2759
    %v2764 = vmul.f32 %v2760, 1.442695
    %v2765 = vpow.pop %v2764
    %v2766 = vmul.f32 %v2761, 1.442695
    %v2767 = vpow.pop %v2766
    %v2768 = vmul.f32 %v2762, 1.442695
    %v2769 = vpow.pop %v2768
    %v2770 = vmul.f32 %v2763, 1.442695
    %v2771 = vpow.pop %v2770
    %v2772 = vsel %vm224, %v2765, 0.0
    %2773 = vadd.xlane.f32.xlu0 %v2772
    %v2774 = vpop.xlane.xlu0 %2773
    %v2775 = vsel %vm224, %v2767, 0.0
    %2776 = vadd.xlane.f32.xlu0 %v2775
    %v2777 = vpop.xlane.xlu0 %2776
    %v2778 = vsel %vm224, %v2769, 0.0
    %2779 = vadd.xlane.f32.xlu0 %v2778
    %v2780 = vpop.xlane.xlu0 %2779
    %v2781 = vsel %vm224, %v2771, 0.0
    %2782 = vadd.xlane.f32.xlu0 %v2781
    %v2783 = vpop.xlane.xlu0 %2782
    %v2784 = vrcp.pop %v2774
    %v2785 = vmul.f32 %v2765, %v2784
    %v2786 = vrcp.pop %v2777
    %v2787 = vmul.f32 %v2767, %v2786
    %v2788 = vrcp.pop %v2780
    %v2789 = vmul.f32 %v2769, %v2788
    %v2790 = vrcp.pop %v2783
    %v2791 = vmul.f32 %v2771, %v2790
    %v2793 = vsel %vm224, %v2785, 0
    %v2796 = vsel %vm224, %v2298, 0
    %2798 = vmatprep.subr.mxu0 0.0
    %2799 = vmatpush1.xpose.msra.mxu0 0.0
    %2800 = vmatprep.subr.mxu0 0.0
    %2801 = vmatpush1.xpose.msra.mxu0 0.0
    %2802 = vmatprep.subr.mxu0 0.0
    %2803 = vmatpush1.xpose.msra.mxu0 0.0
    %2804 = vmatprep.subr.mxu0 0.0
    %2805 = vmatpush1.xpose.msra.mxu0 0.0
    %2806 = vmatprep.subr.mxu0 0.0
    %2807 = vmatpush1.xpose.msra.mxu0 0.0
    %2808 = vmatprep.subr.mxu0 0.0
    %2809 = vmatpush1.xpose.msra.mxu0 0.0
    %2810 = vmatprep.subr.mxu0 0.0
    %2811 = vmatpush1.xpose.msra.mxu0 0.0
    %2812 = vmatprep.subr.mxu0 0.0
    %2813 = vmatpush1.xpose.msra.mxu0 0.0
    %2814 = vmatprep.subr.mxu0 0.0
    %2815 = vmatpush1.xpose.msra.mxu0 0.0
    %2816 = vmatprep.subr.mxu0 0.0
    %2817 = vmatpush1.xpose.msra.mxu0 0.0
    %2818 = vmatprep.subr.mxu0 0.0
    %2819 = vmatpush1.xpose.msra.mxu0 0.0
    %2820 = vmatprep.subr.mxu0 0.0
    %2821 = vmatpush1.xpose.msra.mxu0 0.0
    %2822 = vmatprep.subr.mxu0 0.0
    %2823 = vmatpush1.xpose.msra.mxu0 0.0
    %2824 = vmatprep.subr.mxu0 0.0
    %2825 = vmatpush1.xpose.msra.mxu0 0.0
    %2826 = vmatprep.subr.mxu0 0.0
    %2827 = vmatpush1.xpose.msra.mxu0 0.0
    %2828 = vmatprep.subr.mxu0 0.0
    %2829 = vmatpush1.xpose.msra.mxu0 %v2796
    %2830 = vmatprep.subr.mxu0 0.0
    %2831 = vmatpush2.xpose.msra.mxu0 0.0
    %2832 = vmatprep.subr.mxu0 0.0
    %2833 = vmatpush2.xpose.msra.mxu0 0.0
    %2834 = vmatprep.subr.mxu0 0.0
    %2835 = vmatpush2.xpose.msra.mxu0 0.0
    %2836 = vmatprep.subr.mxu0 0.0
    %2837 = vmatpush2.xpose.msra.mxu0 0.0
    %2838 = vmatprep.subr.mxu0 0.0
    %2839 = vmatpush2.xpose.msra.mxu0 0.0
    %2840 = vmatprep.subr.mxu0 0.0
    %2841 = vmatpush2.xpose.msra.mxu0 0.0
    %2842 = vmatprep.subr.mxu0 0.0
    %2843 = vmatpush2.xpose.msra.mxu0 0.0
    %2844 = vmatprep.subr.mxu0 0.0
    %2845 = vmatpush2.xpose.msra.mxu0 0.0
    %2846 = vmatprep.subr.mxu0 0.0
    %2847 = vmatpush2.xpose.msra.mxu0 0.0
    %2848 = vmatprep.subr.mxu0 0.0
    %2849 = vmatpush2.xpose.msra.mxu0 0.0
    %2850 = vmatprep.subr.mxu0 0.0
    %2851 = vmatpush2.xpose.msra.mxu0 0.0
    %2852 = vmatprep.subr.mxu0 0.0
    %2853 = vmatpush2.xpose.msra.mxu0 0.0
    %2854 = vmatprep.subr.mxu0 0.0
    %2855 = vmatpush2.xpose.msra.mxu0 0.0
    %2856 = vmatprep.subr.mxu0 0.0
    %2857 = vmatpush2.xpose.msra.mxu0 0.0
    %2858 = vmatprep.subr.mxu0 0.0
    %2859 = vmatpush2.xpose.msra.mxu0 0.0
    %2860 = vmatprep.subr.mxu0 0.0
    %2861 = vmatpush2.xpose.msra.mxu0 0.0
    %2862 = vmatprep.mubr.f32.mxu0 0.0
    %2863 = vmatmul.mubr.f32.gmra.mxu0 %v2793
    %v2864 = vpop.f32.mrf.mxu0
    %v2865 = vadd.f32 0.0, %v2864
    %v2866 = vpop.f32.mrf.mxu0
    %2867 = vdwg.mxu0
    %v2869 = vsel %vm224, %v2787, 0
    %v2872 = vsel %vm224, %v2303, 0
    %2874 = vmatprep.subr.mxu0 0.0
    %2875 = vmatpush1.xpose.msra.mxu0 0.0
    %2876 = vmatprep.subr.mxu0 0.0
    %2877 = vmatpush1.xpose.msra.mxu0 0.0
    %2878 = vmatprep.subr.mxu0 0.0
    %2879 = vmatpush1.xpose.msra.mxu0 0.0
    %2880 = vmatprep.subr.mxu0 0.0
    %2881 = vmatpush1.xpose.msra.mxu0 0.0
    %2882 = vmatprep.subr.mxu0 0.0
    %2883 = vmatpush1.xpose.msra.mxu0 0.0
    %2884 = vmatprep.subr.mxu0 0.0
    %2885 = vmatpush1.xpose.msra.mxu0 0.0
    %2886 = vmatprep.subr.mxu0 0.0
    %2887 = vmatpush1.xpose.msra.mxu0 0.0
    %2888 = vmatprep.subr.mxu0 0.0
    %2889 = vmatpush1.xpose.msra.mxu0 0.0
    %2890 = vmatprep.subr.mxu0 0.0
    %2891 = vmatpush1.xpose.msra.mxu0 0.0
    %2892 = vmatprep.subr.mxu0 0.0
    %2893 = vmatpush1.xpose.msra.mxu0 0.0
    %2894 = vmatprep.subr.mxu0 0.0
    %2895 = vmatpush1.xpose.msra.mxu0 0.0
    %2896 = vmatprep.subr.mxu0 0.0
    %2897 = vmatpush1.xpose.msra.mxu0 0.0
    %2898 = vmatprep.subr.mxu0 0.0
    %2899 = vmatpush1.xpose.msra.mxu0 0.0
    %2900 = vmatprep.subr.mxu0 0.0
    %2901 = vmatpush1.xpose.msra.mxu0 0.0
    %2902 = vmatprep.subr.mxu0 0.0
    %2903 = vmatpush1.xpose.msra.mxu0 0.0
    %2904 = vmatprep.subr.mxu0 0.0
    %2905 = vmatpush1.xpose.msra.mxu0 %v2872
    %2906 = vmatprep.subr.mxu0 0.0
    %2907 = vmatpush2.xpose.msra.mxu0 0.0
    %2908 = vmatprep.subr.mxu0 0.0
    %2909 = vmatpush2.xpose.msra.mxu0 0.0
    %2910 = vmatprep.subr.mxu0 0.0
    %2911 = vmatpush2.xpose.msra.mxu0 0.0
    %2912 = vmatprep.subr.mxu0 0.0
    %2913 = vmatpush2.xpose.msra.mxu0 0.0
    %2914 = vmatprep.subr.mxu0 0.0
    %2915 = vmatpush2.xpose.msra.mxu0 0.0
    %2916 = vmatprep.subr.mxu0 0.0
    %2917 = vmatpush2.xpose.msra.mxu0 0.0
    %2918 = vmatprep.subr.mxu0 0.0
    %2919 = vmatpush2.xpose.msra.mxu0 0.0
    %2920 = vmatprep.subr.mxu0 0.0
    %2921 = vmatpush2.xpose.msra.mxu0 0.0
    %2922 = vmatprep.subr.mxu0 0.0
    %2923 = vmatpush2.xpose.msra.mxu0 0.0
    %2924 = vmatprep.subr.mxu0 0.0
    %2925 = vmatpush2.xpose.msra.mxu0 0.0
    %2926 = vmatprep.subr.mxu0 0.0
    %2927 = vmatpush2.xpose.msra.mxu0 0.0
    %2928 = vmatprep.subr.mxu0 0.0
    %2929 = vmatpush2.xpose.msra.mxu0 0.0
    %2930 = vmatprep.subr.mxu0 0.0
    %2931 = vmatpush2.xpose.msra.mxu0 0.0
    %2932 = vmatprep.subr.mxu0 0.0
    %2933 = vmatpush2.xpose.msra.mxu0 0.0
    %2934 = vmatprep.subr.mxu0 0.0
    %2935 = vmatpush2.xpose.msra.mxu0 0.0
    %2936 = vmatprep.subr.mxu0 0.0
    %2937 = vmatpush2.xpose.msra.mxu0 0.0
    %2938 = vmatprep.mubr.f32.mxu0 0.0
    %2939 = vmatmul.mubr.f32.gmra.mxu0 %v2869
    %v2940 = vpop.f32.mrf.mxu0
    %v2941 = vadd.f32 0.0, %v2940
    %v2942 = vpop.f32.mrf.mxu0
    %2943 = vdwg.mxu0
    %v2945 = vsel %vm224, %v2789, 0
    %v2948 = vsel %vm224, %v2308, 0
    %2950 = vmatprep.subr.mxu0 0.0
    %2951 = vmatpush1.xpose.msra.mxu0 0.0
    %2952 = vmatprep.subr.mxu0 0.0
    %2953 = vmatpush1.xpose.msra.mxu0 0.0
    %2954 = vmatprep.subr.mxu0 0.0
    %2955 = vmatpush1.xpose.msra.mxu0 0.0
    %2956 = vmatprep.subr.mxu0 0.0
    %2957 = vmatpush1.xpose.msra.mxu0 0.0
    %2958 = vmatprep.subr.mxu0 0.0
    %2959 = vmatpush1.xpose.msra.mxu0 0.0
    %2960 = vmatprep.subr.mxu0 0.0
    %2961 = vmatpush1.xpose.msra.mxu0 0.0
    %2962 = vmatprep.subr.mxu0 0.0
    %2963 = vmatpush1.xpose.msra.mxu0 0.0
    %2964 = vmatprep.subr.mxu0 0.0
    %2965 = vmatpush1.xpose.msra.mxu0 0.0
    %2966 = vmatprep.subr.mxu0 0.0
    %2967 = vmatpush1.xpose.msra.mxu0 0.0
    %2968 = vmatprep.subr.mxu0 0.0
    %2969 = vmatpush1.xpose.msra.mxu0 0.0
    %2970 = vmatprep.subr.mxu0 0.0
    %2971 = vmatpush1.xpose.msra.mxu0 0.0
    %2972 = vmatprep.subr.mxu0 0.0
    %2973 = vmatpush1.xpose.msra.mxu0 0.0
    %2974 = vmatprep.subr.mxu0 0.0
    %2975 = vmatpush1.xpose.msra.mxu0 0.0
    %2976 = vmatprep.subr.mxu0 0.0
    %2977 = vmatpush1.xpose.msra.mxu0 0.0
    %2978 = vmatprep.subr.mxu0 0.0
    %2979 = vmatpush1.xpose.msra.mxu0 0.0
    %2980 = vmatprep.subr.mxu0 0.0
    %2981 = vmatpush1.xpose.msra.mxu0 %v2948
    %2982 = vmatprep.subr.mxu0 0.0
    %2983 = vmatpush2.xpose.msra.mxu0 0.0
    %2984 = vmatprep.subr.mxu0 0.0
    %2985 = vmatpush2.xpose.msra.mxu0 0.0
    %2986 = vmatprep.subr.mxu0 0.0
    %2987 = vmatpush2.xpose.msra.mxu0 0.0
    %2988 = vmatprep.subr.mxu0 0.0
    %2989 = vmatpush2.xpose.msra.mxu0 0.0
    %2990 = vmatprep.subr.mxu0 0.0
    %2991 = vmatpush2.xpose.msra.mxu0 0.0
    %2992 = vmatprep.subr.mxu0 0.0
    %2993 = vmatpush2.xpose.msra.mxu0 0.0
    %2994 = vmatprep.subr.mxu0 0.0
    %2995 = vmatpush2.xpose.msra.mxu0 0.0
    %2996 = vmatprep.subr.mxu0 0.0
    %2997 = vmatpush2.xpose.msra.mxu0 0.0
    %2998 = vmatprep.subr.mxu0 0.0
    %2999 = vmatpush2.xpose.msra.mxu0 0.0
    %3000 = vmatprep.subr.mxu0 0.0
    %3001 = vmatpush2.xpose.msra.mxu0 0.0
    %3002 = vmatprep.subr.mxu0 0.0
    %3003 = vmatpush2.xpose.msra.mxu0 0.0
    %3004 = vmatprep.subr.mxu0 0.0
    %3005 = vmatpush2.xpose.msra.mxu0 0.0
    %3006 = vmatprep.subr.mxu0 0.0
    %3007 = vmatpush2.xpose.msra.mxu0 0.0
    %3008 = vmatprep.subr.mxu0 0.0
    %3009 = vmatpush2.xpose.msra.mxu0 0.0
    %3010 = vmatprep.subr.mxu0 0.0
    %3011 = vmatpush2.xpose.msra.mxu0 0.0
    %3012 = vmatprep.subr.mxu0 0.0
    %3013 = vmatpush2.xpose.msra.mxu0 0.0
    %3014 = vmatprep.mubr.f32.mxu0 0.0
    %3015 = vmatmul.mubr.f32.gmra.mxu0 %v2945
    %v3016 = vpop.f32.mrf.mxu0
    %v3017 = vadd.f32 0.0, %v3016
    %v3018 = vpop.f32.mrf.mxu0
    %3019 = vdwg.mxu0
    %v3021 = vsel %vm224, %v2791, 0
    %v3024 = vsel %vm224, %v2313, 0
    %3026 = vmatprep.subr.mxu0 0.0
    %3027 = vmatpush1.xpose.msra.mxu0 0.0
    %3028 = vmatprep.subr.mxu0 0.0
    %3029 = vmatpush1.xpose.msra.mxu0 0.0
    %3030 = vmatprep.subr.mxu0 0.0
    %3031 = vmatpush1.xpose.msra.mxu0 0.0
    %3032 = vmatprep.subr.mxu0 0.0
    %3033 = vmatpush1.xpose.msra.mxu0 0.0
    %3034 = vmatprep.subr.mxu0 0.0
    %3035 = vmatpush1.xpose.msra.mxu0 0.0
    %3036 = vmatprep.subr.mxu0 0.0
    %3037 = vmatpush1.xpose.msra.mxu0 0.0
    %3038 = vmatprep.subr.mxu0 0.0
    %3039 = vmatpush1.xpose.msra.mxu0 0.0
    %3040 = vmatprep.subr.mxu0 0.0
    %3041 = vmatpush1.xpose.msra.mxu0 0.0
    %3042 = vmatprep.subr.mxu0 0.0
    %3043 = vmatpush1.xpose.msra.mxu0 0.0
    %3044 = vmatprep.subr.mxu0 0.0
    %3045 = vmatpush1.xpose.msra.mxu0 0.0
    %3046 = vmatprep.subr.mxu0 0.0
    %3047 = vmatpush1.xpose.msra.mxu0 0.0
    %3048 = vmatprep.subr.mxu0 0.0
    %3049 = vmatpush1.xpose.msra.mxu0 0.0
    %3050 = vmatprep.subr.mxu0 0.0
    %3051 = vmatpush1.xpose.msra.mxu0 0.0
    %3052 = vmatprep.subr.mxu0 0.0
    %3053 = vmatpush1.xpose.msra.mxu0 0.0
    %3054 = vmatprep.subr.mxu0 0.0
    %3055 = vmatpush1.xpose.msra.mxu0 0.0
    %3056 = vmatprep.subr.mxu0 0.0
    %3057 = vmatpush1.xpose.msra.mxu0 %v3024
    %3058 = vmatprep.subr.mxu0 0.0
    %3059 = vmatpush2.xpose.msra.mxu0 0.0
    %3060 = vmatprep.subr.mxu0 0.0
    %3061 = vmatpush2.xpose.msra.mxu0 0.0
    %3062 = vmatprep.subr.mxu0 0.0
    %3063 = vmatpush2.xpose.msra.mxu0 0.0
    %3064 = vmatprep.subr.mxu0 0.0
    %3065 = vmatpush2.xpose.msra.mxu0 0.0
    %3066 = vmatprep.subr.mxu0 0.0
    %3067 = vmatpush2.xpose.msra.mxu0 0.0
    %3068 = vmatprep.subr.mxu0 0.0
    %3069 = vmatpush2.xpose.msra.mxu0 0.0
    %3070 = vmatprep.subr.mxu0 0.0
    %3071 = vmatpush2.xpose.msra.mxu0 0.0
    %3072 = vmatprep.subr.mxu0 0.0
    %3073 = vmatpush2.xpose.msra.mxu0 0.0
    %3074 = vmatprep.subr.mxu0 0.0
    %3075 = vmatpush2.xpose.msra.mxu0 0.0
    %3076 = vmatprep.subr.mxu0 0.0
    %3077 = vmatpush2.xpose.msra.mxu0 0.0
    %3078 = vmatprep.subr.mxu0 0.0
    %3079 = vmatpush2.xpose.msra.mxu0 0.0
    %3080 = vmatprep.subr.mxu0 0.0
    %3081 = vmatpush2.xpose.msra.mxu0 0.0
    %3082 = vmatprep.subr.mxu0 0.0
    %3083 = vmatpush2.xpose.msra.mxu0 0.0
    %3084 = vmatprep.subr.mxu0 0.0
    %3085 = vmatpush2.xpose.msra.mxu0 0.0
    %3086 = vmatprep.subr.mxu0 0.0
    %3087 = vmatpush2.xpose.msra.mxu0 0.0
    %3088 = vmatprep.subr.mxu0 0.0
    %3089 = vmatpush2.xpose.msra.mxu0 0.0
    %3090 = vmatprep.mubr.f32.mxu0 0.0
    %3091 = vmatmul.mubr.f32.gmra.mxu0 %v3021
    %v3092 = vpop.f32.mrf.mxu0
    %v3093 = vadd.f32 0.0, %v3092
    %v3094 = vpop.f32.mrf.mxu0
    %3095 = vdwg.mxu0
    %3097 = vrot.lane.b32.xlu0 %v2941, 8
    %v3098 = vpop.permute.xlu0 %3097
    %3101 = vrot.lane.b32.xlu0 %v3017, 16
    %v3102 = vpop.permute.xlu0 %3101
    %3105 = vrot.lane.b32.xlu0 %v3093, 24
    %v3106 = vpop.permute.xlu0 %3105
    %v3108 = vsel %vm224, %v2865, %v3098
    %v3109 = vsel %vm978, %v3108, %v3102
    %v3110 = vsel %vm980, %v3109, %v3106
    %v3112 = vsel %vm19, %v3110, 0
    %3114 = vmatprep.subr.mxu0 0.0
    %3115 = vmatpush1.msra.mxu0 0.0
    %3116 = vmatprep.subr.mxu0 0.0
    %3117 = vmatpush1.msra.mxu0 0.0
    %3118 = vmatprep.subr.mxu0 0.0
    %3119 = vmatpush1.msra.mxu0 0.0
    %3120 = vmatprep.subr.mxu0 0.0
    %3121 = vmatpush1.msra.mxu0 0.0
    %3122 = vmatprep.subr.mxu0 0.0
    %3123 = vmatpush1.msra.mxu0 0.0
    %3124 = vmatprep.subr.mxu0 0.0
    %3125 = vmatpush1.msra.mxu0 0.0
    %3126 = vmatprep.subr.mxu0 0.0
    %3127 = vmatpush1.msra.mxu0 0.0
    %3128 = vmatprep.subr.mxu0 0.0
    %3129 = vmatpush1.msra.mxu0 0.0
    %3130 = vmatprep.subr.mxu0 0.0
    %3131 = vmatpush1.msra.mxu0 0.0
    %3132 = vmatprep.subr.mxu0 0.0
    %3133 = vmatpush1.msra.mxu0 0.0
    %3134 = vmatprep.subr.mxu0 0.0
    %3135 = vmatpush1.msra.mxu0 0.0
    %3136 = vmatprep.subr.mxu0 0.0
    %3137 = vmatpush1.msra.mxu0 0.0
    %3138 = vmatprep.subr.mxu0 0.0
    %3139 = vmatpush1.msra.mxu0 %v2323
    %3140 = vmatprep.subr.mxu0 0.0
    %3141 = vmatpush1.msra.mxu0 %v2322
    %3142 = vmatprep.subr.mxu0 0.0
    %3143 = vmatpush1.msra.mxu0 %v2321
    %3144 = vmatprep.subr.mxu0 0.0
    %3145 = vmatpush1.msra.mxu0 %v2320
    %3146 = vmatprep.subr.mxu0 0.0
    %3147 = vmatpush2.msra.mxu0 0.0
    %3148 = vmatprep.subr.mxu0 0.0
    %3149 = vmatpush2.msra.mxu0 0.0
    %3150 = vmatprep.subr.mxu0 0.0
    %3151 = vmatpush2.msra.mxu0 0.0
    %3152 = vmatprep.subr.mxu0 0.0
    %3153 = vmatpush2.msra.mxu0 0.0
    %3154 = vmatprep.subr.mxu0 0.0
    %3155 = vmatpush2.msra.mxu0 0.0
    %3156 = vmatprep.subr.mxu0 0.0
    %3157 = vmatpush2.msra.mxu0 0.0
    %3158 = vmatprep.subr.mxu0 0.0
    %3159 = vmatpush2.msra.mxu0 0.0
    %3160 = vmatprep.subr.mxu0 0.0
    %3161 = vmatpush2.msra.mxu0 0.0
    %3162 = vmatprep.subr.mxu0 0.0
    %3163 = vmatpush2.msra.mxu0 0.0
    %3164 = vmatprep.subr.mxu0 0.0
    %3165 = vmatpush2.msra.mxu0 0.0
    %3166 = vmatprep.subr.mxu0 0.0
    %3167 = vmatpush2.msra.mxu0 0.0
    %3168 = vmatprep.subr.mxu0 0.0
    %3169 = vmatpush2.msra.mxu0 0.0
    %3170 = vmatprep.subr.mxu0 0.0
    %3171 = vmatpush2.msra.mxu0 0.0
    %3172 = vmatprep.subr.mxu0 0.0
    %3173 = vmatpush2.msra.mxu0 0.0
    %3174 = vmatprep.subr.mxu0 0.0
    %3175 = vmatpush2.msra.mxu0 0.0
    %3176 = vmatprep.subr.mxu0 0.0
    %3177 = vmatpush2.msra.mxu0 0.0
    %3178 = vmatprep.mubr.f32.mxu0 0.0
    %3179 = vmatmul.mubr.f32.gmra.mxu0 %v3112
    %v3180 = vpop.f32.mrf.mxu0
    %v3181 = vadd.f32 %v2160, %v3180
    %v3182 = vpop.f32.mrf.mxu0
    %3183 = vdwg.mxu0
    %v3184 = vld [vmem:[%s2159 + $0x8] sm:$0xff]
    %v3185 = vld [vmem:[%s2159 + $0x10] sm:$0xff]
    %v3186 = vld [vmem:[%s2159 + $0x18] sm:$0xff]
    %v3187 = vld [vmem:[%s2159 + $0x20] sm:$0xff]
    %v3188 = vld [vmem:[%s1 + $0x80] sm:$0xff]
    %v3189 = vld [vmem:[%s1 + $0x88] sm:$0xff]
    %v3190 = vld [vmem:[%s1 + $0x90] sm:$0xff]
    %v3191 = vld [vmem:[%s1 + $0x98] sm:$0xff]
    %v3193 = vsel %vm19, %v3188, 0
    %v3196 = vsel %vm19, %v3189, 0
    %v3199 = vsel %vm19, %v3190, 0
    %v3202 = vsel %vm19, %v3191, 0
    %3204 = vmatprep.subr.mxu0 0.0
    %3205 = vmatpush1.msra.mxu0 0.0
    %3206 = vmatprep.subr.mxu0 0.0
    %3207 = vmatpush1.msra.mxu0 0.0
    %3208 = vmatprep.subr.mxu0 0.0
    %3209 = vmatpush1.msra.mxu0 0.0
    %3210 = vmatprep.subr.mxu0 0.0
    %3211 = vmatpush1.msra.mxu0 0.0
    %3212 = vmatprep.subr.mxu0 0.0
    %3213 = vmatpush1.msra.mxu0 0.0
    %3214 = vmatprep.subr.mxu0 0.0
    %3215 = vmatpush1.msra.mxu0 0.0
    %3216 = vmatprep.subr.mxu0 0.0
    %3217 = vmatpush1.msra.mxu0 0.0
    %3218 = vmatprep.subr.mxu0 0.0
    %3219 = vmatpush1.msra.mxu0 0.0
    %3220 = vmatprep.subr.mxu0 0.0
    %3221 = vmatpush1.msra.mxu0 0.0
    %3222 = vmatprep.subr.mxu0 0.0
    %3223 = vmatpush1.msra.mxu0 0.0
    %3224 = vmatprep.subr.mxu0 0.0
    %3225 = vmatpush1.msra.mxu0 0.0
    %3226 = vmatprep.subr.mxu0 0.0
    %3227 = vmatpush1.msra.mxu0 0.0
    %3228 = vmatprep.subr.mxu0 0.0
    %3229 = vmatpush1.msra.mxu0 %v3187
    %3230 = vmatprep.subr.mxu0 0.0
    %3231 = vmatpush1.msra.mxu0 %v3186
    %3232 = vmatprep.subr.mxu0 0.0
    %3233 = vmatpush1.msra.mxu0 %v3185
    %3234 = vmatprep.subr.mxu0 0.0
    %3235 = vmatpush1.msra.mxu0 %v3184
    %3236 = vmatprep.subr.mxu0 0.0
    %3237 = vmatpush2.msra.mxu0 0.0
    %3238 = vmatprep.subr.mxu0 0.0
    %3239 = vmatpush2.msra.mxu0 0.0
    %3240 = vmatprep.subr.mxu0 0.0
    %3241 = vmatpush2.msra.mxu0 0.0
    %3242 = vmatprep.subr.mxu0 0.0
    %3243 = vmatpush2.msra.mxu0 0.0
    %3244 = vmatprep.subr.mxu0 0.0
    %3245 = vmatpush2.msra.mxu0 0.0
    %3246 = vmatprep.subr.mxu0 0.0
    %3247 = vmatpush2.msra.mxu0 0.0
    %3248 = vmatprep.subr.mxu0 0.0
    %3249 = vmatpush2.msra.mxu0 0.0
    %3250 = vmatprep.subr.mxu0 0.0
    %3251 = vmatpush2.msra.mxu0 0.0
    %3252 = vmatprep.subr.mxu0 0.0
    %3253 = vmatpush2.msra.mxu0 0.0
    %3254 = vmatprep.subr.mxu0 0.0
    %3255 = vmatpush2.msra.mxu0 0.0
    %3256 = vmatprep.subr.mxu0 0.0
    %3257 = vmatpush2.msra.mxu0 0.0
    %3258 = vmatprep.subr.mxu0 0.0
    %3259 = vmatpush2.msra.mxu0 0.0
    %3260 = vmatprep.subr.mxu0 0.0
    %3261 = vmatpush2.msra.mxu0 0.0
    %3262 = vmatprep.subr.mxu0 0.0
    %3263 = vmatpush2.msra.mxu0 0.0
    %3264 = vmatprep.subr.mxu0 0.0
    %3265 = vmatpush2.msra.mxu0 0.0
    %3266 = vmatprep.subr.mxu0 0.0
    %3267 = vmatpush2.msra.mxu0 0.0
    %3268 = vmatprep.mubr.f32.mxu0 0.0
    %3269 = vmatmul.mubr.f32.gmra.mxu0 %v3193
    %v3270 = vpop.f32.mrf.mxu0
    %v3271 = vadd.f32 0.0, %v3270
    %v3272 = vpop.f32.mrf.mxu0
    %3273 = vmatprep.mubr.f32.mxu0 0.0
    %3274 = vmatmul.mubr.f32.gmra.mxu0 %v3196
    %v3275 = vpop.f32.mrf.mxu0
    %v3276 = vadd.f32 0.0, %v3275
    %v3277 = vpop.f32.mrf.mxu0
    %3278 = vmatprep.mubr.f32.mxu0 0.0
    %3279 = vmatmul.mubr.f32.gmra.mxu0 %v3199
    %v3280 = vpop.f32.mrf.mxu0
    %v3281 = vadd.f32 0.0, %v3280
    %v3282 = vpop.f32.mrf.mxu0
    %3283 = vmatprep.mubr.f32.mxu0 0.0
    %3284 = vmatmul.mubr.f32.gmra.mxu0 %v3202
    %v3285 = vpop.f32.mrf.mxu0
    %v3286 = vadd.f32 0.0, %v3285
    %v3287 = vpop.f32.mrf.mxu0
    %3288 = vdwg.mxu0
    %v3289 = vsel %vm19, %v3181, 0.0
    %3290 = vadd.xlane.f32.xlu0 %v3289
    %v3291 = vpop.xlane.xlu0 %3290
    %v3292 = vmul.f32 %v3291, %v23
    %v3293 = vsub.f32 %v3181, %v3292
    %v3294 = vmul.f32 %v3293, %v3293
    %v3295 = vsel %vm19, %v3294, 0.0
    %3296 = vadd.xlane.f32.xlu0 %v3295
    %v3297 = vpop.xlane.xlu0 %3296
    %v3298 = vmul.f32 %v3297, %v23
    %v3299 = vadd.f32 %v3298, 1e-05
    %v3300 = vrsqrt.pop %v3299
    %v3301 = vmul.f32 %v3293, %v3300
    %v3302 = vmul.f32 %v3301, %v1176
    %v3303 = vadd.f32 %v3302, %v1181
    %v3304 = vld [vmem:[%s1 + $0x60] sm:$0xff]
    %v3305 = vld [vmem:[%s1 + $0x68] sm:$0xff]
    %v3306 = vld [vmem:[%s1 + $0x70] sm:$0xff]
    %v3307 = vld [vmem:[%s1 + $0x78] sm:$0xff]
    %v3309 = vsel %vm19, %v3304, 0
    %v3312 = vsel %vm19, %v3305, 0
    %v3315 = vsel %vm19, %v3306, 0
    %v3318 = vsel %vm19, %v3307, 0
    %v3321 = vsel %vm19, %v3303, 0
    %3323 = vmatprep.subr.mxu0 0.0
    %3324 = vmatpush1.xpose.msra.mxu0 0.0
    %3325 = vmatprep.subr.mxu0 0.0
    %3326 = vmatpush1.xpose.msra.mxu0 0.0
    %3327 = vmatprep.subr.mxu0 0.0
    %3328 = vmatpush1.xpose.msra.mxu0 0.0
    %3329 = vmatprep.subr.mxu0 0.0
    %3330 = vmatpush1.xpose.msra.mxu0 0.0
    %3331 = vmatprep.subr.mxu0 0.0
    %3332 = vmatpush1.xpose.msra.mxu0 0.0
    %3333 = vmatprep.subr.mxu0 0.0
    %3334 = vmatpush1.xpose.msra.mxu0 0.0
    %3335 = vmatprep.subr.mxu0 0.0
    %3336 = vmatpush1.xpose.msra.mxu0 0.0
    %3337 = vmatprep.subr.mxu0 0.0
    %3338 = vmatpush1.xpose.msra.mxu0 0.0
    %3339 = vmatprep.subr.mxu0 0.0
    %3340 = vmatpush1.xpose.msra.mxu0 0.0
    %3341 = vmatprep.subr.mxu0 0.0
    %3342 = vmatpush1.xpose.msra.mxu0 0.0
    %3343 = vmatprep.subr.mxu0 0.0
    %3344 = vmatpush1.xpose.msra.mxu0 0.0
    %3345 = vmatprep.subr.mxu0 0.0
    %3346 = vmatpush1.xpose.msra.mxu0 0.0
    %3347 = vmatprep.subr.mxu0 0.0
    %3348 = vmatpush1.xpose.msra.mxu0 0.0
    %3349 = vmatprep.subr.mxu0 0.0
    %3350 = vmatpush1.xpose.msra.mxu0 0.0
    %3351 = vmatprep.subr.mxu0 0.0
    %3352 = vmatpush1.xpose.msra.mxu0 0.0
    %3353 = vmatprep.subr.mxu0 0.0
    %3354 = vmatpush1.xpose.msra.mxu0 %v3321
    %3355 = vmatprep.subr.mxu0 0.0
    %3356 = vmatpush2.xpose.msra.mxu0 0.0
    %3357 = vmatprep.subr.mxu0 0.0
    %3358 = vmatpush2.xpose.msra.mxu0 0.0
    %3359 = vmatprep.subr.mxu0 0.0
    %3360 = vmatpush2.xpose.msra.mxu0 0.0
    %3361 = vmatprep.subr.mxu0 0.0
    %3362 = vmatpush2.xpose.msra.mxu0 0.0
    %3363 = vmatprep.subr.mxu0 0.0
    %3364 = vmatpush2.xpose.msra.mxu0 0.0
    %3365 = vmatprep.subr.mxu0 0.0
    %3366 = vmatpush2.xpose.msra.mxu0 0.0
    %3367 = vmatprep.subr.mxu0 0.0
    %3368 = vmatpush2.xpose.msra.mxu0 0.0
    %3369 = vmatprep.subr.mxu0 0.0
    %3370 = vmatpush2.xpose.msra.mxu0 0.0
    %3371 = vmatprep.subr.mxu0 0.0
    %3372 = vmatpush2.xpose.msra.mxu0 0.0
    %3373 = vmatprep.subr.mxu0 0.0
    %3374 = vmatpush2.xpose.msra.mxu0 0.0
    %3375 = vmatprep.subr.mxu0 0.0
    %3376 = vmatpush2.xpose.msra.mxu0 0.0
    %3377 = vmatprep.subr.mxu0 0.0
    %3378 = vmatpush2.xpose.msra.mxu0 0.0
    %3379 = vmatprep.subr.mxu0 0.0
    %3380 = vmatpush2.xpose.msra.mxu0 0.0
    %3381 = vmatprep.subr.mxu0 0.0
    %3382 = vmatpush2.xpose.msra.mxu0 0.0
    %3383 = vmatprep.subr.mxu0 0.0
    %3384 = vmatpush2.xpose.msra.mxu0 0.0
    %3385 = vmatprep.subr.mxu0 0.0
    %3386 = vmatpush2.xpose.msra.mxu0 0.0
    %3387 = vmatprep.mubr.f32.mxu0 0.0
    %3388 = vmatmul.mubr.f32.gmra.mxu0 %v3309
    %v3389 = vpop.f32.mrf.mxu0
    %v3390 = vadd.f32 0.0, %v3389
    %v3391 = vpop.f32.mrf.mxu0
    %3392 = vmatprep.mubr.f32.mxu0 0.0
    %3393 = vmatmul.mubr.f32.gmra.mxu0 %v3312
    %v3394 = vpop.f32.mrf.mxu0
    %v3395 = vadd.f32 0.0, %v3394
    %v3396 = vpop.f32.mrf.mxu0
    %3397 = vmatprep.mubr.f32.mxu0 0.0
    %3398 = vmatmul.mubr.f32.gmra.mxu0 %v3315
    %v3399 = vpop.f32.mrf.mxu0
    %v3400 = vadd.f32 0.0, %v3399
    %v3401 = vpop.f32.mrf.mxu0
    %3402 = vmatprep.mubr.f32.mxu0 0.0
    %3403 = vmatmul.mubr.f32.gmra.mxu0 %v3318
    %v3404 = vpop.f32.mrf.mxu0
    %v3405 = vadd.f32 0.0, %v3404
    %v3406 = vpop.f32.mrf.mxu0
    %3407 = vdwg.mxu0
    %v3408 = vld [vmem:[%s2159 + $0x48] sm:$0xff]
    %v3409 = vld [vmem:[%s2159 + $0x50] sm:$0xff]
    %v3410 = vld [vmem:[%s2159 + $0x58] sm:$0xff]
    %v3411 = vld [vmem:[%s2159 + $0x60] sm:$0xff]
    %v3412 = vld [vmem:[%s1 + $0xa0] sm:$0xff]
    %v3413 = vld [vmem:[%s1 + $0xa8] sm:$0xff]
    %v3414 = vld [vmem:[%s1 + $0xb0] sm:$0xff]
    %v3415 = vld [vmem:[%s1 + $0xb8] sm:$0xff]
    %3416 = vxpose.xlu0.b32.start [1/16] %v3390, 128
    %3417 = vxpose.xlu0.b32.cont [2/16] 0.0, 128
    %3418 = vxpose.xlu0.b32.cont [3/16] 0.0, 128
    %3419 = vxpose.xlu0.b32.cont [4/16] 0.0, 128
    %3420 = vxpose.xlu0.b32.cont [5/16] 0.0, 128
    %3421 = vxpose.xlu0.b32.cont [6/16] 0.0, 128
    %3422 = vxpose.xlu0.b32.cont [7/16] 0.0, 128
    %3423 = vxpose.xlu0.b32.cont [8/16] 0.0, 128
    %3424 = vxpose.xlu0.b32.cont [9/16] 0.0, 128
    %3425 = vxpose.xlu0.b32.cont [10/16] 0.0, 128
    %3426 = vxpose.xlu0.b32.cont [11/16] 0.0, 128
    %3427 = vxpose.xlu0.b32.cont [12/16] 0.0, 128
    %3428 = vxpose.xlu0.b32.cont [13/16] 0.0, 128
    %3429 = vxpose.xlu0.b32.cont [14/16] 0.0, 128
    %3430 = vxpose.xlu0.b32.cont [15/16] 0.0, 128
    %3431 = vxpose.xlu0.b32.end [16/16] 0.0, 128
    %v3432 = vpop.trf.xlu0
    %v3433 = vpop.trf.xlu0
    %v3434 = vpop.trf.xlu0
    %v3435 = vpop.trf.xlu0
    %v3436 = vpop.trf.xlu0
    %v3437 = vpop.trf.xlu0
    %v3438 = vpop.trf.xlu0
    %v3439 = vpop.trf.xlu0
    %v3440 = vpop.trf.xlu0
    %v3441 = vpop.trf.xlu0
    %v3442 = vpop.trf.xlu0
    %v3443 = vpop.trf.xlu0
    %v3444 = vpop.trf.xlu0
    %v3445 = vpop.trf.xlu0
    %v3446 = vpop.trf.xlu0
    %v3447 = vpop.trf.xlu0
    %v3449 = vsel %vm224, %v3432, 0
    %3451 = vmatprep.subr.mxu0 0.0
    %3452 = vmatpush1.msra.mxu0 0.0
    %3453 = vmatprep.subr.mxu0 0.0
    %3454 = vmatpush1.msra.mxu0 0.0
    %3455 = vmatprep.subr.mxu0 0.0
    %3456 = vmatpush1.msra.mxu0 0.0
    %3457 = vmatprep.subr.mxu0 0.0
    %3458 = vmatpush1.msra.mxu0 0.0
    %3459 = vmatprep.subr.mxu0 0.0
    %3460 = vmatpush1.msra.mxu0 0.0
    %3461 = vmatprep.subr.mxu0 0.0
    %3462 = vmatpush1.msra.mxu0 0.0
    %3463 = vmatprep.subr.mxu0 0.0
    %3464 = vmatpush1.msra.mxu0 0.0
    %3465 = vmatprep.subr.mxu0 0.0
    %3466 = vmatpush1.msra.mxu0 0.0
    %3467 = vmatprep.subr.mxu0 0.0
    %3468 = vmatpush1.msra.mxu0 0.0
    %3469 = vmatprep.subr.mxu0 0.0
    %3470 = vmatpush1.msra.mxu0 0.0
    %3471 = vmatprep.subr.mxu0 0.0
    %3472 = vmatpush1.msra.mxu0 0.0
    %3473 = vmatprep.subr.mxu0 0.0
    %3474 = vmatpush1.msra.mxu0 0.0
    %3475 = vmatprep.subr.mxu0 0.0
    %3476 = vmatpush1.msra.mxu0 0.0
    %3477 = vmatprep.subr.mxu0 0.0
    %3478 = vmatpush1.msra.mxu0 0.0
    %3479 = vmatprep.subr.mxu0 0.0
    %3480 = vmatpush1.msra.mxu0 0.0
    %3481 = vmatprep.subr.mxu0 0.0
    %3482 = vmatpush1.msra.mxu0 %v3271
    %3483 = vmatprep.subr.mxu0 0.0
    %3484 = vmatpush2.msra.mxu0 0.0
    %3485 = vmatprep.subr.mxu0 0.0
    %3486 = vmatpush2.msra.mxu0 0.0
    %3487 = vmatprep.subr.mxu0 0.0
    %3488 = vmatpush2.msra.mxu0 0.0
    %3489 = vmatprep.subr.mxu0 0.0
    %3490 = vmatpush2.msra.mxu0 0.0
    %3491 = vmatprep.subr.mxu0 0.0
    %3492 = vmatpush2.msra.mxu0 0.0
    %3493 = vmatprep.subr.mxu0 0.0
    %3494 = vmatpush2.msra.mxu0 0.0
    %3495 = vmatprep.subr.mxu0 0.0
    %3496 = vmatpush2.msra.mxu0 0.0
    %3497 = vmatprep.subr.mxu0 0.0
    %3498 = vmatpush2.msra.mxu0 0.0
    %3499 = vmatprep.subr.mxu0 0.0
    %3500 = vmatpush2.msra.mxu0 0.0
    %3501 = vmatprep.subr.mxu0 0.0
    %3502 = vmatpush2.msra.mxu0 0.0
    %3503 = vmatprep.subr.mxu0 0.0
    %3504 = vmatpush2.msra.mxu0 0.0
    %3505 = vmatprep.subr.mxu0 0.0
    %3506 = vmatpush2.msra.mxu0 0.0
    %3507 = vmatprep.subr.mxu0 0.0
    %3508 = vmatpush2.msra.mxu0 0.0
    %3509 = vmatprep.subr.mxu0 0.0
    %3510 = vmatpush2.msra.mxu0 0.0
    %3511 = vmatprep.subr.mxu0 0.0
    %3512 = vmatpush2.msra.mxu0 0.0
    %3513 = vmatprep.subr.mxu0 0.0
    %3514 = vmatpush2.msra.mxu0 0.0
    %3515 = vmatprep.mubr.f32.mxu0 0.0
    %3516 = vmatmul.mubr.f32.gmra.mxu0 %v3449
    %v3517 = vpop.f32.mrf.mxu0
    %v3518 = vadd.f32 0.0, %v3517
    %v3519 = vpop.f32.mrf.mxu0
    %3520 = vdwg.mxu0
    %3521 = vxpose.xlu0.b32.start [1/16] %v3395, 128
    %3522 = vxpose.xlu0.b32.cont [2/16] 0.0, 128
    %3523 = vxpose.xlu0.b32.cont [3/16] 0.0, 128
    %3524 = vxpose.xlu0.b32.cont [4/16] 0.0, 128
    %3525 = vxpose.xlu0.b32.cont [5/16] 0.0, 128
    %3526 = vxpose.xlu0.b32.cont [6/16] 0.0, 128
    %3527 = vxpose.xlu0.b32.cont [7/16] 0.0, 128
    %3528 = vxpose.xlu0.b32.cont [8/16] 0.0, 128
    %3529 = vxpose.xlu0.b32.cont [9/16] 0.0, 128
    %3530 = vxpose.xlu0.b32.cont [10/16] 0.0, 128
    %3531 = vxpose.xlu0.b32.cont [11/16] 0.0, 128
    %3532 = vxpose.xlu0.b32.cont [12/16] 0.0, 128
    %3533 = vxpose.xlu0.b32.cont [13/16] 0.0, 128
    %3534 = vxpose.xlu0.b32.cont [14/16] 0.0, 128
    %3535 = vxpose.xlu0.b32.cont [15/16] 0.0, 128
    %3536 = vxpose.xlu0.b32.end [16/16] 0.0, 128
    %v3537 = vpop.trf.xlu0
    %v3538 = vpop.trf.xlu0
    %v3539 = vpop.trf.xlu0
    %v3540 = vpop.trf.xlu0
    %v3541 = vpop.trf.xlu0
    %v3542 = vpop.trf.xlu0
    %v3543 = vpop.trf.xlu0
    %v3544 = vpop.trf.xlu0
    %v3545 = vpop.trf.xlu0
    %v3546 = vpop.trf.xlu0
    %v3547 = vpop.trf.xlu0
    %v3548 = vpop.trf.xlu0
    %v3549 = vpop.trf.xlu0
    %v3550 = vpop.trf.xlu0
    %v3551 = vpop.trf.xlu0
    %v3552 = vpop.trf.xlu0
    %v3554 = vsel %vm224, %v3537, 0
    %3556 = vmatprep.subr.mxu0 0.0
    %3557 = vmatpush1.msra.mxu0 0.0
    %3558 = vmatprep.subr.mxu0 0.0
    %3559 = vmatpush1.msra.mxu0 0.0
    %3560 = vmatprep.subr.mxu0 0.0
    %3561 = vmatpush1.msra.mxu0 0.0
    %3562 = vmatprep.subr.mxu0 0.0
    %3563 = vmatpush1.msra.mxu0 0.0
    %3564 = vmatprep.subr.mxu0 0.0
    %3565 = vmatpush1.msra.mxu0 0.0
    %3566 = vmatprep.subr.mxu0 0.0
    %3567 = vmatpush1.msra.mxu0 0.0
    %3568 = vmatprep.subr.mxu0 0.0
    %3569 = vmatpush1.msra.mxu0 0.0
    %3570 = vmatprep.subr.mxu0 0.0
    %3571 = vmatpush1.msra.mxu0 0.0
    %3572 = vmatprep.subr.mxu0 0.0
    %3573 = vmatpush1.msra.mxu0 0.0
    %3574 = vmatprep.subr.mxu0 0.0
    %3575 = vmatpush1.msra.mxu0 0.0
    %3576 = vmatprep.subr.mxu0 0.0
    %3577 = vmatpush1.msra.mxu0 0.0
    %3578 = vmatprep.subr.mxu0 0.0
    %3579 = vmatpush1.msra.mxu0 0.0
    %3580 = vmatprep.subr.mxu0 0.0
    %3581 = vmatpush1.msra.mxu0 0.0
    %3582 = vmatprep.subr.mxu0 0.0
    %3583 = vmatpush1.msra.mxu0 0.0
    %3584 = vmatprep.subr.mxu0 0.0
    %3585 = vmatpush1.msra.mxu0 0.0
    %3586 = vmatprep.subr.mxu0 0.0
    %3587 = vmatpush1.msra.mxu0 %v3276
    %3588 = vmatprep.subr.mxu0 0.0
    %3589 = vmatpush2.msra.mxu0 0.0
    %3590 = vmatprep.subr.mxu0 0.0
    %3591 = vmatpush2.msra.mxu0 0.0
    %3592 = vmatprep.subr.mxu0 0.0
    %3593 = vmatpush2.msra.mxu0 0.0
    %3594 = vmatprep.subr.mxu0 0.0
    %3595 = vmatpush2.msra.mxu0 0.0
    %3596 = vmatprep.subr.mxu0 0.0
    %3597 = vmatpush2.msra.mxu0 0.0
    %3598 = vmatprep.subr.mxu0 0.0
    %3599 = vmatpush2.msra.mxu0 0.0
    %3600 = vmatprep.subr.mxu0 0.0
    %3601 = vmatpush2.msra.mxu0 0.0
    %3602 = vmatprep.subr.mxu0 0.0
    %3603 = vmatpush2.msra.mxu0 0.0
    %3604 = vmatprep.subr.mxu0 0.0
    %3605 = vmatpush2.msra.mxu0 0.0
    %3606 = vmatprep.subr.mxu0 0.0
    %3607 = vmatpush2.msra.mxu0 0.0
    %3608 = vmatprep.subr.mxu0 0.0
    %3609 = vmatpush2.msra.mxu0 0.0
    %3610 = vmatprep.subr.mxu0 0.0
    %3611 = vmatpush2.msra.mxu0 0.0
    %3612 = vmatprep.subr.mxu0 0.0
    %3613 = vmatpush2.msra.mxu0 0.0
    %3614 = vmatprep.subr.mxu0 0.0
    %3615 = vmatpush2.msra.mxu0 0.0
    %3616 = vmatprep.subr.mxu0 0.0
    %3617 = vmatpush2.msra.mxu0 0.0
    %3618 = vmatprep.subr.mxu0 0.0
    %3619 = vmatpush2.msra.mxu0 0.0
    %3620 = vmatprep.mubr.f32.mxu0 0.0
    %3621 = vmatmul.mubr.f32.gmra.mxu0 %v3554
    %v3622 = vpop.f32.mrf.mxu0
    %v3623 = vadd.f32 0.0, %v3622
    %v3624 = vpop.f32.mrf.mxu0
    %3625 = vdwg.mxu0
    %3626 = vxpose.xlu0.b32.start [1/16] %v3400, 128
    %3627 = vxpose.xlu0.b32.cont [2/16] 0.0, 128
    %3628 = vxpose.xlu0.b32.cont [3/16] 0.0, 128
    %3629 = vxpose.xlu0.b32.cont [4/16] 0.0, 128
    %3630 = vxpose.xlu0.b32.cont [5/16] 0.0, 128
    %3631 = vxpose.xlu0.b32.cont [6/16] 0.0, 128
    %3632 = vxpose.xlu0.b32.cont [7/16] 0.0, 128
    %3633 = vxpose.xlu0.b32.cont [8/16] 0.0, 128
    %3634 = vxpose.xlu0.b32.cont [9/16] 0.0, 128
    %3635 = vxpose.xlu0.b32.cont [10/16] 0.0, 128
    %3636 = vxpose.xlu0.b32.cont [11/16] 0.0, 128
    %3637 = vxpose.xlu0.b32.cont [12/16] 0.0, 128
    %3638 = vxpose.xlu0.b32.cont [13/16] 0.0, 128
    %3639 = vxpose.xlu0.b32.cont [14/16] 0.0, 128
    %3640 = vxpose.xlu0.b32.cont [15/16] 0.0, 128
    %3641 = vxpose.xlu0.b32.end [16/16] 0.0, 128
    %v3642 = vpop.trf.xlu0
    %v3643 = vpop.trf.xlu0
    %v3644 = vpop.trf.xlu0
    %v3645 = vpop.trf.xlu0
    %v3646 = vpop.trf.xlu0
    %v3647 = vpop.trf.xlu0
    %v3648 = vpop.trf.xlu0
    %v3649 = vpop.trf.xlu0
    %v3650 = vpop.trf.xlu0
    %v3651 = vpop.trf.xlu0
    %v3652 = vpop.trf.xlu0
    %v3653 = vpop.trf.xlu0
    %v3654 = vpop.trf.xlu0
    %v3655 = vpop.trf.xlu0
    %v3656 = vpop.trf.xlu0
    %v3657 = vpop.trf.xlu0
    %v3659 = vsel %vm224, %v3642, 0
    %3661 = vmatprep.subr.mxu0 0.0
    %3662 = vmatpush1.msra.mxu0 0.0
    %3663 = vmatprep.subr.mxu0 0.0
    %3664 = vmatpush1.msra.mxu0 0.0
    %3665 = vmatprep.subr.mxu0 0.0
    %3666 = vmatpush1.msra.mxu0 0.0
    %3667 = vmatprep.subr.mxu0 0.0
    %3668 = vmatpush1.msra.mxu0 0.0
    %3669 = vmatprep.subr.mxu0 0.0
    %3670 = vmatpush1.msra.mxu0 0.0
    %3671 = vmatprep.subr.mxu0 0.0
    %3672 = vmatpush1.msra.mxu0 0.0
    %3673 = vmatprep.subr.mxu0 0.0
    %3674 = vmatpush1.msra.mxu0 0.0
    %3675 = vmatprep.subr.mxu0 0.0
    %3676 = vmatpush1.msra.mxu0 0.0
    %3677 = vmatprep.subr.mxu0 0.0
    %3678 = vmatpush1.msra.mxu0 0.0
    %3679 = vmatprep.subr.mxu0 0.0
    %3680 = vmatpush1.msra.mxu0 0.0
    %3681 = vmatprep.subr.mxu0 0.0
    %3682 = vmatpush1.msra.mxu0 0.0
    %3683 = vmatprep.subr.mxu0 0.0
    %3684 = vmatpush1.msra.mxu0 0.0
    %3685 = vmatprep.subr.mxu0 0.0
    %3686 = vmatpush1.msra.mxu0 0.0
    %3687 = vmatprep.subr.mxu0 0.0
    %3688 = vmatpush1.msra.mxu0 0.0
    %3689 = vmatprep.subr.mxu0 0.0
    %3690 = vmatpush1.msra.mxu0 0.0
    %3691 = vmatprep.subr.mxu0 0.0
    %3692 = vmatpush1.msra.mxu0 %v3281
    %3693 = vmatprep.subr.mxu0 0.0
    %3694 = vmatpush2.msra.mxu0 0.0
    %3695 = vmatprep.subr.mxu0 0.0
    %3696 = vmatpush2.msra.mxu0 0.0
    %3697 = vmatprep.subr.mxu0 0.0
    %3698 = vmatpush2.msra.mxu0 0.0
    %3699 = vmatprep.subr.mxu0 0.0
    %3700 = vmatpush2.msra.mxu0 0.0
    %3701 = vmatprep.subr.mxu0 0.0
    %3702 = vmatpush2.msra.mxu0 0.0
    %3703 = vmatprep.subr.mxu0 0.0
    %3704 = vmatpush2.msra.mxu0 0.0
    %3705 = vmatprep.subr.mxu0 0.0
    %3706 = vmatpush2.msra.mxu0 0.0
    %3707 = vmatprep.subr.mxu0 0.0
    %3708 = vmatpush2.msra.mxu0 0.0
    %3709 = vmatprep.subr.mxu0 0.0
    %3710 = vmatpush2.msra.mxu0 0.0
    %3711 = vmatprep.subr.mxu0 0.0
    %3712 = vmatpush2.msra.mxu0 0.0
    %3713 = vmatprep.subr.mxu0 0.0
    %3714 = vmatpush2.msra.mxu0 0.0
    %3715 = vmatprep.subr.mxu0 0.0
    %3716 = vmatpush2.msra.mxu0 0.0
    %3717 = vmatprep.subr.mxu0 0.0
    %3718 = vmatpush2.msra.mxu0 0.0
    %3719 = vmatprep.subr.mxu0 0.0
    %3720 = vmatpush2.msra.mxu0 0.0
    %3721 = vmatprep.subr.mxu0 0.0
    %3722 = vmatpush2.msra.mxu0 0.0
    %3723 = vmatprep.subr.mxu0 0.0
    %3724 = vmatpush2.msra.mxu0 0.0
    %3725 = vmatprep.mubr.f32.mxu0 0.0
    %3726 = vmatmul.mubr.f32.gmra.mxu0 %v3659
    %v3727 = vpop.f32.mrf.mxu0
    %v3728 = vadd.f32 0.0, %v3727
    %v3729 = vpop.f32.mrf.mxu0
    %3730 = vdwg.mxu0
    %3731 = vxpose.xlu0.b32.start [1/16] %v3405, 128
    %3732 = vxpose.xlu0.b32.cont [2/16] 0.0, 128
    %3733 = vxpose.xlu0.b32.cont [3/16] 0.0, 128
    %3734 = vxpose.xlu0.b32.cont [4/16] 0.0, 128
    %3735 = vxpose.xlu0.b32.cont [5/16] 0.0, 128
    %3736 = vxpose.xlu0.b32.cont [6/16] 0.0, 128
    %3737 = vxpose.xlu0.b32.cont [7/16] 0.0, 128
    %3738 = vxpose.xlu0.b32.cont [8/16] 0.0, 128
    %3739 = vxpose.xlu0.b32.cont [9/16] 0.0, 128
    %3740 = vxpose.xlu0.b32.cont [10/16] 0.0, 128
    %3741 = vxpose.xlu0.b32.cont [11/16] 0.0, 128
    %3742 = vxpose.xlu0.b32.cont [12/16] 0.0, 128
    %3743 = vxpose.xlu0.b32.cont [13/16] 0.0, 128
    %3744 = vxpose.xlu0.b32.cont [14/16] 0.0, 128
    %3745 = vxpose.xlu0.b32.cont [15/16] 0.0, 128
    %3746 = vxpose.xlu0.b32.end [16/16] 0.0, 128
    %v3747 = vpop.trf.xlu0
    %v3748 = vpop.trf.xlu0
    %v3749 = vpop.trf.xlu0
    %v3750 = vpop.trf.xlu0
    %v3751 = vpop.trf.xlu0
    %v3752 = vpop.trf.xlu0
    %v3753 = vpop.trf.xlu0
    %v3754 = vpop.trf.xlu0
    %v3755 = vpop.trf.xlu0
    %v3756 = vpop.trf.xlu0
    %v3757 = vpop.trf.xlu0
    %v3758 = vpop.trf.xlu0
    %v3759 = vpop.trf.xlu0
    %v3760 = vpop.trf.xlu0
    %v3761 = vpop.trf.xlu0
    %v3762 = vpop.trf.xlu0
    %v3764 = vsel %vm224, %v3747, 0
    %3766 = vmatprep.subr.mxu0 0.0
    %3767 = vmatpush1.msra.mxu0 0.0
    %3768 = vmatprep.subr.mxu0 0.0
    %3769 = vmatpush1.msra.mxu0 0.0
    %3770 = vmatprep.subr.mxu0 0.0
    %3771 = vmatpush1.msra.mxu0 0.0
    %3772 = vmatprep.subr.mxu0 0.0
    %3773 = vmatpush1.msra.mxu0 0.0
    %3774 = vmatprep.subr.mxu0 0.0
    %3775 = vmatpush1.msra.mxu0 0.0
    %3776 = vmatprep.subr.mxu0 0.0
    %3777 = vmatpush1.msra.mxu0 0.0
    %3778 = vmatprep.subr.mxu0 0.0
    %3779 = vmatpush1.msra.mxu0 0.0
    %3780 = vmatprep.subr.mxu0 0.0
    %3781 = vmatpush1.msra.mxu0 0.0
    %3782 = vmatprep.subr.mxu0 0.0
    %3783 = vmatpush1.msra.mxu0 0.0
    %3784 = vmatprep.subr.mxu0 0.0
    %3785 = vmatpush1.msra.mxu0 0.0
    %3786 = vmatprep.subr.mxu0 0.0
    %3787 = vmatpush1.msra.mxu0 0.0
    %3788 = vmatprep.subr.mxu0 0.0
    %3789 = vmatpush1.msra.mxu0 0.0
    %3790 = vmatprep.subr.mxu0 0.0
    %3791 = vmatpush1.msra.mxu0 0.0
    %3792 = vmatprep.subr.mxu0 0.0
    %3793 = vmatpush1.msra.mxu0 0.0
    %3794 = vmatprep.subr.mxu0 0.0
    %3795 = vmatpush1.msra.mxu0 0.0
    %3796 = vmatprep.subr.mxu0 0.0
    %3797 = vmatpush1.msra.mxu0 %v3286
    %3798 = vmatprep.subr.mxu0 0.0
    %3799 = vmatpush2.msra.mxu0 0.0
    %3800 = vmatprep.subr.mxu0 0.0
    %3801 = vmatpush2.msra.mxu0 0.0
    %3802 = vmatprep.subr.mxu0 0.0
    %3803 = vmatpush2.msra.mxu0 0.0
    %3804 = vmatprep.subr.mxu0 0.0
    %3805 = vmatpush2.msra.mxu0 0.0
    %3806 = vmatprep.subr.mxu0 0.0
    %3807 = vmatpush2.msra.mxu0 0.0
    %3808 = vmatprep.subr.mxu0 0.0
    %3809 = vmatpush2.msra.mxu0 0.0
    %3810 = vmatprep.subr.mxu0 0.0
    %3811 = vmatpush2.msra.mxu0 0.0
    %3812 = vmatprep.subr.mxu0 0.0
    %3813 = vmatpush2.msra.mxu0 0.0
    %3814 = vmatprep.subr.mxu0 0.0
    %3815 = vmatpush2.msra.mxu0 0.0
    %3816 = vmatprep.subr.mxu0 0.0
    %3817 = vmatpush2.msra.mxu0 0.0
    %3818 = vmatprep.subr.mxu0 0.0
    %3819 = vmatpush2.msra.mxu0 0.0
    %3820 = vmatprep.subr.mxu0 0.0
    %3821 = vmatpush2.msra.mxu0 0.0
    %3822 = vmatprep.subr.mxu0 0.0
    %3823 = vmatpush2.msra.mxu0 0.0
    %3824 = vmatprep.subr.mxu0 0.0
    %3825 = vmatpush2.msra.mxu0 0.0
    %3826 = vmatprep.subr.mxu0 0.0
    %3827 = vmatpush2.msra.mxu0 0.0
    %3828 = vmatprep.subr.mxu0 0.0
    %3829 = vmatpush2.msra.mxu0 0.0
    %3830 = vmatprep.mubr.f32.mxu0 0.0
    %3831 = vmatmul.mubr.f32.gmra.mxu0 %v3764
    %v3832 = vpop.f32.mrf.mxu0
    %v3833 = vadd.f32 0.0, %v3832
    %v3834 = vpop.f32.mrf.mxu0
    %3835 = vdwg.mxu0
    %v3836 = vadd.f32 %v3518, %v3408
    %v3837 = vadd.f32 %v3623, %v3409
    %v3838 = vadd.f32 %v3728, %v3410
    %v3839 = vadd.f32 %v3833, %v3411
    %v3840 = vsel %vm978, %v3836, -inf
    %3841 = vmax.xlane.f32.xlu0 %v3840
    %v3842 = vpop.xlane.xlu0 %3841
    %v3843 = vsel %vm978, %v3837, -inf
    %3844 = vmax.xlane.f32.xlu0 %v3843
    %v3845 = vpop.xlane.xlu0 %3844
    %v3846 = vsel %vm978, %v3838, -inf
    %3847 = vmax.xlane.f32.xlu0 %v3846
    %v3848 = vpop.xlane.xlu0 %3847
    %v3849 = vsel %vm978, %v3839, -inf
    %3850 = vmax.xlane.f32.xlu0 %v3849
    %v3851 = vpop.xlane.xlu0 %3850
    %v3852 = vsub.f32 %v3836, %v3842
    %v3853 = vsub.f32 %v3837, %v3845
    %v3854 = vsub.f32 %v3838, %v3848
    %v3855 = vsub.f32 %v3839, %v3851
    %v3856 = vmul.f32 %v3852, 1.442695
    %v3857 = vpow.pop %v3856
    %v3858 = vmul.f32 %v3853, 1.442695
    %v3859 = vpow.pop %v3858
    %v3860 = vmul.f32 %v3854, 1.442695
    %v3861 = vpow.pop %v3860
    %v3862 = vmul.f32 %v3855, 1.442695
    %v3863 = vpow.pop %v3862
    %v3864 = vsel %vm978, %v3857, 0.0
    %3865 = vadd.xlane.f32.xlu0 %v3864
    %v3866 = vpop.xlane.xlu0 %3865
    %v3867 = vsel %vm978, %v3859, 0.0
    %3868 = vadd.xlane.f32.xlu0 %v3867
    %v3869 = vpop.xlane.xlu0 %3868
    %v3870 = vsel %vm978, %v3861, 0.0
    %3871 = vadd.xlane.f32.xlu0 %v3870
    %v3872 = vpop.xlane.xlu0 %3871
    %v3873 = vsel %vm978, %v3863, 0.0
    %3874 = vadd.xlane.f32.xlu0 %v3873
    %v3875 = vpop.xlane.xlu0 %3874
    %v3876 = vrcp.pop %v3866
    %v3877 = vmul.f32 %v3857, %v3876
    %v3878 = vrcp.pop %v3869
    %v3879 = vmul.f32 %v3859, %v3878
    %v3880 = vrcp.pop %v3872
    %v3881 = vmul.f32 %v3861, %v3880
    %v3882 = vrcp.pop %v3875
    %v3883 = vmul.f32 %v3863, %v3882
    %v3885 = vsel %vm978, %v3877, 0
    %v3888 = vsel %vm978, %v3271, 0
    %3890 = vmatprep.subr.mxu0 0.0
    %3891 = vmatpush1.xpose.msra.mxu0 0.0
    %3892 = vmatprep.subr.mxu0 0.0
    %3893 = vmatpush1.xpose.msra.mxu0 0.0
    %3894 = vmatprep.subr.mxu0 0.0
    %3895 = vmatpush1.xpose.msra.mxu0 0.0
    %3896 = vmatprep.subr.mxu0 0.0
    %3897 = vmatpush1.xpose.msra.mxu0 0.0
    %3898 = vmatprep.subr.mxu0 0.0
    %3899 = vmatpush1.xpose.msra.mxu0 0.0
    %3900 = vmatprep.subr.mxu0 0.0
    %3901 = vmatpush1.xpose.msra.mxu0 0.0
    %3902 = vmatprep.subr.mxu0 0.0
    %3903 = vmatpush1.xpose.msra.mxu0 0.0
    %3904 = vmatprep.subr.mxu0 0.0
    %3905 = vmatpush1.xpose.msra.mxu0 0.0
    %3906 = vmatprep.subr.mxu0 0.0
    %3907 = vmatpush1.xpose.msra.mxu0 0.0
    %3908 = vmatprep.subr.mxu0 0.0
    %3909 = vmatpush1.xpose.msra.mxu0 0.0
    %3910 = vmatprep.subr.mxu0 0.0
    %3911 = vmatpush1.xpose.msra.mxu0 0.0
    %3912 = vmatprep.subr.mxu0 0.0
    %3913 = vmatpush1.xpose.msra.mxu0 0.0
    %3914 = vmatprep.subr.mxu0 0.0
    %3915 = vmatpush1.xpose.msra.mxu0 0.0
    %3916 = vmatprep.subr.mxu0 0.0
    %3917 = vmatpush1.xpose.msra.mxu0 0.0
    %3918 = vmatprep.subr.mxu0 0.0
    %3919 = vmatpush1.xpose.msra.mxu0 0.0
    %3920 = vmatprep.subr.mxu0 0.0
    %3921 = vmatpush1.xpose.msra.mxu0 %v3888
    %3922 = vmatprep.subr.mxu0 0.0
    %3923 = vmatpush2.xpose.msra.mxu0 0.0
    %3924 = vmatprep.subr.mxu0 0.0
    %3925 = vmatpush2.xpose.msra.mxu0 0.0
    %3926 = vmatprep.subr.mxu0 0.0
    %3927 = vmatpush2.xpose.msra.mxu0 0.0
    %3928 = vmatprep.subr.mxu0 0.0
    %3929 = vmatpush2.xpose.msra.mxu0 0.0
    %3930 = vmatprep.subr.mxu0 0.0
    %3931 = vmatpush2.xpose.msra.mxu0 0.0
    %3932 = vmatprep.subr.mxu0 0.0
    %3933 = vmatpush2.xpose.msra.mxu0 0.0
    %3934 = vmatprep.subr.mxu0 0.0
    %3935 = vmatpush2.xpose.msra.mxu0 0.0
    %3936 = vmatprep.subr.mxu0 0.0
    %3937 = vmatpush2.xpose.msra.mxu0 0.0
    %3938 = vmatprep.subr.mxu0 0.0
    %3939 = vmatpush2.xpose.msra.mxu0 0.0
    %3940 = vmatprep.subr.mxu0 0.0
    %3941 = vmatpush2.xpose.msra.mxu0 0.0
    %3942 = vmatprep.subr.mxu0 0.0
    %3943 = vmatpush2.xpose.msra.mxu0 0.0
    %3944 = vmatprep.subr.mxu0 0.0
    %3945 = vmatpush2.xpose.msra.mxu0 0.0
    %3946 = vmatprep.subr.mxu0 0.0
    %3947 = vmatpush2.xpose.msra.mxu0 0.0
    %3948 = vmatprep.subr.mxu0 0.0
    %3949 = vmatpush2.xpose.msra.mxu0 0.0
    %3950 = vmatprep.subr.mxu0 0.0
    %3951 = vmatpush2.xpose.msra.mxu0 0.0
    %3952 = vmatprep.subr.mxu0 0.0
    %3953 = vmatpush2.xpose.msra.mxu0 0.0
    %3954 = vmatprep.mubr.f32.mxu0 0.0
    %3955 = vmatmul.mubr.f32.gmra.mxu0 %v3885
    %v3956 = vpop.f32.mrf.mxu0
    %v3957 = vadd.f32 0.0, %v3956
    %v3958 = vpop.f32.mrf.mxu0
    %3959 = vdwg.mxu0
    %v3961 = vsel %vm978, %v3879, 0
    %v3964 = vsel %vm978, %v3276, 0
    %3966 = vmatprep.subr.mxu0 0.0
    %3967 = vmatpush1.xpose.msra.mxu0 0.0
    %3968 = vmatprep.subr.mxu0 0.0
    %3969 = vmatpush1.xpose.msra.mxu0 0.0
    %3970 = vmatprep.subr.mxu0 0.0
    %3971 = vmatpush1.xpose.msra.mxu0 0.0
    %3972 = vmatprep.subr.mxu0 0.0
    %3973 = vmatpush1.xpose.msra.mxu0 0.0
    %3974 = vmatprep.subr.mxu0 0.0
    %3975 = vmatpush1.xpose.msra.mxu0 0.0
    %3976 = vmatprep.subr.mxu0 0.0
    %3977 = vmatpush1.xpose.msra.mxu0 0.0
    %3978 = vmatprep.subr.mxu0 0.0
    %3979 = vmatpush1.xpose.msra.mxu0 0.0
    %3980 = vmatprep.subr.mxu0 0.0
    %3981 = vmatpush1.xpose.msra.mxu0 0.0
    %3982 = vmatprep.subr.mxu0 0.0
    %3983 = vmatpush1.xpose.msra.mxu0 0.0
    %3984 = vmatprep.subr.mxu0 0.0
    %3985 = vmatpush1.xpose.msra.mxu0 0.0
    %3986 = vmatprep.subr.mxu0 0.0
    %3987 = vmatpush1.xpose.msra.mxu0 0.0
    %3988 = vmatprep.subr.mxu0 0.0
    %3989 = vmatpush1.xpose.msra.mxu0 0.0
    %3990 = vmatprep.subr.mxu0 0.0
    %3991 = vmatpush1.xpose.msra.mxu0 0.0
    %3992 = vmatprep.subr.mxu0 0.0
    %3993 = vmatpush1.xpose.msra.mxu0 0.0
    %3994 = vmatprep.subr.mxu0 0.0
    %3995 = vmatpush1.xpose.msra.mxu0 0.0
    %3996 = vmatprep.subr.mxu0 0.0
    %3997 = vmatpush1.xpose.msra.mxu0 %v3964
    %3998 = vmatprep.subr.mxu0 0.0
    %3999 = vmatpush2.xpose.msra.mxu0 0.0
    %4000 = vmatprep.subr.mxu0 0.0
    %4001 = vmatpush2.xpose.msra.mxu0 0.0
    %4002 = vmatprep.subr.mxu0 0.0
    %4003 = vmatpush2.xpose.msra.mxu0 0.0
    %4004 = vmatprep.subr.mxu0 0.0
    %4005 = vmatpush2.xpose.msra.mxu0 0.0
    %4006 = vmatprep.subr.mxu0 0.0
    %4007 = vmatpush2.xpose.msra.mxu0 0.0
    %4008 = vmatprep.subr.mxu0 0.0
    %4009 = vmatpush2.xpose.msra.mxu0 0.0
    %4010 = vmatprep.subr.mxu0 0.0
    %4011 = vmatpush2.xpose.msra.mxu0 0.0
    %4012 = vmatprep.subr.mxu0 0.0
    %4013 = vmatpush2.xpose.msra.mxu0 0.0
    %4014 = vmatprep.subr.mxu0 0.0
    %4015 = vmatpush2.xpose.msra.mxu0 0.0
    %4016 = vmatprep.subr.mxu0 0.0
    %4017 = vmatpush2.xpose.msra.mxu0 0.0
    %4018 = vmatprep.subr.mxu0 0.0
    %4019 = vmatpush2.xpose.msra.mxu0 0.0
    %4020 = vmatprep.subr.mxu0 0.0
    %4021 = vmatpush2.xpose.msra.mxu0 0.0
    %4022 = vmatprep.subr.mxu0 0.0
    %4023 = vmatpush2.xpose.msra.mxu0 0.0
    %4024 = vmatprep.subr.mxu0 0.0
    %4025 = vmatpush2.xpose.msra.mxu0 0.0
    %4026 = vmatprep.subr.mxu0 0.0
    %4027 = vmatpush2.xpose.msra.mxu0 0.0
    %4028 = vmatprep.subr.mxu0 0.0
    %4029 = vmatpush2.xpose.msra.mxu0 0.0
    %4030 = vmatprep.mubr.f32.mxu0 0.0
    %4031 = vmatmul.mubr.f32.gmra.mxu0 %v3961
    %v4032 = vpop.f32.mrf.mxu0
    %v4033 = vadd.f32 0.0, %v4032
    %v4034 = vpop.f32.mrf.mxu0
    %4035 = vdwg.mxu0
    %v4037 = vsel %vm978, %v3881, 0
    %v4040 = vsel %vm978, %v3281, 0
    %4042 = vmatprep.subr.mxu0 0.0
    %4043 = vmatpush1.xpose.msra.mxu0 0.0
    %4044 = vmatprep.subr.mxu0 0.0
    %4045 = vmatpush1.xpose.msra.mxu0 0.0
    %4046 = vmatprep.subr.mxu0 0.0
    %4047 = vmatpush1.xpose.msra.mxu0 0.0
    %4048 = vmatprep.subr.mxu0 0.0
    %4049 = vmatpush1.xpose.msra.mxu0 0.0
    %4050 = vmatprep.subr.mxu0 0.0
    %4051 = vmatpush1.xpose.msra.mxu0 0.0
    %4052 = vmatprep.subr.mxu0 0.0
    %4053 = vmatpush1.xpose.msra.mxu0 0.0
    %4054 = vmatprep.subr.mxu0 0.0
    %4055 = vmatpush1.xpose.msra.mxu0 0.0
    %4056 = vmatprep.subr.mxu0 0.0
    %4057 = vmatpush1.xpose.msra.mxu0 0.0
    %4058 = vmatprep.subr.mxu0 0.0
    %4059 = vmatpush1.xpose.msra.mxu0 0.0
    %4060 = vmatprep.subr.mxu0 0.0
    %4061 = vmatpush1.xpose.msra.mxu0 0.0
    %4062 = vmatprep.subr.mxu0 0.0
    %4063 = vmatpush1.xpose.msra.mxu0 0.0
    %4064 = vmatprep.subr.mxu0 0.0
    %4065 = vmatpush1.xpose.msra.mxu0 0.0
    %4066 = vmatprep.subr.mxu0 0.0
    %4067 = vmatpush1.xpose.msra.mxu0 0.0
    %4068 = vmatprep.subr.mxu0 0.0
    %4069 = vmatpush1.xpose.msra.mxu0 0.0
    %4070 = vmatprep.subr.mxu0 0.0
    %4071 = vmatpush1.xpose.msra.mxu0 0.0
    %4072 = vmatprep.subr.mxu0 0.0
    %4073 = vmatpush1.xpose.msra.mxu0 %v4040
    %4074 = vmatprep.subr.mxu0 0.0
    %4075 = vmatpush2.xpose.msra.mxu0 0.0
    %4076 = vmatprep.subr.mxu0 0.0
    %4077 = vmatpush2.xpose.msra.mxu0 0.0
    %4078 = vmatprep.subr.mxu0 0.0
    %4079 = vmatpush2.xpose.msra.mxu0 0.0
    %4080 = vmatprep.subr.mxu0 0.0
    %4081 = vmatpush2.xpose.msra.mxu0 0.0
    %4082 = vmatprep.subr.mxu0 0.0
    %4083 = vmatpush2.xpose.msra.mxu0 0.0
    %4084 = vmatprep.subr.mxu0 0.0
    %4085 = vmatpush2.xpose.msra.mxu0 0.0
    %4086 = vmatprep.subr.mxu0 0.0
    %4087 = vmatpush2.xpose.msra.mxu0 0.0
    %4088 = vmatprep.subr.mxu0 0.0
    %4089 = vmatpush2.xpose.msra.mxu0 0.0
    %4090 = vmatprep.subr.mxu0 0.0
    %4091 = vmatpush2.xpose.msra.mxu0 0.0
    %4092 = vmatprep.subr.mxu0 0.0
    %4093 = vmatpush2.xpose.msra.mxu0 0.0
    %4094 = vmatprep.subr.mxu0 0.0
    %4095 = vmatpush2.xpose.msra.mxu0 0.0
    %4096 = vmatprep.subr.mxu0 0.0
    %4097 = vmatpush2.xpose.msra.mxu0 0.0
    %4098 = vmatprep.subr.mxu0 0.0
    %4099 = vmatpush2.xpose.msra.mxu0 0.0
    %4100 = vmatprep.subr.mxu0 0.0
    %4101 = vmatpush2.xpose.msra.mxu0 0.0
    %4102 = vmatprep.subr.mxu0 0.0
    %4103 = vmatpush2.xpose.msra.mxu0 0.0
    %4104 = vmatprep.subr.mxu0 0.0
    %4105 = vmatpush2.xpose.msra.mxu0 0.0
    %4106 = vmatprep.mubr.f32.mxu0 0.0
    %4107 = vmatmul.mubr.f32.gmra.mxu0 %v4037
    %v4108 = vpop.f32.mrf.mxu0
    %v4109 = vadd.f32 0.0, %v4108
    %v4110 = vpop.f32.mrf.mxu0
    %4111 = vdwg.mxu0
    %v4113 = vsel %vm978, %v3883, 0
    %v4116 = vsel %vm978, %v3286, 0
    %4118 = vmatprep.subr.mxu0 0.0
    %4119 = vmatpush1.xpose.msra.mxu0 0.0
    %4120 = vmatprep.subr.mxu0 0.0
    %4121 = vmatpush1.xpose.msra.mxu0 0.0
    %4122 = vmatprep.subr.mxu0 0.0
    %4123 = vmatpush1.xpose.msra.mxu0 0.0
    %4124 = vmatprep.subr.mxu0 0.0
    %4125 = vmatpush1.xpose.msra.mxu0 0.0
    %4126 = vmatprep.subr.mxu0 0.0
    %4127 = vmatpush1.xpose.msra.mxu0 0.0
    %4128 = vmatprep.subr.mxu0 0.0
    %4129 = vmatpush1.xpose.msra.mxu0 0.0
    %4130 = vmatprep.subr.mxu0 0.0
    %4131 = vmatpush1.xpose.msra.mxu0 0.0
    %4132 = vmatprep.subr.mxu0 0.0
    %4133 = vmatpush1.xpose.msra.mxu0 0.0
    %4134 = vmatprep.subr.mxu0 0.0
    %4135 = vmatpush1.xpose.msra.mxu0 0.0
    %4136 = vmatprep.subr.mxu0 0.0
    %4137 = vmatpush1.xpose.msra.mxu0 0.0
    %4138 = vmatprep.subr.mxu0 0.0
    %4139 = vmatpush1.xpose.msra.mxu0 0.0
    %4140 = vmatprep.subr.mxu0 0.0
    %4141 = vmatpush1.xpose.msra.mxu0 0.0
    %4142 = vmatprep.subr.mxu0 0.0
    %4143 = vmatpush1.xpose.msra.mxu0 0.0
    %4144 = vmatprep.subr.mxu0 0.0
    %4145 = vmatpush1.xpose.msra.mxu0 0.0
    %4146 = vmatprep.subr.mxu0 0.0
    %4147 = vmatpush1.xpose.msra.mxu0 0.0
    %4148 = vmatprep.subr.mxu0 0.0
    %4149 = vmatpush1.xpose.msra.mxu0 %v4116
    %4150 = vmatprep.subr.mxu0 0.0
    %4151 = vmatpush2.xpose.msra.mxu0 0.0
    %4152 = vmatprep.subr.mxu0 0.0
    %4153 = vmatpush2.xpose.msra.mxu0 0.0
    %4154 = vmatprep.subr.mxu0 0.0
    %4155 = vmatpush2.xpose.msra.mxu0 0.0
    %4156 = vmatprep.subr.mxu0 0.0
    %4157 = vmatpush2.xpose.msra.mxu0 0.0
    %4158 = vmatprep.subr.mxu0 0.0
    %4159 = vmatpush2.xpose.msra.mxu0 0.0
    %4160 = vmatprep.subr.mxu0 0.0
    %4161 = vmatpush2.xpose.msra.mxu0 0.0
    %4162 = vmatprep.subr.mxu0 0.0
    %4163 = vmatpush2.xpose.msra.mxu0 0.0
    %4164 = vmatprep.subr.mxu0 0.0
    %4165 = vmatpush2.xpose.msra.mxu0 0.0
    %4166 = vmatprep.subr.mxu0 0.0
    %4167 = vmatpush2.xpose.msra.mxu0 0.0
    %4168 = vmatprep.subr.mxu0 0.0
    %4169 = vmatpush2.xpose.msra.mxu0 0.0
    %4170 = vmatprep.subr.mxu0 0.0
    %4171 = vmatpush2.xpose.msra.mxu0 0.0
    %4172 = vmatprep.subr.mxu0 0.0
    %4173 = vmatpush2.xpose.msra.mxu0 0.0
    %4174 = vmatprep.subr.mxu0 0.0
    %4175 = vmatpush2.xpose.msra.mxu0 0.0
    %4176 = vmatprep.subr.mxu0 0.0
    %4177 = vmatpush2.xpose.msra.mxu0 0.0
    %4178 = vmatprep.subr.mxu0 0.0
    %4179 = vmatpush2.xpose.msra.mxu0 0.0
    %4180 = vmatprep.subr.mxu0 0.0
    %4181 = vmatpush2.xpose.msra.mxu0 0.0
    %4182 = vmatprep.mubr.f32.mxu0 0.0
    %4183 = vmatmul.mubr.f32.gmra.mxu0 %v4113
    %v4184 = vpop.f32.mrf.mxu0
    %v4185 = vadd.f32 0.0, %v4184
    %v4186 = vpop.f32.mrf.mxu0
    %4187 = vdwg.mxu0
    %4189 = vrot.lane.b32.xlu0 %v4033, 8
    %v4190 = vpop.permute.xlu0 %4189
    %4193 = vrot.lane.b32.xlu0 %v4109, 16
    %v4194 = vpop.permute.xlu0 %4193
    %4197 = vrot.lane.b32.xlu0 %v4185, 24
    %v4198 = vpop.permute.xlu0 %4197
    %v4200 = vsel %vm224, %v3957, %v4190
    %v4201 = vsel %vm978, %v4200, %v4194
    %v4202 = vsel %vm980, %v4201, %v4198
    %v4204 = vsel %vm19, %v4202, 0
    %4206 = vmatprep.subr.mxu0 0.0
    %4207 = vmatpush1.msra.mxu0 0.0
    %4208 = vmatprep.subr.mxu0 0.0
    %4209 = vmatpush1.msra.mxu0 0.0
    %4210 = vmatprep.subr.mxu0 0.0
    %4211 = vmatpush1.msra.mxu0 0.0
    %4212 = vmatprep.subr.mxu0 0.0
    %4213 = vmatpush1.msra.mxu0 0.0
    %4214 = vmatprep.subr.mxu0 0.0
    %4215 = vmatpush1.msra.mxu0 0.0
    %4216 = vmatprep.subr.mxu0 0.0
    %4217 = vmatpush1.msra.mxu0 0.0
    %4218 = vmatprep.subr.mxu0 0.0
    %4219 = vmatpush1.msra.mxu0 0.0
    %4220 = vmatprep.subr.mxu0 0.0
    %4221 = vmatpush1.msra.mxu0 0.0
    %4222 = vmatprep.subr.mxu0 0.0
    %4223 = vmatpush1.msra.mxu0 0.0
    %4224 = vmatprep.subr.mxu0 0.0
    %4225 = vmatpush1.msra.mxu0 0.0
    %4226 = vmatprep.subr.mxu0 0.0
    %4227 = vmatpush1.msra.mxu0 0.0
    %4228 = vmatprep.subr.mxu0 0.0
    %4229 = vmatpush1.msra.mxu0 0.0
    %4230 = vmatprep.subr.mxu0 0.0
    %4231 = vmatpush1.msra.mxu0 %v3415
    %4232 = vmatprep.subr.mxu0 0.0
    %4233 = vmatpush1.msra.mxu0 %v3414
    %4234 = vmatprep.subr.mxu0 0.0
    %4235 = vmatpush1.msra.mxu0 %v3413
    %4236 = vmatprep.subr.mxu0 0.0
    %4237 = vmatpush1.msra.mxu0 %v3412
    %4238 = vmatprep.subr.mxu0 0.0
    %4239 = vmatpush2.msra.mxu0 0.0
    %4240 = vmatprep.subr.mxu0 0.0
    %4241 = vmatpush2.msra.mxu0 0.0
    %4242 = vmatprep.subr.mxu0 0.0
    %4243 = vmatpush2.msra.mxu0 0.0
    %4244 = vmatprep.subr.mxu0 0.0
    %4245 = vmatpush2.msra.mxu0 0.0
    %4246 = vmatprep.subr.mxu0 0.0
    %4247 = vmatpush2.msra.mxu0 0.0
    %4248 = vmatprep.subr.mxu0 0.0
    %4249 = vmatpush2.msra.mxu0 0.0
    %4250 = vmatprep.subr.mxu0 0.0
    %4251 = vmatpush2.msra.mxu0 0.0
    %4252 = vmatprep.subr.mxu0 0.0
    %4253 = vmatpush2.msra.mxu0 0.0
    %4254 = vmatprep.subr.mxu0 0.0
    %4255 = vmatpush2.msra.mxu0 0.0
    %4256 = vmatprep.subr.mxu0 0.0
    %4257 = vmatpush2.msra.mxu0 0.0
    %4258 = vmatprep.subr.mxu0 0.0
    %4259 = vmatpush2.msra.mxu0 0.0
    %4260 = vmatprep.subr.mxu0 0.0
    %4261 = vmatpush2.msra.mxu0 0.0
    %4262 = vmatprep.subr.mxu0 0.0
    %4263 = vmatpush2.msra.mxu0 0.0
    %4264 = vmatprep.subr.mxu0 0.0
    %4265 = vmatpush2.msra.mxu0 0.0
    %4266 = vmatprep.subr.mxu0 0.0
    %4267 = vmatpush2.msra.mxu0 0.0
    %4268 = vmatprep.subr.mxu0 0.0
    %4269 = vmatpush2.msra.mxu0 0.0
    %4270 = vmatprep.mubr.f32.mxu0 0.0
    %4271 = vmatmul.mubr.f32.gmra.mxu0 %v4204
    %v4272 = vpop.f32.mrf.mxu0
    %v4273 = vadd.f32 %v3181, %v4272
    %v4274 = vpop.f32.mrf.mxu0
    %4275 = vdwg.mxu0
    %s4276 = scalar_lea.vmem %s4, 32
    %4277 = vst.msk [vmem:[%s4276] sm:$0xff] %vm978, %v3877
    %4278 = vst.msk [vmem:[%s4276 + $0x8] sm:$0xff] %vm978, %v3879
    %4279 = vst.msk [vmem:[%s4276 + $0x10] sm:$0xff] %vm978, %v3881
    %4280 = vst.msk [vmem:[%s4276 + $0x18] sm:$0xff] %vm978, %v3883
    %v4281 = vsel %vm19, %v2152, 0.0
    %4282 = vadd.xlane.f32.xlu0 %v4281
    %v4283 = vpop.xlane.xlu0 %4282
    %v4284 = vsel %vm19, %v4273, 0.0
    %4285 = vadd.xlane.f32.xlu0 %v4284
    %v4286 = vpop.xlane.xlu0 %4285
    %v4287 = vmul.f32 %v4283, %v23
    %v4288 = vmul.f32 %v4286, %v23
    %v4289 = vsub.f32 %v2152, %v4287
    %v4290 = vsub.f32 %v4273, %v4288
    %v4291 = vmul.f32 %v4289, %v4289
    %v4292 = vmul.f32 %v4290, %v4290
    %v4293 = vsel %vm19, %v4291, 0.0
    %4294 = vadd.xlane.f32.xlu0 %v4293
    %v4295 = vpop.xlane.xlu0 %4294
    %v4296 = vsel %vm19, %v4292, 0.0
    %4297 = vadd.xlane.f32.xlu0 %v4296
    %v4298 = vpop.xlane.xlu0 %4297
    %v4299 = vmul.f32 %v4295, %v23
    %v4300 = vmul.f32 %v4298, %v23
    %v4301 = vadd.f32 %v4299, 1e-05
    %v4302 = vadd.f32 %v4300, 1e-05
    %v4303 = vrsqrt.pop %v4301
    %v4304 = vrsqrt.pop %v4302
    %v4305 = vmul.f32 %v4289, %v4303
    %v4306 = vmul.f32 %v4290, %v4304
    %v4307 = vlaneseq
    %v4308 = vshrl.u32 %v4307, 7
    %v4309 = vsub.s32 4, %v4308
    %v4310 = vrot.slane %v17, %v4309
    %v4311 = vmul.f32 %v4305, %v4310
    %v4312 = vmul.f32 %v4306, %v4310
    %v4313 = vlaneseq
    %v4314 = vshrl.u32 %v4313, 7
    %v4315 = vsub.s32 5, %v4314
    %v4316 = vrot.slane %v17, %v4315
    %v4317 = vadd.f32 %v4311, %v4316
    %v4318 = vadd.f32 %v4312, %v4316
    %v4319 = vld [vmem:[%s2] sm:$0xff]
    %v4320 = vld [vmem:[%s2 + $0x8] sm:$0xff]
    %v4321 = vld [vmem:[%s2 + $0x10] sm:$0xff]
    %v4322 = vld [vmem:[%s2 + $0x18] sm:$0xff]
    %v4324 = vsel %vm19, %v4317, 0
    %v4327 = vsel %vm19, %v4318, 0
    %4329 = vmatprep.subr.mxu0 0.0
    %4330 = vmatpush1.msra.mxu0 0.0
    %4331 = vmatprep.subr.mxu0 0.0
    %4332 = vmatpush1.msra.mxu0 0.0
    %4333 = vmatprep.subr.mxu0 0.0
    %4334 = vmatpush1.msra.mxu0 0.0
    %4335 = vmatprep.subr.mxu0 0.0
    %4336 = vmatpush1.msra.mxu0 0.0
    %4337 = vmatprep.subr.mxu0 0.0
    %4338 = vmatpush1.msra.mxu0 0.0
    %4339 = vmatprep.subr.mxu0 0.0
    %4340 = vmatpush1.msra.mxu0 0.0
    %4341 = vmatprep.subr.mxu0 0.0
    %4342 = vmatpush1.msra.mxu0 0.0
    %4343 = vmatprep.subr.mxu0 0.0
    %4344 = vmatpush1.msra.mxu0 0.0
    %4345 = vmatprep.subr.mxu0 0.0
    %4346 = vmatpush1.msra.mxu0 0.0
    %4347 = vmatprep.subr.mxu0 0.0
    %4348 = vmatpush1.msra.mxu0 0.0
    %4349 = vmatprep.subr.mxu0 0.0
    %4350 = vmatpush1.msra.mxu0 0.0
    %4351 = vmatprep.subr.mxu0 0.0
    %4352 = vmatpush1.msra.mxu0 0.0
    %4353 = vmatprep.subr.mxu0 0.0
    %4354 = vmatpush1.msra.mxu0 %v4322
    %4355 = vmatprep.subr.mxu0 0.0
    %4356 = vmatpush1.msra.mxu0 %v4321
    %4357 = vmatprep.subr.mxu0 0.0
    %4358 = vmatpush1.msra.mxu0 %v4320
    %4359 = vmatprep.subr.mxu0 0.0
    %4360 = vmatpush1.msra.mxu0 %v4319
    %4361 = vmatprep.subr.mxu0 0.0
    %4362 = vmatpush2.msra.mxu0 0.0
    %4363 = vmatprep.subr.mxu0 0.0
    %4364 = vmatpush2.msra.mxu0 0.0
    %4365 = vmatprep.subr.mxu0 0.0
    %4366 = vmatpush2.msra.mxu0 0.0
    %4367 = vmatprep.subr.mxu0 0.0
    %4368 = vmatpush2.msra.mxu0 0.0
    %4369 = vmatprep.subr.mxu0 0.0
    %4370 = vmatpush2.msra.mxu0 0.0
    %4371 = vmatprep.subr.mxu0 0.0
    %4372 = vmatpush2.msra.mxu0 0.0
    %4373 = vmatprep.subr.mxu0 0.0
    %4374 = vmatpush2.msra.mxu0 0.0
    %4375 = vmatprep.subr.mxu0 0.0
    %4376 = vmatpush2.msra.mxu0 0.0
    %4377 = vmatprep.subr.mxu0 0.0
    %4378 = vmatpush2.msra.mxu0 0.0
    %4379 = vmatprep.subr.mxu0 0.0
    %4380 = vmatpush2.msra.mxu0 0.0
    %4381 = vmatprep.subr.mxu0 0.0
    %4382 = vmatpush2.msra.mxu0 0.0
    %4383 = vmatprep.subr.mxu0 0.0
    %4384 = vmatpush2.msra.mxu0 0.0
    %4385 = vmatprep.subr.mxu0 0.0
    %4386 = vmatpush2.msra.mxu0 0.0
    %4387 = vmatprep.subr.mxu0 0.0
    %4388 = vmatpush2.msra.mxu0 0.0
    %4389 = vmatprep.subr.mxu0 0.0
    %4390 = vmatpush2.msra.mxu0 0.0
    %4391 = vmatprep.subr.mxu0 0.0
    %4392 = vmatpush2.msra.mxu0 0.0
    %4393 = vmatprep.mubr.f32.mxu0 0.0
    %4394 = vmatmul.mubr.f32.gmra.mxu0 %v4324
    %v4395 = vpop.f32.mrf.mxu0
    %v4396 = vadd.f32 0.0, %v4395
    %v4397 = vpop.f32.mrf.mxu0
    %4398 = vmatprep.mubr.f32.mxu0 0.0
    %4399 = vmatmul.mubr.f32.gmra.mxu0 %v4327
    %v4400 = vpop.f32.mrf.mxu0
    %v4401 = vadd.f32 0.0, %v4400
    %v4402 = vpop.f32.mrf.mxu0
    %4403 = vdwg.mxu0
    %v4404 = vmax.f32 %v4396, 0.0
    %v4405 = vmax.f32 %v4401, 0.0
    %v4406 = vld [vmem:[%s1 + $0xc0] sm:$0xff]
    %v4407 = vld [vmem:[%s1 + $0xc8] sm:$0xff]
    %v4408 = vld [vmem:[%s1 + $0xd0] sm:$0xff]
    %v4409 = vld [vmem:[%s1 + $0xd8] sm:$0xff]
    %v4410 = vld [vmem:[%s1 + $0xe0] sm:$0xff]
    %v4411 = vld [vmem:[%s1 + $0xe8] sm:$0xff]
    %v4412 = vld [vmem:[%s1 + $0xf0] sm:$0xff]
    %v4413 = vld [vmem:[%s1 + $0xf8] sm:$0xff]
    %vm4414 = vcmask 523264
    %v4416 = vsel %vm4414, %v4404, 0
    %v4419 = vsel %vm4414, %v4405, 0
    %4421 = vmatprep.subr.mxu0 0.0
    %4422 = vmatpush1.msra.mxu0 0.0
    %4423 = vmatprep.subr.mxu0 0.0
    %4424 = vmatpush1.msra.mxu0 0.0
    %4425 = vmatprep.subr.mxu0 0.0
    %4426 = vmatpush1.msra.mxu0 0.0
    %4427 = vmatprep.subr.mxu0 0.0
    %4428 = vmatpush1.msra.mxu0 0.0
    %4429 = vmatprep.subr.mxu0 0.0
    %4430 = vmatpush1.msra.mxu0 0.0
    %4431 = vmatprep.subr.mxu0 0.0
    %4432 = vmatpush1.msra.mxu0 0.0
    %4433 = vmatprep.subr.mxu0 0.0
    %4434 = vmatpush1.msra.mxu0 0.0
    %4435 = vmatprep.subr.mxu0 0.0
    %4436 = vmatpush1.msra.mxu0 0.0
    %4437 = vmatprep.subr.mxu0 0.0
    %4438 = vmatpush1.msra.mxu0 %v4413
    %4439 = vmatprep.subr.mxu0 0.0
    %4440 = vmatpush1.msra.mxu0 %v4412
    %4441 = vmatprep.subr.mxu0 0.0
    %4442 = vmatpush1.msra.mxu0 %v4411
    %4443 = vmatprep.subr.mxu0 0.0
    %4444 = vmatpush1.msra.mxu0 %v4410
    %4445 = vmatprep.subr.mxu0 0.0
    %4446 = vmatpush1.msra.mxu0 %v4409
    %4447 = vmatprep.subr.mxu0 0.0
    %4448 = vmatpush1.msra.mxu0 %v4408
    %4449 = vmatprep.subr.mxu0 0.0
    %4450 = vmatpush1.msra.mxu0 %v4407
    %4451 = vmatprep.subr.mxu0 0.0
    %4452 = vmatpush1.msra.mxu0 %v4406
    %4453 = vmatprep.subr.mxu0 0.0
    %4454 = vmatpush2.msra.mxu0 0.0
    %4455 = vmatprep.subr.mxu0 0.0
    %4456 = vmatpush2.msra.mxu0 0.0
    %4457 = vmatprep.subr.mxu0 0.0
    %4458 = vmatpush2.msra.mxu0 0.0
    %4459 = vmatprep.subr.mxu0 0.0
    %4460 = vmatpush2.msra.mxu0 0.0
    %4461 = vmatprep.subr.mxu0 0.0
    %4462 = vmatpush2.msra.mxu0 0.0
    %4463 = vmatprep.subr.mxu0 0.0
    %4464 = vmatpush2.msra.mxu0 0.0
    %4465 = vmatprep.subr.mxu0 0.0
    %4466 = vmatpush2.msra.mxu0 0.0
    %4467 = vmatprep.subr.mxu0 0.0
    %4468 = vmatpush2.msra.mxu0 0.0
    %4469 = vmatprep.subr.mxu0 0.0
    %4470 = vmatpush2.msra.mxu0 0.0
    %4471 = vmatprep.subr.mxu0 0.0
    %4472 = vmatpush2.msra.mxu0 0.0
    %4473 = vmatprep.subr.mxu0 0.0
    %4474 = vmatpush2.msra.mxu0 0.0
    %4475 = vmatprep.subr.mxu0 0.0
    %4476 = vmatpush2.msra.mxu0 0.0
    %4477 = vmatprep.subr.mxu0 0.0
    %4478 = vmatpush2.msra.mxu0 0.0
    %4479 = vmatprep.subr.mxu0 0.0
    %4480 = vmatpush2.msra.mxu0 0.0
    %4481 = vmatprep.subr.mxu0 0.0
    %4482 = vmatpush2.msra.mxu0 0.0
    %4483 = vmatprep.subr.mxu0 0.0
    %4484 = vmatpush2.msra.mxu0 0.0
    %4485 = vmatprep.mubr.f32.mxu0 0.0
    %4486 = vmatmul.mubr.f32.gmra.mxu0 %v4416
    %v4487 = vpop.f32.mrf.mxu0
    %v4488 = vadd.f32 %v2152, %v4487
    %v4489 = vpop.f32.mrf.mxu0
    %4490 = vmatprep.mubr.f32.mxu0 0.0
    %4491 = vmatmul.mubr.f32.gmra.mxu0 %v4419
    %v4492 = vpop.f32.mrf.mxu0
    %v4493 = vadd.f32 %v4273, %v4492
    %v4494 = vpop.f32.mrf.mxu0
    %4495 = vdwg.mxu0
    %4496 = vst.msk [vmem:[#allocation2] sm:$0xff] %vm19, %v4488
    %s4497 = scalar_lea.vmem [#allocation2], 8
    %4498 = vst.msk [vmem:[%s4497] sm:$0xff] %vm19, %v4493
    // Predicated region
    $region14: #{tpu_custom_call.1} parent=1 // pred_check
      _
    $region15: #{tpu_custom_call.1} parent=1 // pred_check_branch
      %4500 = sbr.rel (0) target = $region17
    $region16: #{tpu_custom_call.1} parent=1 // pred_region
      %s4502 = ssub.s32 256, 256
      %4503 = vsyncadd [#allocation3], %s4502
      %s4504 = sshll.u32 [#allocation2], 4
      %s4505 = int_to_ptr.vmem [resolvable:$true] %s4504
      %4510 = dma.vmem_to_hbm [thread:$0]  %s4505, 256, %s3, [#allocation3], 128, 128, 8
    $region17: #{tpu_custom_call.1} parent=1 // pred_fallthru
      _
    // Predicated region
    $region18: #{tpu_custom_call.1} parent=1 // pred_check
      _
    $region19: #{tpu_custom_call.1} parent=1 // pred_check_branch
      %4512 = sbr.rel (0) target = $region21
    $region20: #{tpu_custom_call.1} parent=1 // pred_region
      _
    $region21: #{tpu_custom_call.1} parent=1 // pred_fallthru
      _
    // Predicated region
    $region22: #{tpu_custom_call.1} parent=1 // pred_check
      _
    $region23: #{tpu_custom_call.1} parent=1 // pred_check_branch
      %4514 = sbr.rel (0) target = $region25
    $region24: #{tpu_custom_call.1} parent=1 // pred_region
      %4515 = dma.done [#allocation3], 256
    $region25: #{tpu_custom_call.1} parent=1 // pred_fallthru
      _
    // Predicated region
    $region26: #{tpu_custom_call.1} parent=1 // pred_check
      _
    $region27: #{tpu_custom_call.1} parent=1 // pred_check_branch
      %4517 = sbr.rel (0) target = $region29
    $region28: #{tpu_custom_call.1} parent=1 // pred_region
      _
    $region29: #{tpu_custom_call.1} parent=1 // pred_fallthru
      _
    %4518 = vsyncpa [#allocation3], 1

</llo_original>
